<compile_context>
chip_gen: v5e
topology: v5e:2x2
jax: 0.10.0
libtpu: 0.0.40
codegen_flags: <defaults>
</compile_context>

<pallas_src>
import functools

import jax
import jax.numpy as jnp
import numpy as np
from jax.experimental import pallas as pl
from jax.experimental.pallas import tpu as pltpu


def _round_up(a: int, m: int) -> int:
    return (a + m - 1) // m * m


def _patchify_kernel(x_ref, o_ref, *, P, Y, KX, RC):
    """Re-layout one (CB, K*H, W) slab into (CB, P*P, K*X, Y).

    x_ref: (CB, K*H, W)       with K*H = K*X*P and W = Y*P
    o_ref: (CB, P*P, K*X, Y)  row index along dim 1 is xo*P + yo
    """
    CB = x_ref.shape[0]
    for xo in range(P):                       # static unroll, P is small
        r0 = 0
        while r0 < KX:                        # chunk rows to bound live vregs
            rc = min(RC, KX - r0)
            # Hardware sublane-strided load: picks rows (r0+t)*P + xo, t in [0, rc).
            sub = x_ref[:, pl.ds(xo + r0 * P, rc, stride=P), :]        # (CB, rc, W)
            # Lane de-interleave: split W = Y*P, swap minor pair so Yi becomes minor.
            subt = jnp.swapaxes(sub.reshape(CB, rc, Y, P), -1, -2)     # (CB, rc, P, Y)
            for yo in range(P):
                o_ref[:, xo * P + yo, pl.ds(r0, rc), :] = subt[:, :, yo, :]
            r0 += rc


def patchify(x: jax.Array, patch_size: int) -> jax.Array:
    """Pallas TPU implementation of Patchify.forward for (B, C, K, H, W) input."""
    B, C, K, H, W = x.shape
    P = patch_size
    assert H % P == 0 and W % P == 0, "spatial dims must be divisible by patch_size"
    X, Y = H // P, W // P
    KX = K * X
    itemsize = jnp.dtype(x.dtype).itemsize

    # ---- block sizing: fold channels so each grid step moves ~MiB-scale slabs ----
    in_c = _round_up(K * H, 8) * _round_up(W, 128) * itemsize           # padded VMEM / channel
    out_c = P * P * _round_up(KX, 8) * _round_up(Y, 128) * itemsize
    per_c = in_c + out_c
    target_block = 4 * 1024 * 1024                                      # ~4 MiB per step
    cb = 1
    for d in range(1, C + 1):
        if C % d == 0 and d * per_c <= target_block:
            cb = d
    # keep >= 2 parallel grid steps when possible (v7x has 2 TensorCores)
    if B * (C // cb) < 2 and cb > 1:
        smaller = [d for d in range(1, cb) if C % d == 0 and B * (C // d) >= 2]
        if smaller:
            cb = max(smaller)

    # Row-chunk size so a (cb, RC, W) strided slab stays well inside the 64-vreg file.
    rchunk = max(1, min(KX, (64 * 1024) // max(1, cb * W * itemsize)))
    if 8 < rchunk < KX:
        rchunk -= rchunk % 8

    # VMEM limit: double-buffered in+out blocks plus relayout headroom.
    vmem_limit = 2 * cb * per_c + 4 * 1024 * 1024
    vmem_limit = max(16 * 1024 * 1024, min(vmem_limit, 64 * 1024 * 1024))

    x_flat = x.reshape(B, C, K * H, W)        # free, contiguous view

    kernel = functools.partial(_patchify_kernel, P=P, Y=Y, KX=KX, RC=rchunk)

    out = pl.pallas_call(
        kernel,
        out_shape=jax.ShapeDtypeStruct((B, C, P * P, KX, Y), x.dtype),
        grid=(B, C // cb),
        in_specs=[
            pl.BlockSpec((None, cb, K * H, W), lambda b, c: (b, c, 0, 0)),
        ],
        out_specs=pl.BlockSpec((None, cb, P * P, KX, Y),
                               lambda b, c: (b, c, 0, 0, 0)),
        compiler_params=pltpu.CompilerParams(
            dimension_semantics=("parallel", "parallel"),
            vmem_limit_bytes=vmem_limit,
        ),
    )(x_flat)

    # Free, contiguous view back to the einops output layout.
    return out.reshape(B, C * P * P, K, X, Y)


def patchify_reference(x: jax.Array, patch_size: int) -> jax.Array:
    """Pure-JAX reference matching einops 'B C K (X x) (Y y) -> B (C x y) K X Y'."""
    B, C, K, H, W = x.shape
    P = patch_size
    X, Y = H // P, W // P
    x = x.reshape(B, C, K, X, P, Y, P)
    x = x.transpose(0, 1, 4, 6, 2, 3, 5)      # B C x y K X Y
    return x.reshape(B, C * P * P, K, X, Y)


if __name__ == "__main__":
    key = jax.random.PRNGKey(0)
    B, C, K, Hs, Ws = 2, 4, 2, 16, 16
    patch_size = 4

    x = jax.random.normal(key, (B, C, K, Hs, Ws), dtype=jnp.float32)

    out = jax.block_until_ready(patchify(x, patch_size))
    ref = patchify_reference(x, patch_size)

    assert out.shape == ref.shape == (B, C * patch_size * patch_size, K,
                                      Hs // patch_size, Ws // patch_size)
    # Pure data movement -> results must match exactly.
    np.testing.assert_array_equal(np.asarray(out), np.asarray(ref))

    print("KERNEL_OK")
</pallas_src>

<mosaic_0001>
module attributes {stable_mosaic.version = 11 : i64} {
  func.func @_patchify_kernel(%arg0: i32, %arg1: i32, %arg2: memref<1x4x32x16xf32, #tpu.memory_space<vmem>>, %arg3: memref<1x4x16x8x4xf32, #tpu.memory_space<vmem>>) attributes {dimension_semantics = [#tpu.dimension_semantics<parallel>, #tpu.dimension_semantics<parallel>], iteration_bounds = array<i64: 2, 1>, scalar_prefetch = 0 : i64, scratch_operands = 0 : i64, tpu.core_type = #tpu.core_type<tc>, window_params = [{transform_indices = @transform_0, window_bounds = array<i64: 1, 4, 32, 16>}, {transform_indices = @transform_1, window_bounds = array<i64: 1, 4, 16, 8, 4>}]} {
    %c0 = arith.constant 0 : index
    %c0_0 = arith.constant 0 : index
    %c0_1 = arith.constant 0 : index
    %c0_2 = arith.constant 0 : index
    %0 = tpu.strided_load %arg2[%c0, %c0_0, %c0_1, %c0_2] {strides = array<i32: 1, 1, 4, 1>} : memref<1x4x32x16xf32, #tpu.memory_space<vmem>>, vector<1x4x8x16xf32>
    %1 = vector.shape_cast %0 : vector<1x4x8x16xf32> to vector<4x8x16xf32>
    %2 = vector.shape_cast %1 : vector<4x8x16xf32> to vector<4x8x4x4xf32>
    %3 = tpu.transpose %2, [0, 1, 3, 2] : vector<4x8x4x4xf32> -> vector<4x8x4x4xf32>
    %4 = vector.extract_strided_slice %3 {offsets = [0, 0, 0, 0], sizes = [4, 8, 1, 4], strides = [1, 1, 1, 1]} : vector<4x8x4x4xf32> to vector<4x8x1x4xf32>
    %5 = vector.shape_cast %4 : vector<4x8x1x4xf32> to vector<4x8x4xf32>
    %c0_3 = arith.constant 0 : index
    %c0_4 = arith.constant 0 : index
    %c0_5 = arith.constant 0 : index
    %c0_6 = arith.constant 0 : index
    %c0_7 = arith.constant 0 : index
    %6 = vector.load %arg3[%c0_3, %c0_4, %c0_5, %c0_6, %c0_7] : memref<1x4x16x8x4xf32, #tpu.memory_space<vmem>>, vector<1x4x1x8x4xf32>
    %7 = vector.shape_cast %6 : vector<1x4x1x8x4xf32> to vector<4x8x4xf32>
    %8 = vector.shape_cast %5 : vector<4x8x4xf32> to vector<1x4x1x8x4xf32>
    tpu.vector_store %arg3[%c0_3, %c0_4, %c0_5, %c0_6, %c0_7], %8 {strides = array<i32>} : memref<1x4x16x8x4xf32, #tpu.memory_space<vmem>>, vector<1x4x1x8x4xf32>,
    %9 = vector.extract_strided_slice %3 {offsets = [0, 0, 1, 0], sizes = [4, 8, 1, 4], strides = [1, 1, 1, 1]} : vector<4x8x4x4xf32> to vector<4x8x1x4xf32>
    %10 = vector.shape_cast %9 : vector<4x8x1x4xf32> to vector<4x8x4xf32>
    %c0_8 = arith.constant 0 : index
    %c0_9 = arith.constant 0 : index
    %c1 = arith.constant 1 : index
    %c0_10 = arith.constant 0 : index
    %c0_11 = arith.constant 0 : index
    %11 = vector.load %arg3[%c0_8, %c0_9, %c1, %c0_10, %c0_11] : memref<1x4x16x8x4xf32, #tpu.memory_space<vmem>>, vector<1x4x1x8x4xf32>
    %12 = vector.shape_cast %11 : vector<1x4x1x8x4xf32> to vector<4x8x4xf32>
    %13 = vector.shape_cast %10 : vector<4x8x4xf32> to vector<1x4x1x8x4xf32>
    tpu.vector_store %arg3[%c0_8, %c0_9, %c1, %c0_10, %c0_11], %13 {strides = array<i32>} : memref<1x4x16x8x4xf32, #tpu.memory_space<vmem>>, vector<1x4x1x8x4xf32>,
    %14 = vector.extract_strided_slice %3 {offsets = [0, 0, 2, 0], sizes = [4, 8, 1, 4], strides = [1, 1, 1, 1]} : vector<4x8x4x4xf32> to vector<4x8x1x4xf32>
    %15 = vector.shape_cast %14 : vector<4x8x1x4xf32> to vector<4x8x4xf32>
    %c0_12 = arith.constant 0 : index
    %c0_13 = arith.constant 0 : index
    %c2 = arith.constant 2 : index
    %c0_14 = arith.constant 0 : index
    %c0_15 = arith.constant 0 : index
    %16 = vector.load %arg3[%c0_12, %c0_13, %c2, %c0_14, %c0_15] : memref<1x4x16x8x4xf32, #tpu.memory_space<vmem>>, vector<1x4x1x8x4xf32>
    %17 = vector.shape_cast %16 : vector<1x4x1x8x4xf32> to vector<4x8x4xf32>
    %18 = vector.shape_cast %15 : vector<4x8x4xf32> to vector<1x4x1x8x4xf32>
    tpu.vector_store %arg3[%c0_12, %c0_13, %c2, %c0_14, %c0_15], %18 {strides = array<i32>} : memref<1x4x16x8x4xf32, #tpu.memory_space<vmem>>, vector<1x4x1x8x4xf32>,
    %19 = vector.extract_strided_slice %3 {offsets = [0, 0, 3, 0], sizes = [4, 8, 1, 4], strides = [1, 1, 1, 1]} : vector<4x8x4x4xf32> to vector<4x8x1x4xf32>
    %20 = vector.shape_cast %19 : vector<4x8x1x4xf32> to vector<4x8x4xf32>
    %c0_16 = arith.constant 0 : index
    %c0_17 = arith.constant 0 : index
    %c3 = arith.constant 3 : index
    %c0_18 = arith.constant 0 : index
    %c0_19 = arith.constant 0 : index
    %21 = vector.load %arg3[%c0_16, %c0_17, %c3, %c0_18, %c0_19] : memref<1x4x16x8x4xf32, #tpu.memory_space<vmem>>, vector<1x4x1x8x4xf32>
    %22 = vector.shape_cast %21 : vector<1x4x1x8x4xf32> to vector<4x8x4xf32>
    %23 = vector.shape_cast %20 : vector<4x8x4xf32> to vector<1x4x1x8x4xf32>
    tpu.vector_store %arg3[%c0_16, %c0_17, %c3, %c0_18, %c0_19], %23 {strides = array<i32>} : memref<1x4x16x8x4xf32, #tpu.memory_space<vmem>>, vector<1x4x1x8x4xf32>,
    %c0_20 = arith.constant 0 : index
    %c0_21 = arith.constant 0 : index
    %c1_22 = arith.constant 1 : index
    %c0_23 = arith.constant 0 : index
    %24 = tpu.strided_load %arg2[%c0_20, %c0_21, %c1_22, %c0_23] {strides = array<i32: 1, 1, 4, 1>} : memref<1x4x32x16xf32, #tpu.memory_space<vmem>>, vector<1x4x8x16xf32>
    %25 = vector.shape_cast %24 : vector<1x4x8x16xf32> to vector<4x8x16xf32>
    %26 = vector.shape_cast %25 : vector<4x8x16xf32> to vector<4x8x4x4xf32>
    %27 = tpu.transpose %26, [0, 1, 3, 2] : vector<4x8x4x4xf32> -> vector<4x8x4x4xf32>
    %28 = vector.extract_strided_slice %27 {offsets = [0, 0, 0, 0], sizes = [4, 8, 1, 4], strides = [1, 1, 1, 1]} : vector<4x8x4x4xf32> to vector<4x8x1x4xf32>
    %29 = vector.shape_cast %28 : vector<4x8x1x4xf32> to vector<4x8x4xf32>
    %c0_24 = arith.constant 0 : index
    %c0_25 = arith.constant 0 : index
    %c4 = arith.constant 4 : index
    %c0_26 = arith.constant 0 : index
    %c0_27 = arith.constant 0 : index
    %30 = vector.load %arg3[%c0_24, %c0_25, %c4, %c0_26, %c0_27] : memref<1x4x16x8x4xf32, #tpu.memory_space<vmem>>, vector<1x4x1x8x4xf32>
    %31 = vector.shape_cast %30 : vector<1x4x1x8x4xf32> to vector<4x8x4xf32>
    %32 = vector.shape_cast %29 : vector<4x8x4xf32> to vector<1x4x1x8x4xf32>
    tpu.vector_store %arg3[%c0_24, %c0_25, %c4, %c0_26, %c0_27], %32 {strides = array<i32>} : memref<1x4x16x8x4xf32, #tpu.memory_space<vmem>>, vector<1x4x1x8x4xf32>,
    %33 = vector.extract_strided_slice %27 {offsets = [0, 0, 1, 0], sizes = [4, 8, 1, 4], strides = [1, 1, 1, 1]} : vector<4x8x4x4xf32> to vector<4x8x1x4xf32>
    %34 = vector.shape_cast %33 : vector<4x8x1x4xf32> to vector<4x8x4xf32>
    %c0_28 = arith.constant 0 : index
    %c0_29 = arith.constant 0 : index
    %c5 = arith.constant 5 : index
    %c0_30 = arith.constant 0 : index
    %c0_31 = arith.constant 0 : index
    %35 = vector.load %arg3[%c0_28, %c0_29, %c5, %c0_30, %c0_31] : memref<1x4x16x8x4xf32, #tpu.memory_space<vmem>>, vector<1x4x1x8x4xf32>
    %36 = vector.shape_cast %35 : vector<1x4x1x8x4xf32> to vector<4x8x4xf32>
    %37 = vector.shape_cast %34 : vector<4x8x4xf32> to vector<1x4x1x8x4xf32>
    tpu.vector_store %arg3[%c0_28, %c0_29, %c5, %c0_30, %c0_31], %37 {strides = array<i32>} : memref<1x4x16x8x4xf32, #tpu.memory_space<vmem>>, vector<1x4x1x8x4xf32>,
    %38 = vector.extract_strided_slice %27 {offsets = [0, 0, 2, 0], sizes = [4, 8, 1, 4], strides = [1, 1, 1, 1]} : vector<4x8x4x4xf32> to vector<4x8x1x4xf32>
    %39 = vector.shape_cast %38 : vector<4x8x1x4xf32> to vector<4x8x4xf32>
    %c0_32 = arith.constant 0 : index
    %c0_33 = arith.constant 0 : index
    %c6 = arith.constant 6 : index
    %c0_34 = arith.constant 0 : index
    %c0_35 = arith.constant 0 : index
    %40 = vector.load %arg3[%c0_32, %c0_33, %c6, %c0_34, %c0_35] : memref<1x4x16x8x4xf32, #tpu.memory_space<vmem>>, vector<1x4x1x8x4xf32>
    %41 = vector.shape_cast %40 : vector<1x4x1x8x4xf32> to vector<4x8x4xf32>
    %42 = vector.shape_cast %39 : vector<4x8x4xf32> to vector<1x4x1x8x4xf32>
    tpu.vector_store %arg3[%c0_32, %c0_33, %c6, %c0_34, %c0_35], %42 {strides = array<i32>} : memref<1x4x16x8x4xf32, #tpu.memory_space<vmem>>, vector<1x4x1x8x4xf32>,
    %43 = vector.extract_strided_slice %27 {offsets = [0, 0, 3, 0], sizes = [4, 8, 1, 4], strides = [1, 1, 1, 1]} : vector<4x8x4x4xf32> to vector<4x8x1x4xf32>
    %44 = vector.shape_cast %43 : vector<4x8x1x4xf32> to vector<4x8x4xf32>
    %c0_36 = arith.constant 0 : index
    %c0_37 = arith.constant 0 : index
    %c7 = arith.constant 7 : index
    %c0_38 = arith.constant 0 : index
    %c0_39 = arith.constant 0 : index
    %45 = vector.load %arg3[%c0_36, %c0_37, %c7, %c0_38, %c0_39] : memref<1x4x16x8x4xf32, #tpu.memory_space<vmem>>, vector<1x4x1x8x4xf32>
    %46 = vector.shape_cast %45 : vector<1x4x1x8x4xf32> to vector<4x8x4xf32>
    %47 = vector.shape_cast %44 : vector<4x8x4xf32> to vector<1x4x1x8x4xf32>
    tpu.vector_store %arg3[%c0_36, %c0_37, %c7, %c0_38, %c0_39], %47 {strides = array<i32>} : memref<1x4x16x8x4xf32, #tpu.memory_space<vmem>>, vector<1x4x1x8x4xf32>,
    %c0_40 = arith.constant 0 : index
    %c0_41 = arith.constant 0 : index
    %c2_42 = arith.constant 2 : index
    %c0_43 = arith.constant 0 : index
    %48 = tpu.strided_load %arg2[%c0_40, %c0_41, %c2_42, %c0_43] {strides = array<i32: 1, 1, 4, 1>} : memref<1x4x32x16xf32, #tpu.memory_space<vmem>>, vector<1x4x8x16xf32>
    %49 = vector.shape_cast %48 : vector<1x4x8x16xf32> to vector<4x8x16xf32>
    %50 = vector.shape_cast %49 : vector<4x8x16xf32> to vector<4x8x4x4xf32>
    %51 = tpu.transpose %50, [0, 1, 3, 2] : vector<4x8x4x4xf32> -> vector<4x8x4x4xf32>
    %52 = vector.extract_strided_slice %51 {offsets = [0, 0, 0, 0], sizes = [4, 8, 1, 4], strides = [1, 1, 1, 1]} : vector<4x8x4x4xf32> to vector<4x8x1x4xf32>
    %53 = vector.shape_cast %52 : vector<4x8x1x4xf32> to vector<4x8x4xf32>
    %c0_44 = arith.constant 0 : index
    %c0_45 = arith.constant 0 : index
    %c8 = arith.constant 8 : index
    %c0_46 = arith.constant 0 : index
    %c0_47 = arith.constant 0 : index
    %54 = vector.load %arg3[%c0_44, %c0_45, %c8, %c0_46, %c0_47] : memref<1x4x16x8x4xf32, #tpu.memory_space<vmem>>, vector<1x4x1x8x4xf32>
    %55 = vector.shape_cast %54 : vector<1x4x1x8x4xf32> to vector<4x8x4xf32>
    %56 = vector.shape_cast %53 : vector<4x8x4xf32> to vector<1x4x1x8x4xf32>
    tpu.vector_store %arg3[%c0_44, %c0_45, %c8, %c0_46, %c0_47], %56 {strides = array<i32>} : memref<1x4x16x8x4xf32, #tpu.memory_space<vmem>>, vector<1x4x1x8x4xf32>,
    %57 = vector.extract_strided_slice %51 {offsets = [0, 0, 1, 0], sizes = [4, 8, 1, 4], strides = [1, 1, 1, 1]} : vector<4x8x4x4xf32> to vector<4x8x1x4xf32>
    %58 = vector.shape_cast %57 : vector<4x8x1x4xf32> to vector<4x8x4xf32>
    %c0_48 = arith.constant 0 : index
    %c0_49 = arith.constant 0 : index
    %c9 = arith.constant 9 : index
    %c0_50 = arith.constant 0 : index
    %c0_51 = arith.constant 0 : index
    %59 = vector.load %arg3[%c0_48, %c0_49, %c9, %c0_50, %c0_51] : memref<1x4x16x8x4xf32, #tpu.memory_space<vmem>>, vector<1x4x1x8x4xf32>
    %60 = vector.shape_cast %59 : vector<1x4x1x8x4xf32> to vector<4x8x4xf32>
    %61 = vector.shape_cast %58 : vector<4x8x4xf32> to vector<1x4x1x8x4xf32>
    tpu.vector_store %arg3[%c0_48, %c0_49, %c9, %c0_50, %c0_51], %61 {strides = array<i32>} : memref<1x4x16x8x4xf32, #tpu.memory_space<vmem>>, vector<1x4x1x8x4xf32>,
    %62 = vector.extract_strided_slice %51 {offsets = [0, 0, 2, 0], sizes = [4, 8, 1, 4], strides = [1, 1, 1, 1]} : vector<4x8x4x4xf32> to vector<4x8x1x4xf32>
    %63 = vector.shape_cast %62 : vector<4x8x1x4xf32> to vector<4x8x4xf32>
    %c0_52 = arith.constant 0 : index
    %c0_53 = arith.constant 0 : index
    %c10 = arith.constant 10 : index
    %c0_54 = arith.constant 0 : index
    %c0_55 = arith.constant 0 : index
    %64 = vector.load %arg3[%c0_52, %c0_53, %c10, %c0_54, %c0_55] : memref<1x4x16x8x4xf32, #tpu.memory_space<vmem>>, vector<1x4x1x8x4xf32>
    %65 = vector.shape_cast %64 : vector<1x4x1x8x4xf32> to vector<4x8x4xf32>
    %66 = vector.shape_cast %63 : vector<4x8x4xf32> to vector<1x4x1x8x4xf32>
    tpu.vector_store %arg3[%c0_52, %c0_53, %c10, %c0_54, %c0_55], %66 {strides = array<i32>} : memref<1x4x16x8x4xf32, #tpu.memory_space<vmem>>, vector<1x4x1x8x4xf32>,
    %67 = vector.extract_strided_slice %51 {offsets = [0, 0, 3, 0], sizes = [4, 8, 1, 4], strides = [1, 1, 1, 1]} : vector<4x8x4x4xf32> to vector<4x8x1x4xf32>
    %68 = vector.shape_cast %67 : vector<4x8x1x4xf32> to vector<4x8x4xf32>
    %c0_56 = arith.constant 0 : index
    %c0_57 = arith.constant 0 : index
    %c11 = arith.constant 11 : index
    %c0_58 = arith.constant 0 : index
    %c0_59 = arith.constant 0 : index
    %69 = vector.load %arg3[%c0_56, %c0_57, %c11, %c0_58, %c0_59] : memref<1x4x16x8x4xf32, #tpu.memory_space<vmem>>, vector<1x4x1x8x4xf32>
    %70 = vector.shape_cast %69 : vector<1x4x1x8x4xf32> to vector<4x8x4xf32>
    %71 = vector.shape_cast %68 : vector<4x8x4xf32> to vector<1x4x1x8x4xf32>
    tpu.vector_store %arg3[%c0_56, %c0_57, %c11, %c0_58, %c0_59], %71 {strides = array<i32>} : memref<1x4x16x8x4xf32, #tpu.memory_space<vmem>>, vector<1x4x1x8x4xf32>,
    %c0_60 = arith.constant 0 : index
    %c0_61 = arith.constant 0 : index
    %c3_62 = arith.constant 3 : index
    %c0_63 = arith.constant 0 : index
    %72 = tpu.strided_load %arg2[%c0_60, %c0_61, %c3_62, %c0_63] {strides = array<i32: 1, 1, 4, 1>} : memref<1x4x32x16xf32, #tpu.memory_space<vmem>>, vector<1x4x8x16xf32>
    %73 = vector.shape_cast %72 : vector<1x4x8x16xf32> to vector<4x8x16xf32>
    %74 = vector.shape_cast %73 : vector<4x8x16xf32> to vector<4x8x4x4xf32>
    %75 = tpu.transpose %74, [0, 1, 3, 2] : vector<4x8x4x4xf32> -> vector<4x8x4x4xf32>
    %76 = vector.extract_strided_slice %75 {offsets = [0, 0, 0, 0], sizes = [4, 8, 1, 4], strides = [1, 1, 1, 1]} : vector<4x8x4x4xf32> to vector<4x8x1x4xf32>
    %77 = vector.shape_cast %76 : vector<4x8x1x4xf32> to vector<4x8x4xf32>
    %c0_64 = arith.constant 0 : index
    %c0_65 = arith.constant 0 : index
    %c12 = arith.constant 12 : index
    %c0_66 = arith.constant 0 : index
    %c0_67 = arith.constant 0 : index
    %78 = vector.load %arg3[%c0_64, %c0_65, %c12, %c0_66, %c0_67] : memref<1x4x16x8x4xf32, #tpu.memory_space<vmem>>, vector<1x4x1x8x4xf32>
    %79 = vector.shape_cast %78 : vector<1x4x1x8x4xf32> to vector<4x8x4xf32>
    %80 = vector.shape_cast %77 : vector<4x8x4xf32> to vector<1x4x1x8x4xf32>
    tpu.vector_store %arg3[%c0_64, %c0_65, %c12, %c0_66, %c0_67], %80 {strides = array<i32>} : memref<1x4x16x8x4xf32, #tpu.memory_space<vmem>>, vector<1x4x1x8x4xf32>,
    %81 = vector.extract_strided_slice %75 {offsets = [0, 0, 1, 0], sizes = [4, 8, 1, 4], strides = [1, 1, 1, 1]} : vector<4x8x4x4xf32> to vector<4x8x1x4xf32>
    %82 = vector.shape_cast %81 : vector<4x8x1x4xf32> to vector<4x8x4xf32>
    %c0_68 = arith.constant 0 : index
    %c0_69 = arith.constant 0 : index
    %c13 = arith.constant 13 : index
    %c0_70 = arith.constant 0 : index
    %c0_71 = arith.constant 0 : index
    %83 = vector.load %arg3[%c0_68, %c0_69, %c13, %c0_70, %c0_71] : memref<1x4x16x8x4xf32, #tpu.memory_space<vmem>>, vector<1x4x1x8x4xf32>
    %84 = vector.shape_cast %83 : vector<1x4x1x8x4xf32> to vector<4x8x4xf32>
    %85 = vector.shape_cast %82 : vector<4x8x4xf32> to vector<1x4x1x8x4xf32>
    tpu.vector_store %arg3[%c0_68, %c0_69, %c13, %c0_70, %c0_71], %85 {strides = array<i32>} : memref<1x4x16x8x4xf32, #tpu.memory_space<vmem>>, vector<1x4x1x8x4xf32>,
    %86 = vector.extract_strided_slice %75 {offsets = [0, 0, 2, 0], sizes = [4, 8, 1, 4], strides = [1, 1, 1, 1]} : vector<4x8x4x4xf32> to vector<4x8x1x4xf32>
    %87 = vector.shape_cast %86 : vector<4x8x1x4xf32> to vector<4x8x4xf32>
    %c0_72 = arith.constant 0 : index
    %c0_73 = arith.constant 0 : index
    %c14 = arith.constant 14 : index
    %c0_74 = arith.constant 0 : index
    %c0_75 = arith.constant 0 : index
    %88 = vector.load %arg3[%c0_72, %c0_73, %c14, %c0_74, %c0_75] : memref<1x4x16x8x4xf32, #tpu.memory_space<vmem>>, vector<1x4x1x8x4xf32>
    %89 = vector.shape_cast %88 : vector<1x4x1x8x4xf32> to vector<4x8x4xf32>
    %90 = vector.shape_cast %87 : vector<4x8x4xf32> to vector<1x4x1x8x4xf32>
    tpu.vector_store %arg3[%c0_72, %c0_73, %c14, %c0_74, %c0_75], %90 {strides = array<i32>} : memref<1x4x16x8x4xf32, #tpu.memory_space<vmem>>, vector<1x4x1x8x4xf32>,
    %91 = vector.extract_strided_slice %75 {offsets = [0, 0, 3, 0], sizes = [4, 8, 1, 4], strides = [1, 1, 1, 1]} : vector<4x8x4x4xf32> to vector<4x8x1x4xf32>
    %92 = vector.shape_cast %91 : vector<4x8x1x4xf32> to vector<4x8x4xf32>
    %c0_76 = arith.constant 0 : index
    %c0_77 = arith.constant 0 : index
    %c15 = arith.constant 15 : index
    %c0_78 = arith.constant 0 : index
    %c0_79 = arith.constant 0 : index
    %93 = vector.load %arg3[%c0_76, %c0_77, %c15, %c0_78, %c0_79] : memref<1x4x16x8x4xf32, #tpu.memory_space<vmem>>, vector<1x4x1x8x4xf32>
    %94 = vector.shape_cast %93 : vector<1x4x1x8x4xf32> to vector<4x8x4xf32>
    %95 = vector.shape_cast %92 : vector<4x8x4xf32> to vector<1x4x1x8x4xf32>
    tpu.vector_store %arg3[%c0_76, %c0_77, %c15, %c0_78, %c0_79], %95 {strides = array<i32>} : memref<1x4x16x8x4xf32, #tpu.memory_space<vmem>>, vector<1x4x1x8x4xf32>,
    return
  }
  func.func @transform_0(%arg0: i32, %arg1: i32) -> (i32, i32, i32, i32) {
    %c0_i32 = arith.constant 0 : i32
    %c0_i32_0 = arith.constant 0 : i32
    %c0_i32_1 = arith.constant 0 : i32
    return %arg0, %arg1, %c0_i32, %c0_i32_0 : i32, i32, i32, i32
  }
  func.func @transform_1(%arg0: i32, %arg1: i32) -> (i32, i32, i32, i32, i32) {
    %c0_i32 = arith.constant 0 : i32
    %c0_i32_0 = arith.constant 0 : i32
    %c0_i32_1 = arith.constant 0 : i32
    %c0_i32_2 = arith.constant 0 : i32
    return %arg0, %arg1, %c0_i32, %c0_i32_0, %c0_i32_1 : i32, i32, i32, i32, i32
  }
}

</mosaic_0001>

<llo_original>
// kernel: tpu_custom_call.1
$region0: #{tpu_custom_call.1}
  #allocation0 [shape = 'u32[]', space=smem, size = 0x4, offset = 0x4, fixed_abs, tag = 'smem constant byte address 0x4 - core index']
  #allocation1 [shape = 'u32[72,128]{1,0:T(1,128)}', space=vmem, size = 0x9000, scoped, tag = 'internal scratch']
  %s0 = inlined_call_operand.vmem [shape: f32[2,4,32,16], index: 0, kind: input, shape index: {}]
  %s1 = inlined_call_operand.vmem [shape: f32[2,4,16,8,4], index: 1, kind: output, shape index: {}]
  %s2 = sld [smem:[#allocation0]]
  $region37: #{tpu_custom_call.1} parent=0
    _
  %s4 = ssub.s32 1, %s2
  %s5 = scalar_select 0, %s4, %s2
  loop: start=0, step=1, limit=4
  $region2: #{tpu_custom_call.1} parent=0 // loop_pre_header
    _
  $region3: #{tpu_custom_call.1} parent=0 // loop_header
    %s7 = sphi 0, %s11
    %p8 = scmp.ge.s32.totalorder %s7, 4
    %s14 = sphi 0, %s26
    %s15 = sphi 0, %s22
    %s16 = sphi 0, %s14
    %s17 = sphi 0, %s15
    %s18 = sphi 0, %s16
    %s19 = sphi 0, %s17
    %s31 = sphi 0, %s33
    %s34 = sphi 0, %s31
    %s35 = sphi 0, %s34
    %s51 = sphi 0, %s35
    %s59 = sphi 0, %s61
    %s62 = sphi 0, %s59
    %s63 = sphi 0, %s62
    %s79 = sphi 0, %s63
  $region4: #{tpu_custom_call.1} parent=0 // loop_header_branch
    %10 = sbr.rel (%p8) target = $region8
  $region5: #{tpu_custom_call.1} parent=0 // loop_body
    %s12 = ssub.s32 %s7, 1
    %s13 = ssub.s32 %s7, 2
    %s20 = sadd.s32 1, %s15
    %p21 = scmp.ge.s32.totalorder %s20, 1
    %s22 = scalar_select %p21, 0, %s20
    %s23 = sadd.s32 1, %s14
    %s24 = scalar_select %p21, %s23, %s14
    %p25 = scmp.ge.s32.totalorder %s24, 2
    %s26 = scalar_select %p25, 0, %s24
    %s27 = ssub.s32 %s14, %s26
    %s28 = ssub.s32 %s15, %s22
    %s29 = sor.u32 %s27, %s28
    %p30 = scmp.eq.s32.totalorder %s29, 0
    %s32 = sadd.s32 %s31, 1
    %s33 = scalar_select %p30, %s31, %s32
    %p36 = pneg %p30
    %p37 = scmp.eq.s32.totalorder %s7, 1
    %p38 = por %p36, %p37
    %p39 = scmp.ne.s32.totalorder %s31, %s34
    %p40 = scmp.eq.s32.totalorder %s7, 0
    %p41 = por %p39, %p40
    %p42 = scmp.ne.s32.totalorder %s31, %s34
    %p43 = scmp.eq.s32.totalorder %s12, 1
    %p44 = por %p42, %p43
    %p45 = scmp.ne.s32.totalorder %s34, %s35
    %p46 = scmp.eq.s32.totalorder %s12, 0
    %p47 = por %p45, %p46
    %p48 = scmp.ne.s32.totalorder %s34, %s35
    %p49 = scmp.eq.s32.totalorder %s13, 1
    %p50 = por %p48, %p49
    %p52 = scmp.ne.s32.totalorder %s35, %s51
    %p53 = scmp.eq.s32.totalorder %s13, 0
    %p54 = por %p52, %p53
    %s55 = ssub.s32 %s14, %s26
    %s56 = ssub.s32 %s15, %s22
    %s57 = sor.u32 %s55, %s56
    %p58 = scmp.eq.s32.totalorder %s57, 0
    %s60 = sadd.s32 %s59, 1
    %s61 = scalar_select %p58, %s59, %s60
    %p64 = pneg %p58
    %p65 = scmp.eq.s32.totalorder %s7, 1
    %p66 = por %p64, %p65
    %p67 = scmp.ne.s32.totalorder %s59, %s62
    %p68 = scmp.eq.s32.totalorder %s7, 0
    %p69 = por %p67, %p68
    %p70 = scmp.ne.s32.totalorder %s59, %s62
    %p71 = scmp.eq.s32.totalorder %s12, 1
    %p72 = por %p70, %p71
    %p73 = scmp.ne.s32.totalorder %s62, %s63
    %p74 = scmp.eq.s32.totalorder %s12, 0
    %p75 = por %p73, %p74
    %p76 = scmp.ne.s32.totalorder %s62, %s63
    %p77 = scmp.eq.s32.totalorder %s13, 1
    %p78 = por %p76, %p77
    %p80 = scmp.ne.s32.totalorder %s63, %s79
    %p81 = scmp.eq.s32.totalorder %s13, 0
    %p82 = por %p80, %p81
    %p83 = scmp.le.s32.totalorder 1, %s7
    %p84 = scmp.lt.s32.totalorder %s7, 3
    %p85 = pnand %p83, %p84
    %p86 = pneg %p85
    // Predicated region
    $region9: #{tpu_custom_call.1} parent=5 // pred_check
      _
    $region10: #{tpu_custom_call.1} parent=5 // pred_check_branch
      %88 = sbr.rel (%p85) target = $region12
    $region11: #{tpu_custom_call.1} parent=5 // pred_region
      %s89 = ssub.s32 %s7, 1
    $region12: #{tpu_custom_call.1} parent=5 // pred_fallthru
      _
    %p90 = scmp.lt.s32.totalorder %s7, 2
    // Predicated region
    $region13: #{tpu_custom_call.1} parent=5 // pred_check
      %p91 = pneg %p90
    $region14: #{tpu_custom_call.1} parent=5 // pred_check_branch
      %93 = sbr.rel (%p91) target = $region16
    $region15: #{tpu_custom_call.1} parent=5 // pred_region
      // Predicated region
      $region17: #{tpu_custom_call.1} parent=15 // pred_check
        %p94 = pneg %p41
      $region18: #{tpu_custom_call.1} parent=15 // pred_check_branch
        %96 = sbr.rel (%p94) target = $region20
      $region19: #{tpu_custom_call.1} parent=15 // pred_region
        %s97 = smul.u32 4, %s15
        %p98 = scmp.lt.s32.totalorder %s14, 1
        %s99 = scalar_select %p98, %s14, 1
        %p100 = scmp.lt.s32.totalorder %s97, 3
        %s101 = scalar_select %p100, %s97, 3
        %s102 = smul.addr %s101, 4
        %s103 = smul.addr %s99, 16
        %s104 = sadd.s32 %s102, %s103
        %s105 = smul.addr %s104, 8
        %s106 = scalar_lea.vmem %s0, %s105
        %s107 = smul.u32 4, %s15
      $region20: #{tpu_custom_call.1} parent=15 // pred_fallthru
        _
    $region16: #{tpu_custom_call.1} parent=5 // pred_fallthru
      _
    %p108 = scmp.le.s32.totalorder 1, %s7
    %p109 = scmp.lt.s32.totalorder %s7, 3
    %p110 = pnand %p108, %p109
    %p111 = pneg %p110
    // Predicated region
    $region21: #{tpu_custom_call.1} parent=5 // pred_check
      _
    $region22: #{tpu_custom_call.1} parent=5 // pred_check_branch
      %113 = sbr.rel (%p110) target = $region24
    $region23: #{tpu_custom_call.1} parent=5 // pred_region
      %s114 = ssub.s32 %s7, 1
      %s115 = smul.u32 4, %s17
      %p116 = scmp.lt.s32.totalorder %s16, 1
      %s117 = scalar_select %p116, %s16, 1
      %p118 = scmp.lt.s32.totalorder %s115, 3
      %s119 = scalar_select %p118, %s115, 3
      %s120 = smul.addr %s119, 4
      %s121 = smul.addr %s117, 16
      %s122 = sadd.s32 %s120, %s121
      %s123 = smul.addr %s122, 8
      %s124 = scalar_lea.vmem %s0, %s123
      %p125 = pneg %p47
      %p126 = pneg %p44
      %p127 = pneg %p75
      %p128 = pneg %p72
      %s129 = smul.u32 4, %s17
      %p130 = scmp.lt.s32.totalorder %s16, 1
      %s131 = scalar_select %p130, %s16, 1
      %p132 = scmp.lt.s32.totalorder %s129, 3
      %s133 = scalar_select %p132, %s129, 3
      %s134 = smul.addr %s133, 16
      %s135 = smul.addr %s131, 64
      %s136 = sadd.s32 %s134, %s135
      %s137 = smul.addr %s136, 8
      %s138 = scalar_lea.vmem %s1, %s137
      %s139 = smul.u32 4, %s17
      %p140 = scmp.lt.s32.totalorder %s16, 1
      %s141 = scalar_select %p140, %s16, 1
      %p142 = scmp.lt.s32.totalorder %s139, 3
      %s143 = scalar_select %p142, %s139, 3
      %s144 = smul.addr %s143, 4
      %s145 = smul.addr %s141, 16
      %s146 = sadd.s32 %s144, %s145
      %s147 = smul.addr %s146, 8
      %s148 = scalar_lea.vmem %s0, %s147
      %s149 = smul.u32 4, %s17
      %s150 = smul.u32 4, %s17
      %p151 = scmp.lt.s32.totalorder %s16, 1
      %s152 = scalar_select %p151, %s16, 1
      %p153 = scmp.lt.s32.totalorder %s150, 3
      %s154 = scalar_select %p153, %s150, 3
      %s155 = smul.addr %s154, 16
      %s156 = smul.addr %s152, 64
      %s157 = sadd.s32 %s155, %s156
      %s158 = smul.addr %s157, 8
      %s159 = scalar_lea.vmem %s1, %s158
      %s160 = smul.u32 4, %s17
      %v161 = vld [vmem:[%s148] ss:$4 sm:$0xff]
      %s162 = scalar_lea.vmem %s148, 32
      %v163 = vld [vmem:[%s162] ss:$4 sm:$0xff]
      %s164 = scalar_lea.vmem %s148, 64
      %v165 = vld [vmem:[%s164] ss:$4 sm:$0xff]
      %s166 = scalar_lea.vmem %s148, 96
      %v167 = vld [vmem:[%s166] ss:$4 sm:$0xff]
      %172 = vrot.lane.b32.xlu0 %v161, 124
      %v173 = vpop.permute.xlu0 %172
      %174 = vrot.lane.b32.xlu0 %v163, 124
      %v175 = vpop.permute.xlu0 %174
      %176 = vrot.lane.b32.xlu0 %v165, 124
      %v177 = vpop.permute.xlu0 %176
      %178 = vrot.lane.b32.xlu0 %v167, 124
      %v179 = vpop.permute.xlu0 %178
      %184 = vrot.lane.b32.xlu0 %v161, 120
      %v185 = vpop.permute.xlu0 %184
      %186 = vrot.lane.b32.xlu0 %v163, 120
      %v187 = vpop.permute.xlu0 %186
      %188 = vrot.lane.b32.xlu0 %v165, 120
      %v189 = vpop.permute.xlu0 %188
      %190 = vrot.lane.b32.xlu0 %v167, 120
      %v191 = vpop.permute.xlu0 %190
      %196 = vrot.lane.b32.xlu0 %v161, 116
      %v197 = vpop.permute.xlu0 %196
      %198 = vrot.lane.b32.xlu0 %v163, 116
      %v199 = vpop.permute.xlu0 %198
      %200 = vrot.lane.b32.xlu0 %v165, 116
      %v201 = vpop.permute.xlu0 %200
      %202 = vrot.lane.b32.xlu0 %v167, 116
      %v203 = vpop.permute.xlu0 %202
      %v208 = vrot.slane %v185, 4
      %vm209 = vcmask 1047556
      %v210 = vsel %vm209, %v208, %v161
      %v211 = vrot.slane %v161, 4
      %v212 = vsel %vm209, %v185, %v211
      %v214 = vunpack.c.l.s4 1983009808
      %v215 = vunpack.c.0.s8 %v214
      %v216 = vperm.slane %v210, %v215
      %v218 = vunpack.c.l.s4 1983009808
      %v219 = vunpack.c.0.s8 %v218
      %v220 = vperm.slane %v212, %v219
      %v221 = vrot.slane %v197, 4
      %v222 = vsel %vm209, %v221, %v173
      %v223 = vrot.slane %v173, 4
      %v224 = vsel %vm209, %v197, %v223
      %v226 = vunpack.c.l.s4 1983009808
      %v227 = vunpack.c.0.s8 %v226
      %v228 = vperm.slane %v222, %v227
      %v230 = vunpack.c.l.s4 1983009808
      %v231 = vunpack.c.0.s8 %v230
      %v232 = vperm.slane %v224, %v231
      %v233 = vrot.slane %v228, 4
      %v234 = vsel %vm209, %v233, %v216
      %v235 = vrot.slane %v216, 4
      %v236 = vsel %vm209, %v228, %v235
      %v238 = vunpack.c.l.s4 1934713408
      %v239 = vunpack.c.0.s8 %v238
      %v240 = vperm.slane %v234, %v239
      %v242 = vunpack.c.l.s4 1934713408
      %v243 = vunpack.c.0.s8 %v242
      %v244 = vperm.slane %v236, %v243
      %v245 = vrot.slane %v232, 4
      %v246 = vsel %vm209, %v245, %v220
      %v247 = vrot.slane %v220, 4
      %v248 = vsel %vm209, %v232, %v247
      %v250 = vunpack.c.l.s4 1934713408
      %v251 = vunpack.c.0.s8 %v250
      %v252 = vperm.slane %v246, %v251
      %v254 = vunpack.c.l.s4 1934713408
      %v255 = vunpack.c.0.s8 %v254
      %v256 = vperm.slane %v248, %v255
      %v257 = vrot.slane %v240, 4
      %v258 = vsel %vm209, 0.0, %v257
      %v259 = vrot.slane %v244, 4
      %v260 = vsel %vm209, 0.0, %v259
      %v261 = vrot.slane %v252, 4
      %v262 = vsel %vm209, 0.0, %v261
      %v263 = vrot.slane %v256, 4
      %v264 = vsel %vm209, 0.0, %v263
      %v265 = vrot.slane %v187, 4
      %v266 = vsel %vm209, %v265, %v163
      %v267 = vrot.slane %v163, 4
      %v268 = vsel %vm209, %v187, %v267
      %v270 = vunpack.c.l.s4 1983009808
      %v271 = vunpack.c.0.s8 %v270
      %v272 = vperm.slane %v266, %v271
      %v274 = vunpack.c.l.s4 1983009808
      %v275 = vunpack.c.0.s8 %v274
      %v276 = vperm.slane %v268, %v275
      %v277 = vrot.slane %v199, 4
      %v278 = vsel %vm209, %v277, %v175
      %v279 = vrot.slane %v175, 4
      %v280 = vsel %vm209, %v199, %v279
      %v282 = vunpack.c.l.s4 1983009808
      %v283 = vunpack.c.0.s8 %v282
      %v284 = vperm.slane %v278, %v283
      %v286 = vunpack.c.l.s4 1983009808
      %v287 = vunpack.c.0.s8 %v286
      %v288 = vperm.slane %v280, %v287
      %v289 = vrot.slane %v284, 4
      %v290 = vsel %vm209, %v289, %v272
      %v291 = vrot.slane %v272, 4
      %v292 = vsel %vm209, %v284, %v291
      %v294 = vunpack.c.l.s4 1934713408
      %v295 = vunpack.c.0.s8 %v294
      %v296 = vperm.slane %v290, %v295
      %v298 = vunpack.c.l.s4 1934713408
      %v299 = vunpack.c.0.s8 %v298
      %v300 = vperm.slane %v292, %v299
      %v301 = vrot.slane %v288, 4
      %v302 = vsel %vm209, %v301, %v276
      %v303 = vrot.slane %v276, 4
      %v304 = vsel %vm209, %v288, %v303
      %v306 = vunpack.c.l.s4 1934713408
      %v307 = vunpack.c.0.s8 %v306
      %v308 = vperm.slane %v302, %v307
      %v310 = vunpack.c.l.s4 1934713408
      %v311 = vunpack.c.0.s8 %v310
      %v312 = vperm.slane %v304, %v311
      %v313 = vrot.slane %v296, 4
      %v314 = vsel %vm209, 0.0, %v313
      %v315 = vrot.slane %v300, 4
      %v316 = vsel %vm209, 0.0, %v315
      %v317 = vrot.slane %v308, 4
      %v318 = vsel %vm209, 0.0, %v317
      %v319 = vrot.slane %v312, 4
      %v320 = vsel %vm209, 0.0, %v319
      %v321 = vrot.slane %v189, 4
      %v322 = vsel %vm209, %v321, %v165
      %v323 = vrot.slane %v165, 4
      %v324 = vsel %vm209, %v189, %v323
      %v326 = vunpack.c.l.s4 1983009808
      %v327 = vunpack.c.0.s8 %v326
      %v328 = vperm.slane %v322, %v327
      %v330 = vunpack.c.l.s4 1983009808
      %v331 = vunpack.c.0.s8 %v330
      %v332 = vperm.slane %v324, %v331
      %v333 = vrot.slane %v201, 4
      %v334 = vsel %vm209, %v333, %v177
      %v335 = vrot.slane %v177, 4
      %v336 = vsel %vm209, %v201, %v335
      %v338 = vunpack.c.l.s4 1983009808
      %v339 = vunpack.c.0.s8 %v338
      %v340 = vperm.slane %v334, %v339
      %v342 = vunpack.c.l.s4 1983009808
      %v343 = vunpack.c.0.s8 %v342
      %v344 = vperm.slane %v336, %v343
      %v345 = vrot.slane %v340, 4
      %v346 = vsel %vm209, %v345, %v328
      %v347 = vrot.slane %v328, 4
      %v348 = vsel %vm209, %v340, %v347
      %v350 = vunpack.c.l.s4 1934713408
      %v351 = vunpack.c.0.s8 %v350
      %v352 = vperm.slane %v346, %v351
      %v354 = vunpack.c.l.s4 1934713408
      %v355 = vunpack.c.0.s8 %v354
      %v356 = vperm.slane %v348, %v355
      %v357 = vrot.slane %v344, 4
      %v358 = vsel %vm209, %v357, %v332
      %v359 = vrot.slane %v332, 4
      %v360 = vsel %vm209, %v344, %v359
      %v362 = vunpack.c.l.s4 1934713408
      %v363 = vunpack.c.0.s8 %v362
      %v364 = vperm.slane %v358, %v363
      %v366 = vunpack.c.l.s4 1934713408
      %v367 = vunpack.c.0.s8 %v366
      %v368 = vperm.slane %v360, %v367
      %v369 = vrot.slane %v352, 4
      %v370 = vsel %vm209, 0.0, %v369
      %v371 = vrot.slane %v356, 4
      %v372 = vsel %vm209, 0.0, %v371
      %v373 = vrot.slane %v364, 4
      %v374 = vsel %vm209, 0.0, %v373
      %v375 = vrot.slane %v368, 4
      %v376 = vsel %vm209, 0.0, %v375
      %v377 = vrot.slane %v191, 4
      %v378 = vsel %vm209, %v377, %v167
      %v379 = vrot.slane %v167, 4
      %v380 = vsel %vm209, %v191, %v379
      %v382 = vunpack.c.l.s4 1983009808
      %v383 = vunpack.c.0.s8 %v382
      %v384 = vperm.slane %v378, %v383
      %v386 = vunpack.c.l.s4 1983009808
      %v387 = vunpack.c.0.s8 %v386
      %v388 = vperm.slane %v380, %v387
      %v389 = vrot.slane %v203, 4
      %v390 = vsel %vm209, %v389, %v179
      %v391 = vrot.slane %v179, 4
      %v392 = vsel %vm209, %v203, %v391
      %v394 = vunpack.c.l.s4 1983009808
      %v395 = vunpack.c.0.s8 %v394
      %v396 = vperm.slane %v390, %v395
      %v398 = vunpack.c.l.s4 1983009808
      %v399 = vunpack.c.0.s8 %v398
      %v400 = vperm.slane %v392, %v399
      %v401 = vrot.slane %v396, 4
      %v402 = vsel %vm209, %v401, %v384
      %v403 = vrot.slane %v384, 4
      %v404 = vsel %vm209, %v396, %v403
      %v406 = vunpack.c.l.s4 1934713408
      %v407 = vunpack.c.0.s8 %v406
      %v408 = vperm.slane %v402, %v407
      %v410 = vunpack.c.l.s4 1934713408
      %v411 = vunpack.c.0.s8 %v410
      %v412 = vperm.slane %v404, %v411
      %v413 = vrot.slane %v400, 4
      %v414 = vsel %vm209, %v413, %v388
      %v415 = vrot.slane %v388, 4
      %v416 = vsel %vm209, %v400, %v415
      %v418 = vunpack.c.l.s4 1934713408
      %v419 = vunpack.c.0.s8 %v418
      %v420 = vperm.slane %v414, %v419
      %v422 = vunpack.c.l.s4 1934713408
      %v423 = vunpack.c.0.s8 %v422
      %v424 = vperm.slane %v416, %v423
      %v425 = vrot.slane %v408, 4
      %v426 = vsel %vm209, 0.0, %v425
      %v427 = vrot.slane %v412, 4
      %v428 = vsel %vm209, 0.0, %v427
      %v429 = vrot.slane %v420, 4
      %v430 = vsel %vm209, 0.0, %v429
      %v431 = vrot.slane %v424, 4
      %v432 = vsel %vm209, 0.0, %v431
      %433 = vxpose.xlu0.b32.start [1/16] %v240, 128
      %434 = vxpose.xlu0.b32.cont [2/16] 0.0, 128
      %435 = vxpose.xlu0.b32.cont [3/16] 0.0, 128
      %436 = vxpose.xlu0.b32.cont [4/16] 0.0, 128
      %437 = vxpose.xlu0.b32.cont [5/16] 0.0, 128
      %438 = vxpose.xlu0.b32.cont [6/16] 0.0, 128
      %439 = vxpose.xlu0.b32.cont [7/16] 0.0, 128
      %440 = vxpose.xlu0.b32.cont [8/16] 0.0, 128
      %441 = vxpose.xlu0.b32.cont [9/16] 0.0, 128
      %442 = vxpose.xlu0.b32.cont [10/16] 0.0, 128
      %443 = vxpose.xlu0.b32.cont [11/16] 0.0, 128
      %444 = vxpose.xlu0.b32.cont [12/16] 0.0, 128
      %445 = vxpose.xlu0.b32.cont [13/16] 0.0, 128
      %446 = vxpose.xlu0.b32.cont [14/16] 0.0, 128
      %447 = vxpose.xlu0.b32.cont [15/16] 0.0, 128
      %448 = vxpose.xlu0.b32.end [16/16] 0.0, 128
      %v449 = vpop.trf.xlu0
      %v450 = vpop.trf.xlu0
      %v451 = vpop.trf.xlu0
      %v452 = vpop.trf.xlu0
      %v453 = vpop.trf.xlu0
      %v454 = vpop.trf.xlu0
      %v455 = vpop.trf.xlu0
      %v456 = vpop.trf.xlu0
      %v457 = vpop.trf.xlu0
      %v458 = vpop.trf.xlu0
      %v459 = vpop.trf.xlu0
      %v460 = vpop.trf.xlu0
      %v461 = vpop.trf.xlu0
      %v462 = vpop.trf.xlu0
      %v463 = vpop.trf.xlu0
      %v464 = vpop.trf.xlu0
      %465 = vxpose.xlu0.b32.start [1/16] %v258, 128
      %466 = vxpose.xlu0.b32.cont [2/16] 0.0, 128
      %467 = vxpose.xlu0.b32.cont [3/16] 0.0, 128
      %468 = vxpose.xlu0.b32.cont [4/16] 0.0, 128
      %469 = vxpose.xlu0.b32.cont [5/16] 0.0, 128
      %470 = vxpose.xlu0.b32.cont [6/16] 0.0, 128
      %471 = vxpose.xlu0.b32.cont [7/16] 0.0, 128
      %472 = vxpose.xlu0.b32.cont [8/16] 0.0, 128
      %473 = vxpose.xlu0.b32.cont [9/16] 0.0, 128
      %474 = vxpose.xlu0.b32.cont [10/16] 0.0, 128
      %475 = vxpose.xlu0.b32.cont [11/16] 0.0, 128
      %476 = vxpose.xlu0.b32.cont [12/16] 0.0, 128
      %477 = vxpose.xlu0.b32.cont [13/16] 0.0, 128
      %478 = vxpose.xlu0.b32.cont [14/16] 0.0, 128
      %479 = vxpose.xlu0.b32.cont [15/16] 0.0, 128
      %480 = vxpose.xlu0.b32.end [16/16] 0.0, 128
      %v481 = vpop.trf.xlu0
      %v482 = vpop.trf.xlu0
      %v483 = vpop.trf.xlu0
      %v484 = vpop.trf.xlu0
      %v485 = vpop.trf.xlu0
      %v486 = vpop.trf.xlu0
      %v487 = vpop.trf.xlu0
      %v488 = vpop.trf.xlu0
      %v489 = vpop.trf.xlu0
      %v490 = vpop.trf.xlu0
      %v491 = vpop.trf.xlu0
      %v492 = vpop.trf.xlu0
      %v493 = vpop.trf.xlu0
      %v494 = vpop.trf.xlu0
      %v495 = vpop.trf.xlu0
      %v496 = vpop.trf.xlu0
      %497 = vxpose.xlu0.b32.start [1/16] %v244, 128
      %498 = vxpose.xlu0.b32.cont [2/16] 0.0, 128
      %499 = vxpose.xlu0.b32.cont [3/16] 0.0, 128
      %500 = vxpose.xlu0.b32.cont [4/16] 0.0, 128
      %501 = vxpose.xlu0.b32.cont [5/16] 0.0, 128
      %502 = vxpose.xlu0.b32.cont [6/16] 0.0, 128
      %503 = vxpose.xlu0.b32.cont [7/16] 0.0, 128
      %504 = vxpose.xlu0.b32.cont [8/16] 0.0, 128
      %505 = vxpose.xlu0.b32.cont [9/16] 0.0, 128
      %506 = vxpose.xlu0.b32.cont [10/16] 0.0, 128
      %507 = vxpose.xlu0.b32.cont [11/16] 0.0, 128
      %508 = vxpose.xlu0.b32.cont [12/16] 0.0, 128
      %509 = vxpose.xlu0.b32.cont [13/16] 0.0, 128
      %510 = vxpose.xlu0.b32.cont [14/16] 0.0, 128
      %511 = vxpose.xlu0.b32.cont [15/16] 0.0, 128
      %512 = vxpose.xlu0.b32.end [16/16] 0.0, 128
      %v513 = vpop.trf.xlu0
      %v514 = vpop.trf.xlu0
      %v515 = vpop.trf.xlu0
      %v516 = vpop.trf.xlu0
      %v517 = vpop.trf.xlu0
      %v518 = vpop.trf.xlu0
      %v519 = vpop.trf.xlu0
      %v520 = vpop.trf.xlu0
      %v521 = vpop.trf.xlu0
      %v522 = vpop.trf.xlu0
      %v523 = vpop.trf.xlu0
      %v524 = vpop.trf.xlu0
      %v525 = vpop.trf.xlu0
      %v526 = vpop.trf.xlu0
      %v527 = vpop.trf.xlu0
      %v528 = vpop.trf.xlu0
      %529 = vxpose.xlu0.b32.start [1/16] %v260, 128
      %530 = vxpose.xlu0.b32.cont [2/16] 0.0, 128
      %531 = vxpose.xlu0.b32.cont [3/16] 0.0, 128
      %532 = vxpose.xlu0.b32.cont [4/16] 0.0, 128
      %533 = vxpose.xlu0.b32.cont [5/16] 0.0, 128
      %534 = vxpose.xlu0.b32.cont [6/16] 0.0, 128
      %535 = vxpose.xlu0.b32.cont [7/16] 0.0, 128
      %536 = vxpose.xlu0.b32.cont [8/16] 0.0, 128
      %537 = vxpose.xlu0.b32.cont [9/16] 0.0, 128
      %538 = vxpose.xlu0.b32.cont [10/16] 0.0, 128
      %539 = vxpose.xlu0.b32.cont [11/16] 0.0, 128
      %540 = vxpose.xlu0.b32.cont [12/16] 0.0, 128
      %541 = vxpose.xlu0.b32.cont [13/16] 0.0, 128
      %542 = vxpose.xlu0.b32.cont [14/16] 0.0, 128
      %543 = vxpose.xlu0.b32.cont [15/16] 0.0, 128
      %544 = vxpose.xlu0.b32.end [16/16] 0.0, 128
      %v545 = vpop.trf.xlu0
      %v546 = vpop.trf.xlu0
      %v547 = vpop.trf.xlu0
      %v548 = vpop.trf.xlu0
      %v549 = vpop.trf.xlu0
      %v550 = vpop.trf.xlu0
      %v551 = vpop.trf.xlu0
      %v552 = vpop.trf.xlu0
      %v553 = vpop.trf.xlu0
      %v554 = vpop.trf.xlu0
      %v555 = vpop.trf.xlu0
      %v556 = vpop.trf.xlu0
      %v557 = vpop.trf.xlu0
      %v558 = vpop.trf.xlu0
      %v559 = vpop.trf.xlu0
      %v560 = vpop.trf.xlu0
      %561 = vxpose.xlu0.b32.start [1/16] %v252, 128
      %562 = vxpose.xlu0.b32.cont [2/16] 0.0, 128
      %563 = vxpose.xlu0.b32.cont [3/16] 0.0, 128
      %564 = vxpose.xlu0.b32.cont [4/16] 0.0, 128
      %565 = vxpose.xlu0.b32.cont [5/16] 0.0, 128
      %566 = vxpose.xlu0.b32.cont [6/16] 0.0, 128
      %567 = vxpose.xlu0.b32.cont [7/16] 0.0, 128
      %568 = vxpose.xlu0.b32.cont [8/16] 0.0, 128
      %569 = vxpose.xlu0.b32.cont [9/16] 0.0, 128
      %570 = vxpose.xlu0.b32.cont [10/16] 0.0, 128
      %571 = vxpose.xlu0.b32.cont [11/16] 0.0, 128
      %572 = vxpose.xlu0.b32.cont [12/16] 0.0, 128
      %573 = vxpose.xlu0.b32.cont [13/16] 0.0, 128
      %574 = vxpose.xlu0.b32.cont [14/16] 0.0, 128
      %575 = vxpose.xlu0.b32.cont [15/16] 0.0, 128
      %576 = vxpose.xlu0.b32.end [16/16] 0.0, 128
      %v577 = vpop.trf.xlu0
      %v578 = vpop.trf.xlu0
      %v579 = vpop.trf.xlu0
      %v580 = vpop.trf.xlu0
      %v581 = vpop.trf.xlu0
      %v582 = vpop.trf.xlu0
      %v583 = vpop.trf.xlu0
      %v584 = vpop.trf.xlu0
      %v585 = vpop.trf.xlu0
      %v586 = vpop.trf.xlu0
      %v587 = vpop.trf.xlu0
      %v588 = vpop.trf.xlu0
      %v589 = vpop.trf.xlu0
      %v590 = vpop.trf.xlu0
      %v591 = vpop.trf.xlu0
      %v592 = vpop.trf.xlu0
      %593 = vxpose.xlu0.b32.start [1/16] %v262, 128
      %594 = vxpose.xlu0.b32.cont [2/16] 0.0, 128
      %595 = vxpose.xlu0.b32.cont [3/16] 0.0, 128
      %596 = vxpose.xlu0.b32.cont [4/16] 0.0, 128
      %597 = vxpose.xlu0.b32.cont [5/16] 0.0, 128
      %598 = vxpose.xlu0.b32.cont [6/16] 0.0, 128
      %599 = vxpose.xlu0.b32.cont [7/16] 0.0, 128
      %600 = vxpose.xlu0.b32.cont [8/16] 0.0, 128
      %601 = vxpose.xlu0.b32.cont [9/16] 0.0, 128
      %602 = vxpose.xlu0.b32.cont [10/16] 0.0, 128
      %603 = vxpose.xlu0.b32.cont [11/16] 0.0, 128
      %604 = vxpose.xlu0.b32.cont [12/16] 0.0, 128
      %605 = vxpose.xlu0.b32.cont [13/16] 0.0, 128
      %606 = vxpose.xlu0.b32.cont [14/16] 0.0, 128
      %607 = vxpose.xlu0.b32.cont [15/16] 0.0, 128
      %608 = vxpose.xlu0.b32.end [16/16] 0.0, 128
      %v609 = vpop.trf.xlu0
      %v610 = vpop.trf.xlu0
      %v611 = vpop.trf.xlu0
      %v612 = vpop.trf.xlu0
      %v613 = vpop.trf.xlu0
      %v614 = vpop.trf.xlu0
      %v615 = vpop.trf.xlu0
      %v616 = vpop.trf.xlu0
      %v617 = vpop.trf.xlu0
      %v618 = vpop.trf.xlu0
      %v619 = vpop.trf.xlu0
      %v620 = vpop.trf.xlu0
      %v621 = vpop.trf.xlu0
      %v622 = vpop.trf.xlu0
      %v623 = vpop.trf.xlu0
      %v624 = vpop.trf.xlu0
      %625 = vxpose.xlu0.b32.start [1/16] %v256, 128
      %626 = vxpose.xlu0.b32.cont [2/16] 0.0, 128
      %627 = vxpose.xlu0.b32.cont [3/16] 0.0, 128
      %628 = vxpose.xlu0.b32.cont [4/16] 0.0, 128
      %629 = vxpose.xlu0.b32.cont [5/16] 0.0, 128
      %630 = vxpose.xlu0.b32.cont [6/16] 0.0, 128
      %631 = vxpose.xlu0.b32.cont [7/16] 0.0, 128
      %632 = vxpose.xlu0.b32.cont [8/16] 0.0, 128
      %633 = vxpose.xlu0.b32.cont [9/16] 0.0, 128
      %634 = vxpose.xlu0.b32.cont [10/16] 0.0, 128
      %635 = vxpose.xlu0.b32.cont [11/16] 0.0, 128
      %636 = vxpose.xlu0.b32.cont [12/16] 0.0, 128
      %637 = vxpose.xlu0.b32.cont [13/16] 0.0, 128
      %638 = vxpose.xlu0.b32.cont [14/16] 0.0, 128
      %639 = vxpose.xlu0.b32.cont [15/16] 0.0, 128
      %640 = vxpose.xlu0.b32.end [16/16] 0.0, 128
      %v641 = vpop.trf.xlu0
      %v642 = vpop.trf.xlu0
      %v643 = vpop.trf.xlu0
      %v644 = vpop.trf.xlu0
      %v645 = vpop.trf.xlu0
      %v646 = vpop.trf.xlu0
      %v647 = vpop.trf.xlu0
      %v648 = vpop.trf.xlu0
      %v649 = vpop.trf.xlu0
      %v650 = vpop.trf.xlu0
      %v651 = vpop.trf.xlu0
      %v652 = vpop.trf.xlu0
      %v653 = vpop.trf.xlu0
      %v654 = vpop.trf.xlu0
      %v655 = vpop.trf.xlu0
      %v656 = vpop.trf.xlu0
      %657 = vxpose.xlu0.b32.start [1/16] %v264, 128
      %658 = vxpose.xlu0.b32.cont [2/16] 0.0, 128
      %659 = vxpose.xlu0.b32.cont [3/16] 0.0, 128
      %660 = vxpose.xlu0.b32.cont [4/16] 0.0, 128
      %661 = vxpose.xlu0.b32.cont [5/16] 0.0, 128
      %662 = vxpose.xlu0.b32.cont [6/16] 0.0, 128
      %663 = vxpose.xlu0.b32.cont [7/16] 0.0, 128
      %664 = vxpose.xlu0.b32.cont [8/16] 0.0, 128
      %665 = vxpose.xlu0.b32.cont [9/16] 0.0, 128
      %666 = vxpose.xlu0.b32.cont [10/16] 0.0, 128
      %667 = vxpose.xlu0.b32.cont [11/16] 0.0, 128
      %668 = vxpose.xlu0.b32.cont [12/16] 0.0, 128
      %669 = vxpose.xlu0.b32.cont [13/16] 0.0, 128
      %670 = vxpose.xlu0.b32.cont [14/16] 0.0, 128
      %671 = vxpose.xlu0.b32.cont [15/16] 0.0, 128
      %672 = vxpose.xlu0.b32.end [16/16] 0.0, 128
      %v673 = vpop.trf.xlu0
      %v674 = vpop.trf.xlu0
      %v675 = vpop.trf.xlu0
      %v676 = vpop.trf.xlu0
      %v677 = vpop.trf.xlu0
      %v678 = vpop.trf.xlu0
      %v679 = vpop.trf.xlu0
      %v680 = vpop.trf.xlu0
      %v681 = vpop.trf.xlu0
      %v682 = vpop.trf.xlu0
      %v683 = vpop.trf.xlu0
      %v684 = vpop.trf.xlu0
      %v685 = vpop.trf.xlu0
      %v686 = vpop.trf.xlu0
      %v687 = vpop.trf.xlu0
      %v688 = vpop.trf.xlu0
      %689 = vxpose.xlu0.b32.start [1/16] %v296, 128
      %690 = vxpose.xlu0.b32.cont [2/16] 0.0, 128
      %691 = vxpose.xlu0.b32.cont [3/16] 0.0, 128
      %692 = vxpose.xlu0.b32.cont [4/16] 0.0, 128
      %693 = vxpose.xlu0.b32.cont [5/16] 0.0, 128
      %694 = vxpose.xlu0.b32.cont [6/16] 0.0, 128
      %695 = vxpose.xlu0.b32.cont [7/16] 0.0, 128
      %696 = vxpose.xlu0.b32.cont [8/16] 0.0, 128
      %697 = vxpose.xlu0.b32.cont [9/16] 0.0, 128
      %698 = vxpose.xlu0.b32.cont [10/16] 0.0, 128
      %699 = vxpose.xlu0.b32.cont [11/16] 0.0, 128
      %700 = vxpose.xlu0.b32.cont [12/16] 0.0, 128
      %701 = vxpose.xlu0.b32.cont [13/16] 0.0, 128
      %702 = vxpose.xlu0.b32.cont [14/16] 0.0, 128
      %703 = vxpose.xlu0.b32.cont [15/16] 0.0, 128
      %704 = vxpose.xlu0.b32.end [16/16] 0.0, 128
      %v705 = vpop.trf.xlu0
      %v706 = vpop.trf.xlu0
      %v707 = vpop.trf.xlu0
      %v708 = vpop.trf.xlu0
      %v709 = vpop.trf.xlu0
      %v710 = vpop.trf.xlu0
      %v711 = vpop.trf.xlu0
      %v712 = vpop.trf.xlu0
      %v713 = vpop.trf.xlu0
      %v714 = vpop.trf.xlu0
      %v715 = vpop.trf.xlu0
      %v716 = vpop.trf.xlu0
      %v717 = vpop.trf.xlu0
      %v718 = vpop.trf.xlu0
      %v719 = vpop.trf.xlu0
      %v720 = vpop.trf.xlu0
      %721 = vxpose.xlu0.b32.start [1/16] %v314, 128
      %722 = vxpose.xlu0.b32.cont [2/16] 0.0, 128
      %723 = vxpose.xlu0.b32.cont [3/16] 0.0, 128
      %724 = vxpose.xlu0.b32.cont [4/16] 0.0, 128
      %725 = vxpose.xlu0.b32.cont [5/16] 0.0, 128
      %726 = vxpose.xlu0.b32.cont [6/16] 0.0, 128
      %727 = vxpose.xlu0.b32.cont [7/16] 0.0, 128
      %728 = vxpose.xlu0.b32.cont [8/16] 0.0, 128
      %729 = vxpose.xlu0.b32.cont [9/16] 0.0, 128
      %730 = vxpose.xlu0.b32.cont [10/16] 0.0, 128
      %731 = vxpose.xlu0.b32.cont [11/16] 0.0, 128
      %732 = vxpose.xlu0.b32.cont [12/16] 0.0, 128
      %733 = vxpose.xlu0.b32.cont [13/16] 0.0, 128
      %734 = vxpose.xlu0.b32.cont [14/16] 0.0, 128
      %735 = vxpose.xlu0.b32.cont [15/16] 0.0, 128
      %736 = vxpose.xlu0.b32.end [16/16] 0.0, 128
      %v737 = vpop.trf.xlu0
      %v738 = vpop.trf.xlu0
      %v739 = vpop.trf.xlu0
      %v740 = vpop.trf.xlu0
      %v741 = vpop.trf.xlu0
      %v742 = vpop.trf.xlu0
      %v743 = vpop.trf.xlu0
      %v744 = vpop.trf.xlu0
      %v745 = vpop.trf.xlu0
      %v746 = vpop.trf.xlu0
      %v747 = vpop.trf.xlu0
      %v748 = vpop.trf.xlu0
      %v749 = vpop.trf.xlu0
      %v750 = vpop.trf.xlu0
      %v751 = vpop.trf.xlu0
      %v752 = vpop.trf.xlu0
      %753 = vxpose.xlu0.b32.start [1/16] %v300, 128
      %754 = vxpose.xlu0.b32.cont [2/16] 0.0, 128
      %755 = vxpose.xlu0.b32.cont [3/16] 0.0, 128
      %756 = vxpose.xlu0.b32.cont [4/16] 0.0, 128
      %757 = vxpose.xlu0.b32.cont [5/16] 0.0, 128
      %758 = vxpose.xlu0.b32.cont [6/16] 0.0, 128
      %759 = vxpose.xlu0.b32.cont [7/16] 0.0, 128
      %760 = vxpose.xlu0.b32.cont [8/16] 0.0, 128
      %761 = vxpose.xlu0.b32.cont [9/16] 0.0, 128
      %762 = vxpose.xlu0.b32.cont [10/16] 0.0, 128
      %763 = vxpose.xlu0.b32.cont [11/16] 0.0, 128
      %764 = vxpose.xlu0.b32.cont [12/16] 0.0, 128
      %765 = vxpose.xlu0.b32.cont [13/16] 0.0, 128
      %766 = vxpose.xlu0.b32.cont [14/16] 0.0, 128
      %767 = vxpose.xlu0.b32.cont [15/16] 0.0, 128
      %768 = vxpose.xlu0.b32.end [16/16] 0.0, 128
      %v769 = vpop.trf.xlu0
      %v770 = vpop.trf.xlu0
      %v771 = vpop.trf.xlu0
      %v772 = vpop.trf.xlu0
      %v773 = vpop.trf.xlu0
      %v774 = vpop.trf.xlu0
      %v775 = vpop.trf.xlu0
      %v776 = vpop.trf.xlu0
      %v777 = vpop.trf.xlu0
      %v778 = vpop.trf.xlu0
      %v779 = vpop.trf.xlu0
      %v780 = vpop.trf.xlu0
      %v781 = vpop.trf.xlu0
      %v782 = vpop.trf.xlu0
      %v783 = vpop.trf.xlu0
      %v784 = vpop.trf.xlu0
      %785 = vxpose.xlu0.b32.start [1/16] %v316, 128
      %786 = vxpose.xlu0.b32.cont [2/16] 0.0, 128
      %787 = vxpose.xlu0.b32.cont [3/16] 0.0, 128
      %788 = vxpose.xlu0.b32.cont [4/16] 0.0, 128
      %789 = vxpose.xlu0.b32.cont [5/16] 0.0, 128
      %790 = vxpose.xlu0.b32.cont [6/16] 0.0, 128
      %791 = vxpose.xlu0.b32.cont [7/16] 0.0, 128
      %792 = vxpose.xlu0.b32.cont [8/16] 0.0, 128
      %793 = vxpose.xlu0.b32.cont [9/16] 0.0, 128
      %794 = vxpose.xlu0.b32.cont [10/16] 0.0, 128
      %795 = vxpose.xlu0.b32.cont [11/16] 0.0, 128
      %796 = vxpose.xlu0.b32.cont [12/16] 0.0, 128
      %797 = vxpose.xlu0.b32.cont [13/16] 0.0, 128
      %798 = vxpose.xlu0.b32.cont [14/16] 0.0, 128
      %799 = vxpose.xlu0.b32.cont [15/16] 0.0, 128
      %800 = vxpose.xlu0.b32.end [16/16] 0.0, 128
      %v801 = vpop.trf.xlu0
      %v802 = vpop.trf.xlu0
      %v803 = vpop.trf.xlu0
      %v804 = vpop.trf.xlu0
      %v805 = vpop.trf.xlu0
      %v806 = vpop.trf.xlu0
      %v807 = vpop.trf.xlu0
      %v808 = vpop.trf.xlu0
      %v809 = vpop.trf.xlu0
      %v810 = vpop.trf.xlu0
      %v811 = vpop.trf.xlu0
      %v812 = vpop.trf.xlu0
      %v813 = vpop.trf.xlu0
      %v814 = vpop.trf.xlu0
      %v815 = vpop.trf.xlu0
      %v816 = vpop.trf.xlu0
      %817 = vxpose.xlu0.b32.start [1/16] %v308, 128
      %818 = vxpose.xlu0.b32.cont [2/16] 0.0, 128
      %819 = vxpose.xlu0.b32.cont [3/16] 0.0, 128
      %820 = vxpose.xlu0.b32.cont [4/16] 0.0, 128
      %821 = vxpose.xlu0.b32.cont [5/16] 0.0, 128
      %822 = vxpose.xlu0.b32.cont [6/16] 0.0, 128
      %823 = vxpose.xlu0.b32.cont [7/16] 0.0, 128
      %824 = vxpose.xlu0.b32.cont [8/16] 0.0, 128
      %825 = vxpose.xlu0.b32.cont [9/16] 0.0, 128
      %826 = vxpose.xlu0.b32.cont [10/16] 0.0, 128
      %827 = vxpose.xlu0.b32.cont [11/16] 0.0, 128
      %828 = vxpose.xlu0.b32.cont [12/16] 0.0, 128
      %829 = vxpose.xlu0.b32.cont [13/16] 0.0, 128
      %830 = vxpose.xlu0.b32.cont [14/16] 0.0, 128
      %831 = vxpose.xlu0.b32.cont [15/16] 0.0, 128
      %832 = vxpose.xlu0.b32.end [16/16] 0.0, 128
      %v833 = vpop.trf.xlu0
      %v834 = vpop.trf.xlu0
      %v835 = vpop.trf.xlu0
      %v836 = vpop.trf.xlu0
      %v837 = vpop.trf.xlu0
      %v838 = vpop.trf.xlu0
      %v839 = vpop.trf.xlu0
      %v840 = vpop.trf.xlu0
      %v841 = vpop.trf.xlu0
      %v842 = vpop.trf.xlu0
      %v843 = vpop.trf.xlu0
      %v844 = vpop.trf.xlu0
      %v845 = vpop.trf.xlu0
      %v846 = vpop.trf.xlu0
      %v847 = vpop.trf.xlu0
      %v848 = vpop.trf.xlu0
      %849 = vxpose.xlu0.b32.start [1/16] %v318, 128
      %850 = vxpose.xlu0.b32.cont [2/16] 0.0, 128
      %851 = vxpose.xlu0.b32.cont [3/16] 0.0, 128
      %852 = vxpose.xlu0.b32.cont [4/16] 0.0, 128
      %853 = vxpose.xlu0.b32.cont [5/16] 0.0, 128
      %854 = vxpose.xlu0.b32.cont [6/16] 0.0, 128
      %855 = vxpose.xlu0.b32.cont [7/16] 0.0, 128
      %856 = vxpose.xlu0.b32.cont [8/16] 0.0, 128
      %857 = vxpose.xlu0.b32.cont [9/16] 0.0, 128
      %858 = vxpose.xlu0.b32.cont [10/16] 0.0, 128
      %859 = vxpose.xlu0.b32.cont [11/16] 0.0, 128
      %860 = vxpose.xlu0.b32.cont [12/16] 0.0, 128
      %861 = vxpose.xlu0.b32.cont [13/16] 0.0, 128
      %862 = vxpose.xlu0.b32.cont [14/16] 0.0, 128
      %863 = vxpose.xlu0.b32.cont [15/16] 0.0, 128
      %864 = vxpose.xlu0.b32.end [16/16] 0.0, 128
      %v865 = vpop.trf.xlu0
      %v866 = vpop.trf.xlu0
      %v867 = vpop.trf.xlu0
      %v868 = vpop.trf.xlu0
      %v869 = vpop.trf.xlu0
      %v870 = vpop.trf.xlu0
      %v871 = vpop.trf.xlu0
      %v872 = vpop.trf.xlu0
      %v873 = vpop.trf.xlu0
      %v874 = vpop.trf.xlu0
      %v875 = vpop.trf.xlu0
      %v876 = vpop.trf.xlu0
      %v877 = vpop.trf.xlu0
      %v878 = vpop.trf.xlu0
      %v879 = vpop.trf.xlu0
      %v880 = vpop.trf.xlu0
      %881 = vxpose.xlu0.b32.start [1/16] %v312, 128
      %882 = vxpose.xlu0.b32.cont [2/16] 0.0, 128
      %883 = vxpose.xlu0.b32.cont [3/16] 0.0, 128
      %884 = vxpose.xlu0.b32.cont [4/16] 0.0, 128
      %885 = vxpose.xlu0.b32.cont [5/16] 0.0, 128
      %886 = vxpose.xlu0.b32.cont [6/16] 0.0, 128
      %887 = vxpose.xlu0.b32.cont [7/16] 0.0, 128
      %888 = vxpose.xlu0.b32.cont [8/16] 0.0, 128
      %889 = vxpose.xlu0.b32.cont [9/16] 0.0, 128
      %890 = vxpose.xlu0.b32.cont [10/16] 0.0, 128
      %891 = vxpose.xlu0.b32.cont [11/16] 0.0, 128
      %892 = vxpose.xlu0.b32.cont [12/16] 0.0, 128
      %893 = vxpose.xlu0.b32.cont [13/16] 0.0, 128
      %894 = vxpose.xlu0.b32.cont [14/16] 0.0, 128
      %895 = vxpose.xlu0.b32.cont [15/16] 0.0, 128
      %896 = vxpose.xlu0.b32.end [16/16] 0.0, 128
      %v897 = vpop.trf.xlu0
      %v898 = vpop.trf.xlu0
      %v899 = vpop.trf.xlu0
      %v900 = vpop.trf.xlu0
      %v901 = vpop.trf.xlu0
      %v902 = vpop.trf.xlu0
      %v903 = vpop.trf.xlu0
      %v904 = vpop.trf.xlu0
      %v905 = vpop.trf.xlu0
      %v906 = vpop.trf.xlu0
      %v907 = vpop.trf.xlu0
      %v908 = vpop.trf.xlu0
      %v909 = vpop.trf.xlu0
      %v910 = vpop.trf.xlu0
      %v911 = vpop.trf.xlu0
      %v912 = vpop.trf.xlu0
      %913 = vxpose.xlu0.b32.start [1/16] %v320, 128
      %914 = vxpose.xlu0.b32.cont [2/16] 0.0, 128
      %915 = vxpose.xlu0.b32.cont [3/16] 0.0, 128
      %916 = vxpose.xlu0.b32.cont [4/16] 0.0, 128
      %917 = vxpose.xlu0.b32.cont [5/16] 0.0, 128
      %918 = vxpose.xlu0.b32.cont [6/16] 0.0, 128
      %919 = vxpose.xlu0.b32.cont [7/16] 0.0, 128
      %920 = vxpose.xlu0.b32.cont [8/16] 0.0, 128
      %921 = vxpose.xlu0.b32.cont [9/16] 0.0, 128
      %922 = vxpose.xlu0.b32.cont [10/16] 0.0, 128
      %923 = vxpose.xlu0.b32.cont [11/16] 0.0, 128
      %924 = vxpose.xlu0.b32.cont [12/16] 0.0, 128
      %925 = vxpose.xlu0.b32.cont [13/16] 0.0, 128
      %926 = vxpose.xlu0.b32.cont [14/16] 0.0, 128
      %927 = vxpose.xlu0.b32.cont [15/16] 0.0, 128
      %928 = vxpose.xlu0.b32.end [16/16] 0.0, 128
      %v929 = vpop.trf.xlu0
      %v930 = vpop.trf.xlu0
      %v931 = vpop.trf.xlu0
      %v932 = vpop.trf.xlu0
      %v933 = vpop.trf.xlu0
      %v934 = vpop.trf.xlu0
      %v935 = vpop.trf.xlu0
      %v936 = vpop.trf.xlu0
      %v937 = vpop.trf.xlu0
      %v938 = vpop.trf.xlu0
      %v939 = vpop.trf.xlu0
      %v940 = vpop.trf.xlu0
      %v941 = vpop.trf.xlu0
      %v942 = vpop.trf.xlu0
      %v943 = vpop.trf.xlu0
      %v944 = vpop.trf.xlu0
      %945 = vxpose.xlu0.b32.start [1/16] %v352, 128
      %946 = vxpose.xlu0.b32.cont [2/16] 0.0, 128
      %947 = vxpose.xlu0.b32.cont [3/16] 0.0, 128
      %948 = vxpose.xlu0.b32.cont [4/16] 0.0, 128
      %949 = vxpose.xlu0.b32.cont [5/16] 0.0, 128
      %950 = vxpose.xlu0.b32.cont [6/16] 0.0, 128
      %951 = vxpose.xlu0.b32.cont [7/16] 0.0, 128
      %952 = vxpose.xlu0.b32.cont [8/16] 0.0, 128
      %953 = vxpose.xlu0.b32.cont [9/16] 0.0, 128
      %954 = vxpose.xlu0.b32.cont [10/16] 0.0, 128
      %955 = vxpose.xlu0.b32.cont [11/16] 0.0, 128
      %956 = vxpose.xlu0.b32.cont [12/16] 0.0, 128
      %957 = vxpose.xlu0.b32.cont [13/16] 0.0, 128
      %958 = vxpose.xlu0.b32.cont [14/16] 0.0, 128
      %959 = vxpose.xlu0.b32.cont [15/16] 0.0, 128
      %960 = vxpose.xlu0.b32.end [16/16] 0.0, 128
      %v961 = vpop.trf.xlu0
      %v962 = vpop.trf.xlu0
      %v963 = vpop.trf.xlu0
      %v964 = vpop.trf.xlu0
      %v965 = vpop.trf.xlu0
      %v966 = vpop.trf.xlu0
      %v967 = vpop.trf.xlu0
      %v968 = vpop.trf.xlu0
      %v969 = vpop.trf.xlu0
      %v970 = vpop.trf.xlu0
      %v971 = vpop.trf.xlu0
      %v972 = vpop.trf.xlu0
      %v973 = vpop.trf.xlu0
      %v974 = vpop.trf.xlu0
      %v975 = vpop.trf.xlu0
      %v976 = vpop.trf.xlu0
      %977 = vxpose.xlu0.b32.start [1/16] %v370, 128
      %978 = vxpose.xlu0.b32.cont [2/16] 0.0, 128
      %979 = vxpose.xlu0.b32.cont [3/16] 0.0, 128
      %980 = vxpose.xlu0.b32.cont [4/16] 0.0, 128
      %981 = vxpose.xlu0.b32.cont [5/16] 0.0, 128
      %982 = vxpose.xlu0.b32.cont [6/16] 0.0, 128
      %983 = vxpose.xlu0.b32.cont [7/16] 0.0, 128
      %984 = vxpose.xlu0.b32.cont [8/16] 0.0, 128
      %985 = vxpose.xlu0.b32.cont [9/16] 0.0, 128
      %986 = vxpose.xlu0.b32.cont [10/16] 0.0, 128
      %987 = vxpose.xlu0.b32.cont [11/16] 0.0, 128
      %988 = vxpose.xlu0.b32.cont [12/16] 0.0, 128
      %989 = vxpose.xlu0.b32.cont [13/16] 0.0, 128
      %990 = vxpose.xlu0.b32.cont [14/16] 0.0, 128
      %991 = vxpose.xlu0.b32.cont [15/16] 0.0, 128
      %992 = vxpose.xlu0.b32.end [16/16] 0.0, 128
      %v993 = vpop.trf.xlu0
      %v994 = vpop.trf.xlu0
      %v995 = vpop.trf.xlu0
      %v996 = vpop.trf.xlu0
      %v997 = vpop.trf.xlu0
      %v998 = vpop.trf.xlu0
      %v999 = vpop.trf.xlu0
      %v1000 = vpop.trf.xlu0
      %v1001 = vpop.trf.xlu0
      %v1002 = vpop.trf.xlu0
      %v1003 = vpop.trf.xlu0
      %v1004 = vpop.trf.xlu0
      %v1005 = vpop.trf.xlu0
      %v1006 = vpop.trf.xlu0
      %v1007 = vpop.trf.xlu0
      %v1008 = vpop.trf.xlu0
      %1009 = vxpose.xlu0.b32.start [1/16] %v356, 128
      %1010 = vxpose.xlu0.b32.cont [2/16] 0.0, 128
      %1011 = vxpose.xlu0.b32.cont [3/16] 0.0, 128
      %1012 = vxpose.xlu0.b32.cont [4/16] 0.0, 128
      %1013 = vxpose.xlu0.b32.cont [5/16] 0.0, 128
      %1014 = vxpose.xlu0.b32.cont [6/16] 0.0, 128
      %1015 = vxpose.xlu0.b32.cont [7/16] 0.0, 128
      %1016 = vxpose.xlu0.b32.cont [8/16] 0.0, 128
      %1017 = vxpose.xlu0.b32.cont [9/16] 0.0, 128
      %1018 = vxpose.xlu0.b32.cont [10/16] 0.0, 128
      %1019 = vxpose.xlu0.b32.cont [11/16] 0.0, 128
      %1020 = vxpose.xlu0.b32.cont [12/16] 0.0, 128
      %1021 = vxpose.xlu0.b32.cont [13/16] 0.0, 128
      %1022 = vxpose.xlu0.b32.cont [14/16] 0.0, 128
      %1023 = vxpose.xlu0.b32.cont [15/16] 0.0, 128
      %1024 = vxpose.xlu0.b32.end [16/16] 0.0, 128
      %v1025 = vpop.trf.xlu0
      %v1026 = vpop.trf.xlu0
      %v1027 = vpop.trf.xlu0
      %v1028 = vpop.trf.xlu0
      %v1029 = vpop.trf.xlu0
      %v1030 = vpop.trf.xlu0
      %v1031 = vpop.trf.xlu0
      %v1032 = vpop.trf.xlu0
      %v1033 = vpop.trf.xlu0
      %v1034 = vpop.trf.xlu0
      %v1035 = vpop.trf.xlu0
      %v1036 = vpop.trf.xlu0
      %v1037 = vpop.trf.xlu0
      %v1038 = vpop.trf.xlu0
      %v1039 = vpop.trf.xlu0
      %v1040 = vpop.trf.xlu0
      %1041 = vxpose.xlu0.b32.start [1/16] %v372, 128
      %1042 = vxpose.xlu0.b32.cont [2/16] 0.0, 128
      %1043 = vxpose.xlu0.b32.cont [3/16] 0.0, 128
      %1044 = vxpose.xlu0.b32.cont [4/16] 0.0, 128
      %1045 = vxpose.xlu0.b32.cont [5/16] 0.0, 128
      %1046 = vxpose.xlu0.b32.cont [6/16] 0.0, 128
      %1047 = vxpose.xlu0.b32.cont [7/16] 0.0, 128
      %1048 = vxpose.xlu0.b32.cont [8/16] 0.0, 128
      %1049 = vxpose.xlu0.b32.cont [9/16] 0.0, 128
      %1050 = vxpose.xlu0.b32.cont [10/16] 0.0, 128
      %1051 = vxpose.xlu0.b32.cont [11/16] 0.0, 128
      %1052 = vxpose.xlu0.b32.cont [12/16] 0.0, 128
      %1053 = vxpose.xlu0.b32.cont [13/16] 0.0, 128
      %1054 = vxpose.xlu0.b32.cont [14/16] 0.0, 128
      %1055 = vxpose.xlu0.b32.cont [15/16] 0.0, 128
      %1056 = vxpose.xlu0.b32.end [16/16] 0.0, 128
      %v1057 = vpop.trf.xlu0
      %v1058 = vpop.trf.xlu0
      %v1059 = vpop.trf.xlu0
      %v1060 = vpop.trf.xlu0
      %v1061 = vpop.trf.xlu0
      %v1062 = vpop.trf.xlu0
      %v1063 = vpop.trf.xlu0
      %v1064 = vpop.trf.xlu0
      %v1065 = vpop.trf.xlu0
      %v1066 = vpop.trf.xlu0
      %v1067 = vpop.trf.xlu0
      %v1068 = vpop.trf.xlu0
      %v1069 = vpop.trf.xlu0
      %v1070 = vpop.trf.xlu0
      %v1071 = vpop.trf.xlu0
      %v1072 = vpop.trf.xlu0
      %1073 = vxpose.xlu0.b32.start [1/16] %v364, 128
      %1074 = vxpose.xlu0.b32.cont [2/16] 0.0, 128
      %1075 = vxpose.xlu0.b32.cont [3/16] 0.0, 128
      %1076 = vxpose.xlu0.b32.cont [4/16] 0.0, 128
      %1077 = vxpose.xlu0.b32.cont [5/16] 0.0, 128
      %1078 = vxpose.xlu0.b32.cont [6/16] 0.0, 128
      %1079 = vxpose.xlu0.b32.cont [7/16] 0.0, 128
      %1080 = vxpose.xlu0.b32.cont [8/16] 0.0, 128
      %1081 = vxpose.xlu0.b32.cont [9/16] 0.0, 128
      %1082 = vxpose.xlu0.b32.cont [10/16] 0.0, 128
      %1083 = vxpose.xlu0.b32.cont [11/16] 0.0, 128
      %1084 = vxpose.xlu0.b32.cont [12/16] 0.0, 128
      %1085 = vxpose.xlu0.b32.cont [13/16] 0.0, 128
      %1086 = vxpose.xlu0.b32.cont [14/16] 0.0, 128
      %1087 = vxpose.xlu0.b32.cont [15/16] 0.0, 128
      %1088 = vxpose.xlu0.b32.end [16/16] 0.0, 128
      %v1089 = vpop.trf.xlu0
      %v1090 = vpop.trf.xlu0
      %v1091 = vpop.trf.xlu0
      %v1092 = vpop.trf.xlu0
      %v1093 = vpop.trf.xlu0
      %v1094 = vpop.trf.xlu0
      %v1095 = vpop.trf.xlu0
      %v1096 = vpop.trf.xlu0
      %v1097 = vpop.trf.xlu0
      %v1098 = vpop.trf.xlu0
      %v1099 = vpop.trf.xlu0
      %v1100 = vpop.trf.xlu0
      %v1101 = vpop.trf.xlu0
      %v1102 = vpop.trf.xlu0
      %v1103 = vpop.trf.xlu0
      %v1104 = vpop.trf.xlu0
      %1105 = vxpose.xlu0.b32.start [1/16] %v374, 128
      %1106 = vxpose.xlu0.b32.cont [2/16] 0.0, 128
      %1107 = vxpose.xlu0.b32.cont [3/16] 0.0, 128
      %1108 = vxpose.xlu0.b32.cont [4/16] 0.0, 128
      %1109 = vxpose.xlu0.b32.cont [5/16] 0.0, 128
      %1110 = vxpose.xlu0.b32.cont [6/16] 0.0, 128
      %1111 = vxpose.xlu0.b32.cont [7/16] 0.0, 128
      %1112 = vxpose.xlu0.b32.cont [8/16] 0.0, 128
      %1113 = vxpose.xlu0.b32.cont [9/16] 0.0, 128
      %1114 = vxpose.xlu0.b32.cont [10/16] 0.0, 128
      %1115 = vxpose.xlu0.b32.cont [11/16] 0.0, 128
      %1116 = vxpose.xlu0.b32.cont [12/16] 0.0, 128
      %1117 = vxpose.xlu0.b32.cont [13/16] 0.0, 128
      %1118 = vxpose.xlu0.b32.cont [14/16] 0.0, 128
      %1119 = vxpose.xlu0.b32.cont [15/16] 0.0, 128
      %1120 = vxpose.xlu0.b32.end [16/16] 0.0, 128
      %v1121 = vpop.trf.xlu0
      %v1122 = vpop.trf.xlu0
      %v1123 = vpop.trf.xlu0
      %v1124 = vpop.trf.xlu0
      %v1125 = vpop.trf.xlu0
      %v1126 = vpop.trf.xlu0
      %v1127 = vpop.trf.xlu0
      %v1128 = vpop.trf.xlu0
      %v1129 = vpop.trf.xlu0
      %v1130 = vpop.trf.xlu0
      %v1131 = vpop.trf.xlu0
      %v1132 = vpop.trf.xlu0
      %v1133 = vpop.trf.xlu0
      %v1134 = vpop.trf.xlu0
      %v1135 = vpop.trf.xlu0
      %v1136 = vpop.trf.xlu0
      %1137 = vxpose.xlu0.b32.start [1/16] %v368, 128
      %1138 = vxpose.xlu0.b32.cont [2/16] 0.0, 128
      %1139 = vxpose.xlu0.b32.cont [3/16] 0.0, 128
      %1140 = vxpose.xlu0.b32.cont [4/16] 0.0, 128
      %1141 = vxpose.xlu0.b32.cont [5/16] 0.0, 128
      %1142 = vxpose.xlu0.b32.cont [6/16] 0.0, 128
      %1143 = vxpose.xlu0.b32.cont [7/16] 0.0, 128
      %1144 = vxpose.xlu0.b32.cont [8/16] 0.0, 128
      %1145 = vxpose.xlu0.b32.cont [9/16] 0.0, 128
      %1146 = vxpose.xlu0.b32.cont [10/16] 0.0, 128
      %1147 = vxpose.xlu0.b32.cont [11/16] 0.0, 128
      %1148 = vxpose.xlu0.b32.cont [12/16] 0.0, 128
      %1149 = vxpose.xlu0.b32.cont [13/16] 0.0, 128
      %1150 = vxpose.xlu0.b32.cont [14/16] 0.0, 128
      %1151 = vxpose.xlu0.b32.cont [15/16] 0.0, 128
      %1152 = vxpose.xlu0.b32.end [16/16] 0.0, 128
      %v1153 = vpop.trf.xlu0
      %v1154 = vpop.trf.xlu0
      %v1155 = vpop.trf.xlu0
      %v1156 = vpop.trf.xlu0
      %v1157 = vpop.trf.xlu0
      %v1158 = vpop.trf.xlu0
      %v1159 = vpop.trf.xlu0
      %v1160 = vpop.trf.xlu0
      %v1161 = vpop.trf.xlu0
      %v1162 = vpop.trf.xlu0
      %v1163 = vpop.trf.xlu0
      %v1164 = vpop.trf.xlu0
      %v1165 = vpop.trf.xlu0
      %v1166 = vpop.trf.xlu0
      %v1167 = vpop.trf.xlu0
      %v1168 = vpop.trf.xlu0
      %1169 = vxpose.xlu0.b32.start [1/16] %v376, 128
      %1170 = vxpose.xlu0.b32.cont [2/16] 0.0, 128
      %1171 = vxpose.xlu0.b32.cont [3/16] 0.0, 128
      %1172 = vxpose.xlu0.b32.cont [4/16] 0.0, 128
      %1173 = vxpose.xlu0.b32.cont [5/16] 0.0, 128
      %1174 = vxpose.xlu0.b32.cont [6/16] 0.0, 128
      %1175 = vxpose.xlu0.b32.cont [7/16] 0.0, 128
      %1176 = vxpose.xlu0.b32.cont [8/16] 0.0, 128
      %1177 = vxpose.xlu0.b32.cont [9/16] 0.0, 128
      %1178 = vxpose.xlu0.b32.cont [10/16] 0.0, 128
      %1179 = vxpose.xlu0.b32.cont [11/16] 0.0, 128
      %1180 = vxpose.xlu0.b32.cont [12/16] 0.0, 128
      %1181 = vxpose.xlu0.b32.cont [13/16] 0.0, 128
      %1182 = vxpose.xlu0.b32.cont [14/16] 0.0, 128
      %1183 = vxpose.xlu0.b32.cont [15/16] 0.0, 128
      %1184 = vxpose.xlu0.b32.end [16/16] 0.0, 128
      %v1185 = vpop.trf.xlu0
      %v1186 = vpop.trf.xlu0
      %v1187 = vpop.trf.xlu0
      %v1188 = vpop.trf.xlu0
      %v1189 = vpop.trf.xlu0
      %v1190 = vpop.trf.xlu0
      %v1191 = vpop.trf.xlu0
      %v1192 = vpop.trf.xlu0
      %v1193 = vpop.trf.xlu0
      %v1194 = vpop.trf.xlu0
      %v1195 = vpop.trf.xlu0
      %v1196 = vpop.trf.xlu0
      %v1197 = vpop.trf.xlu0
      %v1198 = vpop.trf.xlu0
      %v1199 = vpop.trf.xlu0
      %v1200 = vpop.trf.xlu0
      %1201 = vxpose.xlu0.b32.start [1/16] %v408, 128
      %1202 = vxpose.xlu0.b32.cont [2/16] 0.0, 128
      %1203 = vxpose.xlu0.b32.cont [3/16] 0.0, 128
      %1204 = vxpose.xlu0.b32.cont [4/16] 0.0, 128
      %1205 = vxpose.xlu0.b32.cont [5/16] 0.0, 128
      %1206 = vxpose.xlu0.b32.cont [6/16] 0.0, 128
      %1207 = vxpose.xlu0.b32.cont [7/16] 0.0, 128
      %1208 = vxpose.xlu0.b32.cont [8/16] 0.0, 128
      %1209 = vxpose.xlu0.b32.cont [9/16] 0.0, 128
      %1210 = vxpose.xlu0.b32.cont [10/16] 0.0, 128
      %1211 = vxpose.xlu0.b32.cont [11/16] 0.0, 128
      %1212 = vxpose.xlu0.b32.cont [12/16] 0.0, 128
      %1213 = vxpose.xlu0.b32.cont [13/16] 0.0, 128
      %1214 = vxpose.xlu0.b32.cont [14/16] 0.0, 128
      %1215 = vxpose.xlu0.b32.cont [15/16] 0.0, 128
      %1216 = vxpose.xlu0.b32.end [16/16] 0.0, 128
      %v1217 = vpop.trf.xlu0
      %v1218 = vpop.trf.xlu0
      %v1219 = vpop.trf.xlu0
      %v1220 = vpop.trf.xlu0
      %v1221 = vpop.trf.xlu0
      %v1222 = vpop.trf.xlu0
      %v1223 = vpop.trf.xlu0
      %v1224 = vpop.trf.xlu0
      %v1225 = vpop.trf.xlu0
      %v1226 = vpop.trf.xlu0
      %v1227 = vpop.trf.xlu0
      %v1228 = vpop.trf.xlu0
      %v1229 = vpop.trf.xlu0
      %v1230 = vpop.trf.xlu0
      %v1231 = vpop.trf.xlu0
      %v1232 = vpop.trf.xlu0
      %1233 = vxpose.xlu0.b32.start [1/16] %v426, 128
      %1234 = vxpose.xlu0.b32.cont [2/16] 0.0, 128
      %1235 = vxpose.xlu0.b32.cont [3/16] 0.0, 128
      %1236 = vxpose.xlu0.b32.cont [4/16] 0.0, 128
      %1237 = vxpose.xlu0.b32.cont [5/16] 0.0, 128
      %1238 = vxpose.xlu0.b32.cont [6/16] 0.0, 128
      %1239 = vxpose.xlu0.b32.cont [7/16] 0.0, 128
      %1240 = vxpose.xlu0.b32.cont [8/16] 0.0, 128
      %1241 = vxpose.xlu0.b32.cont [9/16] 0.0, 128
      %1242 = vxpose.xlu0.b32.cont [10/16] 0.0, 128
      %1243 = vxpose.xlu0.b32.cont [11/16] 0.0, 128
      %1244 = vxpose.xlu0.b32.cont [12/16] 0.0, 128
      %1245 = vxpose.xlu0.b32.cont [13/16] 0.0, 128
      %1246 = vxpose.xlu0.b32.cont [14/16] 0.0, 128
      %1247 = vxpose.xlu0.b32.cont [15/16] 0.0, 128
      %1248 = vxpose.xlu0.b32.end [16/16] 0.0, 128
      %v1249 = vpop.trf.xlu0
      %v1250 = vpop.trf.xlu0
      %v1251 = vpop.trf.xlu0
      %v1252 = vpop.trf.xlu0
      %v1253 = vpop.trf.xlu0
      %v1254 = vpop.trf.xlu0
      %v1255 = vpop.trf.xlu0
      %v1256 = vpop.trf.xlu0
      %v1257 = vpop.trf.xlu0
      %v1258 = vpop.trf.xlu0
      %v1259 = vpop.trf.xlu0
      %v1260 = vpop.trf.xlu0
      %v1261 = vpop.trf.xlu0
      %v1262 = vpop.trf.xlu0
      %v1263 = vpop.trf.xlu0
      %v1264 = vpop.trf.xlu0
      %1265 = vxpose.xlu0.b32.start [1/16] %v412, 128
      %1266 = vxpose.xlu0.b32.cont [2/16] 0.0, 128
      %1267 = vxpose.xlu0.b32.cont [3/16] 0.0, 128
      %1268 = vxpose.xlu0.b32.cont [4/16] 0.0, 128
      %1269 = vxpose.xlu0.b32.cont [5/16] 0.0, 128
      %1270 = vxpose.xlu0.b32.cont [6/16] 0.0, 128
      %1271 = vxpose.xlu0.b32.cont [7/16] 0.0, 128
      %1272 = vxpose.xlu0.b32.cont [8/16] 0.0, 128
      %1273 = vxpose.xlu0.b32.cont [9/16] 0.0, 128
      %1274 = vxpose.xlu0.b32.cont [10/16] 0.0, 128
      %1275 = vxpose.xlu0.b32.cont [11/16] 0.0, 128
      %1276 = vxpose.xlu0.b32.cont [12/16] 0.0, 128
      %1277 = vxpose.xlu0.b32.cont [13/16] 0.0, 128
      %1278 = vxpose.xlu0.b32.cont [14/16] 0.0, 128
      %1279 = vxpose.xlu0.b32.cont [15/16] 0.0, 128
      %1280 = vxpose.xlu0.b32.end [16/16] 0.0, 128
      %v1281 = vpop.trf.xlu0
      %v1282 = vpop.trf.xlu0
      %v1283 = vpop.trf.xlu0
      %v1284 = vpop.trf.xlu0
      %v1285 = vpop.trf.xlu0
      %v1286 = vpop.trf.xlu0
      %v1287 = vpop.trf.xlu0
      %v1288 = vpop.trf.xlu0
      %v1289 = vpop.trf.xlu0
      %v1290 = vpop.trf.xlu0
      %v1291 = vpop.trf.xlu0
      %v1292 = vpop.trf.xlu0
      %v1293 = vpop.trf.xlu0
      %v1294 = vpop.trf.xlu0
      %v1295 = vpop.trf.xlu0
      %v1296 = vpop.trf.xlu0
      %1297 = vxpose.xlu0.b32.start [1/16] %v428, 128
      %1298 = vxpose.xlu0.b32.cont [2/16] 0.0, 128
      %1299 = vxpose.xlu0.b32.cont [3/16] 0.0, 128
      %1300 = vxpose.xlu0.b32.cont [4/16] 0.0, 128
      %1301 = vxpose.xlu0.b32.cont [5/16] 0.0, 128
      %1302 = vxpose.xlu0.b32.cont [6/16] 0.0, 128
      %1303 = vxpose.xlu0.b32.cont [7/16] 0.0, 128
      %1304 = vxpose.xlu0.b32.cont [8/16] 0.0, 128
      %1305 = vxpose.xlu0.b32.cont [9/16] 0.0, 128
      %1306 = vxpose.xlu0.b32.cont [10/16] 0.0, 128
      %1307 = vxpose.xlu0.b32.cont [11/16] 0.0, 128
      %1308 = vxpose.xlu0.b32.cont [12/16] 0.0, 128
      %1309 = vxpose.xlu0.b32.cont [13/16] 0.0, 128
      %1310 = vxpose.xlu0.b32.cont [14/16] 0.0, 128
      %1311 = vxpose.xlu0.b32.cont [15/16] 0.0, 128
      %1312 = vxpose.xlu0.b32.end [16/16] 0.0, 128
      %v1313 = vpop.trf.xlu0
      %v1314 = vpop.trf.xlu0
      %v1315 = vpop.trf.xlu0
      %v1316 = vpop.trf.xlu0
      %v1317 = vpop.trf.xlu0
      %v1318 = vpop.trf.xlu0
      %v1319 = vpop.trf.xlu0
      %v1320 = vpop.trf.xlu0
      %v1321 = vpop.trf.xlu0
      %v1322 = vpop.trf.xlu0
      %v1323 = vpop.trf.xlu0
      %v1324 = vpop.trf.xlu0
      %v1325 = vpop.trf.xlu0
      %v1326 = vpop.trf.xlu0
      %v1327 = vpop.trf.xlu0
      %v1328 = vpop.trf.xlu0
      %1329 = vxpose.xlu0.b32.start [1/16] %v420, 128
      %1330 = vxpose.xlu0.b32.cont [2/16] 0.0, 128
      %1331 = vxpose.xlu0.b32.cont [3/16] 0.0, 128
      %1332 = vxpose.xlu0.b32.cont [4/16] 0.0, 128
      %1333 = vxpose.xlu0.b32.cont [5/16] 0.0, 128
      %1334 = vxpose.xlu0.b32.cont [6/16] 0.0, 128
      %1335 = vxpose.xlu0.b32.cont [7/16] 0.0, 128
      %1336 = vxpose.xlu0.b32.cont [8/16] 0.0, 128
      %1337 = vxpose.xlu0.b32.cont [9/16] 0.0, 128
      %1338 = vxpose.xlu0.b32.cont [10/16] 0.0, 128
      %1339 = vxpose.xlu0.b32.cont [11/16] 0.0, 128
      %1340 = vxpose.xlu0.b32.cont [12/16] 0.0, 128
      %1341 = vxpose.xlu0.b32.cont [13/16] 0.0, 128
      %1342 = vxpose.xlu0.b32.cont [14/16] 0.0, 128
      %1343 = vxpose.xlu0.b32.cont [15/16] 0.0, 128
      %1344 = vxpose.xlu0.b32.end [16/16] 0.0, 128
      %v1345 = vpop.trf.xlu0
      %v1346 = vpop.trf.xlu0
      %v1347 = vpop.trf.xlu0
      %v1348 = vpop.trf.xlu0
      %v1349 = vpop.trf.xlu0
      %v1350 = vpop.trf.xlu0
      %v1351 = vpop.trf.xlu0
      %v1352 = vpop.trf.xlu0
      %v1353 = vpop.trf.xlu0
      %v1354 = vpop.trf.xlu0
      %v1355 = vpop.trf.xlu0
      %v1356 = vpop.trf.xlu0
      %v1357 = vpop.trf.xlu0
      %v1358 = vpop.trf.xlu0
      %v1359 = vpop.trf.xlu0
      %v1360 = vpop.trf.xlu0
      %1361 = vxpose.xlu0.b32.start [1/16] %v430, 128
      %1362 = vxpose.xlu0.b32.cont [2/16] 0.0, 128
      %1363 = vxpose.xlu0.b32.cont [3/16] 0.0, 128
      %1364 = vxpose.xlu0.b32.cont [4/16] 0.0, 128
      %1365 = vxpose.xlu0.b32.cont [5/16] 0.0, 128
      %1366 = vxpose.xlu0.b32.cont [6/16] 0.0, 128
      %1367 = vxpose.xlu0.b32.cont [7/16] 0.0, 128
      %1368 = vxpose.xlu0.b32.cont [8/16] 0.0, 128
      %1369 = vxpose.xlu0.b32.cont [9/16] 0.0, 128
      %1370 = vxpose.xlu0.b32.cont [10/16] 0.0, 128
      %1371 = vxpose.xlu0.b32.cont [11/16] 0.0, 128
      %1372 = vxpose.xlu0.b32.cont [12/16] 0.0, 128
      %1373 = vxpose.xlu0.b32.cont [13/16] 0.0, 128
      %1374 = vxpose.xlu0.b32.cont [14/16] 0.0, 128
      %1375 = vxpose.xlu0.b32.cont [15/16] 0.0, 128
      %1376 = vxpose.xlu0.b32.end [16/16] 0.0, 128
      %v1377 = vpop.trf.xlu0
      %v1378 = vpop.trf.xlu0
      %v1379 = vpop.trf.xlu0
      %v1380 = vpop.trf.xlu0
      %v1381 = vpop.trf.xlu0
      %v1382 = vpop.trf.xlu0
      %v1383 = vpop.trf.xlu0
      %v1384 = vpop.trf.xlu0
      %v1385 = vpop.trf.xlu0
      %v1386 = vpop.trf.xlu0
      %v1387 = vpop.trf.xlu0
      %v1388 = vpop.trf.xlu0
      %v1389 = vpop.trf.xlu0
      %v1390 = vpop.trf.xlu0
      %v1391 = vpop.trf.xlu0
      %v1392 = vpop.trf.xlu0
      %1393 = vxpose.xlu0.b32.start [1/16] %v424, 128
      %1394 = vxpose.xlu0.b32.cont [2/16] 0.0, 128
      %1395 = vxpose.xlu0.b32.cont [3/16] 0.0, 128
      %1396 = vxpose.xlu0.b32.cont [4/16] 0.0, 128
      %1397 = vxpose.xlu0.b32.cont [5/16] 0.0, 128
      %1398 = vxpose.xlu0.b32.cont [6/16] 0.0, 128
      %1399 = vxpose.xlu0.b32.cont [7/16] 0.0, 128
      %1400 = vxpose.xlu0.b32.cont [8/16] 0.0, 128
      %1401 = vxpose.xlu0.b32.cont [9/16] 0.0, 128
      %1402 = vxpose.xlu0.b32.cont [10/16] 0.0, 128
      %1403 = vxpose.xlu0.b32.cont [11/16] 0.0, 128
      %1404 = vxpose.xlu0.b32.cont [12/16] 0.0, 128
      %1405 = vxpose.xlu0.b32.cont [13/16] 0.0, 128
      %1406 = vxpose.xlu0.b32.cont [14/16] 0.0, 128
      %1407 = vxpose.xlu0.b32.cont [15/16] 0.0, 128
      %1408 = vxpose.xlu0.b32.end [16/16] 0.0, 128
      %v1409 = vpop.trf.xlu0
      %v1410 = vpop.trf.xlu0
      %v1411 = vpop.trf.xlu0
      %v1412 = vpop.trf.xlu0
      %v1413 = vpop.trf.xlu0
      %v1414 = vpop.trf.xlu0
      %v1415 = vpop.trf.xlu0
      %v1416 = vpop.trf.xlu0
      %v1417 = vpop.trf.xlu0
      %v1418 = vpop.trf.xlu0
      %v1419 = vpop.trf.xlu0
      %v1420 = vpop.trf.xlu0
      %v1421 = vpop.trf.xlu0
      %v1422 = vpop.trf.xlu0
      %v1423 = vpop.trf.xlu0
      %v1424 = vpop.trf.xlu0
      %1425 = vxpose.xlu0.b32.start [1/16] %v432, 128
      %1426 = vxpose.xlu0.b32.cont [2/16] 0.0, 128
      %1427 = vxpose.xlu0.b32.cont [3/16] 0.0, 128
      %1428 = vxpose.xlu0.b32.cont [4/16] 0.0, 128
      %1429 = vxpose.xlu0.b32.cont [5/16] 0.0, 128
      %1430 = vxpose.xlu0.b32.cont [6/16] 0.0, 128
      %1431 = vxpose.xlu0.b32.cont [7/16] 0.0, 128
      %1432 = vxpose.xlu0.b32.cont [8/16] 0.0, 128
      %1433 = vxpose.xlu0.b32.cont [9/16] 0.0, 128
      %1434 = vxpose.xlu0.b32.cont [10/16] 0.0, 128
      %1435 = vxpose.xlu0.b32.cont [11/16] 0.0, 128
      %1436 = vxpose.xlu0.b32.cont [12/16] 0.0, 128
      %1437 = vxpose.xlu0.b32.cont [13/16] 0.0, 128
      %1438 = vxpose.xlu0.b32.cont [14/16] 0.0, 128
      %1439 = vxpose.xlu0.b32.cont [15/16] 0.0, 128
      %1440 = vxpose.xlu0.b32.end [16/16] 0.0, 128
      %v1441 = vpop.trf.xlu0
      %v1442 = vpop.trf.xlu0
      %v1443 = vpop.trf.xlu0
      %v1444 = vpop.trf.xlu0
      %v1445 = vpop.trf.xlu0
      %v1446 = vpop.trf.xlu0
      %v1447 = vpop.trf.xlu0
      %v1448 = vpop.trf.xlu0
      %v1449 = vpop.trf.xlu0
      %v1450 = vpop.trf.xlu0
      %v1451 = vpop.trf.xlu0
      %v1452 = vpop.trf.xlu0
      %v1453 = vpop.trf.xlu0
      %v1454 = vpop.trf.xlu0
      %v1455 = vpop.trf.xlu0
      %v1456 = vpop.trf.xlu0
      %v1489 = vrot.slane %v481, 7
      %vm1490 = vcmask 1041409
      %v1491 = vsel %vm1490, %v1489, %v449
      %v1492 = vrot.slane %v513, 6
      %vm1493 = vcmask 1042434
      %v1494 = vsel %vm1493, %v1492, %v1491
      %v1495 = vrot.slane %v545, 5
      %vm1496 = vcmask 1043459
      %v1497 = vsel %vm1496, %v1495, %v1494
      %v1498 = vrot.slane %v577, 4
      %vm1499 = vcmask 1044484
      %v1500 = vsel %vm1499, %v1498, %v1497
      %v1501 = vrot.slane %v609, 3
      %vm1502 = vcmask 1045509
      %v1503 = vsel %vm1502, %v1501, %v1500
      %v1504 = vrot.slane %v641, 2
      %vm1505 = vcmask 1046534
      %v1506 = vsel %vm1505, %v1504, %v1503
      %v1507 = vrot.slane %v673, 1
      %vm1508 = vcmask 1047559
      %v1509 = vsel %vm1508, %v1507, %v1506
      %v1510 = vrot.slane %v737, 7
      %v1511 = vsel %vm1490, %v1510, %v705
      %v1512 = vrot.slane %v769, 6
      %v1513 = vsel %vm1493, %v1512, %v1511
      %v1514 = vrot.slane %v801, 5
      %v1515 = vsel %vm1496, %v1514, %v1513
      %v1516 = vrot.slane %v833, 4
      %v1517 = vsel %vm1499, %v1516, %v1515
      %v1518 = vrot.slane %v865, 3
      %v1519 = vsel %vm1502, %v1518, %v1517
      %v1520 = vrot.slane %v897, 2
      %v1521 = vsel %vm1505, %v1520, %v1519
      %v1522 = vrot.slane %v929, 1
      %v1523 = vsel %vm1508, %v1522, %v1521
      %v1524 = vrot.slane %v993, 7
      %v1525 = vsel %vm1490, %v1524, %v961
      %v1526 = vrot.slane %v1025, 6
      %v1527 = vsel %vm1493, %v1526, %v1525
      %v1528 = vrot.slane %v1057, 5
      %v1529 = vsel %vm1496, %v1528, %v1527
      %v1530 = vrot.slane %v1089, 4
      %v1531 = vsel %vm1499, %v1530, %v1529
      %v1532 = vrot.slane %v1121, 3
      %v1533 = vsel %vm1502, %v1532, %v1531
      %v1534 = vrot.slane %v1153, 2
      %v1535 = vsel %vm1505, %v1534, %v1533
      %v1536 = vrot.slane %v1185, 1
      %v1537 = vsel %vm1508, %v1536, %v1535
      %v1538 = vrot.slane %v1249, 7
      %v1539 = vsel %vm1490, %v1538, %v1217
      %v1540 = vrot.slane %v1281, 6
      %v1541 = vsel %vm1493, %v1540, %v1539
      %v1542 = vrot.slane %v1313, 5
      %v1543 = vsel %vm1496, %v1542, %v1541
      %v1544 = vrot.slane %v1345, 4
      %v1545 = vsel %vm1499, %v1544, %v1543
      %v1546 = vrot.slane %v1377, 3
      %v1547 = vsel %vm1502, %v1546, %v1545
      %v1548 = vrot.slane %v1409, 2
      %v1549 = vsel %vm1505, %v1548, %v1547
      %v1550 = vrot.slane %v1441, 1
      %v1551 = vsel %vm1508, %v1550, %v1549
      %vm1556 = vcmask 31744
      %1557 = vst.msk [vmem:[%s159] sm:$0xff] %vm1556, %v1509
      %1558 = vst.msk [vmem:[%s159 + $0x80] sm:$0xff] %vm1556, %v1523
      %1559 = vst.msk [vmem:[%s159 + $0x100] sm:$0xff] %vm1556, %v1537
      %1560 = vst.msk [vmem:[%s159 + $0x180] sm:$0xff] %vm1556, %v1551
      %v1561 = vsel %vm1493, %v1489, %v449
      %v1562 = vsel %vm1496, %v1492, %v1561
      %v1563 = vsel %vm1499, %v1495, %v1562
      %v1564 = vsel %vm1502, %v1498, %v1563
      %v1565 = vsel %vm1505, %v1501, %v1564
      %v1566 = vsel %vm1508, %v1504, %v1565
      %v1567 = vsel %vm1493, %v1510, %v705
      %v1568 = vsel %vm1496, %v1512, %v1567
      %v1569 = vsel %vm1499, %v1514, %v1568
      %v1570 = vsel %vm1502, %v1516, %v1569
      %v1571 = vsel %vm1505, %v1518, %v1570
      %v1572 = vsel %vm1508, %v1520, %v1571
      %v1573 = vsel %vm1493, %v1524, %v961
      %v1574 = vsel %vm1496, %v1526, %v1573
      %v1575 = vsel %vm1499, %v1528, %v1574
      %v1576 = vsel %vm1502, %v1530, %v1575
      %v1577 = vsel %vm1505, %v1532, %v1576
      %v1578 = vsel %vm1508, %v1534, %v1577
      %v1579 = vsel %vm1493, %v1538, %v1217
      %v1580 = vsel %vm1496, %v1540, %v1579
      %v1581 = vsel %vm1499, %v1542, %v1580
      %v1582 = vsel %vm1502, %v1544, %v1581
      %v1583 = vsel %vm1505, %v1546, %v1582
      %v1584 = vsel %vm1508, %v1548, %v1583
      %s1593 = scalar_lea.vmem %s159, 8
      %vm1594 = vcmask 31745
      %1595 = vst.msk [vmem:[%s1593 - $0x1] sm:$0xfe] %vm1594, %v1566
      %vm1596 = vcmask 24576
      %1597 = vst.msk [vmem:[%s1593 + $0x7] sm:$0x1] %vm1596, %v1507
      %1598 = vst.msk [vmem:[%s1593 + $0x7f] sm:$0xfe] %vm1594, %v1572
      %1599 = vst.msk [vmem:[%s1593 + $0x87] sm:$0x1] %vm1596, %v1522
      %1600 = vst.msk [vmem:[%s1593 + $0xff] sm:$0xfe] %vm1594, %v1578
      %1601 = vst.msk [vmem:[%s1593 + $0x107] sm:$0x1] %vm1596, %v1536
      %1602 = vst.msk [vmem:[%s1593 + $0x17f] sm:$0xfe] %vm1594, %v1584
      %1603 = vst.msk [vmem:[%s1593 + $0x187] sm:$0x1] %vm1596, %v1550
      %v1604 = vsel %vm1496, %v1489, %v449
      %v1605 = vsel %vm1499, %v1492, %v1604
      %v1606 = vsel %vm1502, %v1495, %v1605
      %v1607 = vsel %vm1505, %v1498, %v1606
      %v1608 = vsel %vm1508, %v1501, %v1607
      %v1609 = vsel %vm1490, %v1507, %v1504
      %v1610 = vsel %vm1496, %v1510, %v705
      %v1611 = vsel %vm1499, %v1512, %v1610
      %v1612 = vsel %vm1502, %v1514, %v1611
      %v1613 = vsel %vm1505, %v1516, %v1612
      %v1614 = vsel %vm1508, %v1518, %v1613
      %v1615 = vsel %vm1490, %v1522, %v1520
      %v1616 = vsel %vm1496, %v1524, %v961
      %v1617 = vsel %vm1499, %v1526, %v1616
      %v1618 = vsel %vm1502, %v1528, %v1617
      %v1619 = vsel %vm1505, %v1530, %v1618
      %v1620 = vsel %vm1508, %v1532, %v1619
      %v1621 = vsel %vm1490, %v1536, %v1534
      %v1622 = vsel %vm1496, %v1538, %v1217
      %v1623 = vsel %vm1499, %v1540, %v1622
      %v1624 = vsel %vm1502, %v1542, %v1623
      %v1625 = vsel %vm1505, %v1544, %v1624
      %v1626 = vsel %vm1508, %v1546, %v1625
      %v1627 = vsel %vm1490, %v1550, %v1548
      %s1636 = scalar_lea.vmem %s159, 16
      %vm1637 = vcmask 31746
      %1638 = vst.msk [vmem:[%s1636 - $0x2] sm:$0xfc] %vm1637, %v1608
      %vm1639 = vcmask 25600
      %1640 = vst.msk [vmem:[%s1636 + $0x6] sm:$0x3] %vm1639, %v1609
      %1641 = vst.msk [vmem:[%s1636 + $0x7e] sm:$0xfc] %vm1637, %v1614
      %1642 = vst.msk [vmem:[%s1636 + $0x86] sm:$0x3] %vm1639, %v1615
      %1643 = vst.msk [vmem:[%s1636 + $0xfe] sm:$0xfc] %vm1637, %v1620
      %1644 = vst.msk [vmem:[%s1636 + $0x106] sm:$0x3] %vm1639, %v1621
      %1645 = vst.msk [vmem:[%s1636 + $0x17e] sm:$0xfc] %vm1637, %v1626
      %1646 = vst.msk [vmem:[%s1636 + $0x186] sm:$0x3] %vm1639, %v1627
      %v1647 = vsel %vm1499, %v1489, %v449
      %v1648 = vsel %vm1502, %v1492, %v1647
      %v1649 = vsel %vm1505, %v1495, %v1648
      %v1650 = vsel %vm1508, %v1498, %v1649
      %v1651 = vsel %vm1490, %v1504, %v1501
      %v1652 = vsel %vm1493, %v1507, %v1651
      %v1653 = vsel %vm1499, %v1510, %v705
      %v1654 = vsel %vm1502, %v1512, %v1653
      %v1655 = vsel %vm1505, %v1514, %v1654
      %v1656 = vsel %vm1508, %v1516, %v1655
      %v1657 = vsel %vm1490, %v1520, %v1518
      %v1658 = vsel %vm1493, %v1522, %v1657
      %v1659 = vsel %vm1499, %v1524, %v961
      %v1660 = vsel %vm1502, %v1526, %v1659
      %v1661 = vsel %vm1505, %v1528, %v1660
      %v1662 = vsel %vm1508, %v1530, %v1661
      %v1663 = vsel %vm1490, %v1534, %v1532
      %v1664 = vsel %vm1493, %v1536, %v1663
      %v1665 = vsel %vm1499, %v1538, %v1217
      %v1666 = vsel %vm1502, %v1540, %v1665
      %v1667 = vsel %vm1505, %v1542, %v1666
      %v1668 = vsel %vm1508, %v1544, %v1667
      %v1669 = vsel %vm1490, %v1548, %v1546
      %v1670 = vsel %vm1493, %v1550, %v1669
      %s1679 = scalar_lea.vmem %s159, 24
      %vm1680 = vcmask 31747
      %1681 = vst.msk [vmem:[%s1679 - $0x3] sm:$0xf8] %vm1680, %v1650
      %vm1682 = vcmask 26624
      %1683 = vst.msk [vmem:[%s1679 + $0x5] sm:$0x7] %vm1682, %v1652
      %1684 = vst.msk [vmem:[%s1679 + $0x7d] sm:$0xf8] %vm1680, %v1656
      %1685 = vst.msk [vmem:[%s1679 + $0x85] sm:$0x7] %vm1682, %v1658
      %1686 = vst.msk [vmem:[%s1679 + $0xfd] sm:$0xf8] %vm1680, %v1662
      %1687 = vst.msk [vmem:[%s1679 + $0x105] sm:$0x7] %vm1682, %v1664
      %1688 = vst.msk [vmem:[%s1679 + $0x17d] sm:$0xf8] %vm1680, %v1668
      %1689 = vst.msk [vmem:[%s1679 + $0x185] sm:$0x7] %vm1682, %v1670
      %s1690 = scalar_lea.vmem %s148, 1
      %v1691 = vld [vmem:[%s1690] ss:$4 sm:$0xff]
      %s1692 = scalar_lea.vmem %s148, 33
      %v1693 = vld [vmem:[%s1692] ss:$4 sm:$0xff]
      %s1694 = scalar_lea.vmem %s148, 65
      %v1695 = vld [vmem:[%s1694] ss:$4 sm:$0xff]
      %s1696 = scalar_lea.vmem %s148, 97
      %v1697 = vld [vmem:[%s1696] ss:$4 sm:$0xff]
      %1702 = vrot.lane.b32.xlu0 %v1691, 124
      %v1703 = vpop.permute.xlu0 %1702
      %1704 = vrot.lane.b32.xlu0 %v1693, 124
      %v1705 = vpop.permute.xlu0 %1704
      %1706 = vrot.lane.b32.xlu0 %v1695, 124
      %v1707 = vpop.permute.xlu0 %1706
      %1708 = vrot.lane.b32.xlu0 %v1697, 124
      %v1709 = vpop.permute.xlu0 %1708
      %1714 = vrot.lane.b32.xlu0 %v1691, 120
      %v1715 = vpop.permute.xlu0 %1714
      %1716 = vrot.lane.b32.xlu0 %v1693, 120
      %v1717 = vpop.permute.xlu0 %1716
      %1718 = vrot.lane.b32.xlu0 %v1695, 120
      %v1719 = vpop.permute.xlu0 %1718
      %1720 = vrot.lane.b32.xlu0 %v1697, 120
      %v1721 = vpop.permute.xlu0 %1720
      %1726 = vrot.lane.b32.xlu0 %v1691, 116
      %v1727 = vpop.permute.xlu0 %1726
      %1728 = vrot.lane.b32.xlu0 %v1693, 116
      %v1729 = vpop.permute.xlu0 %1728
      %1730 = vrot.lane.b32.xlu0 %v1695, 116
      %v1731 = vpop.permute.xlu0 %1730
      %1732 = vrot.lane.b32.xlu0 %v1697, 116
      %v1733 = vpop.permute.xlu0 %1732
      %v1738 = vrot.slane %v1715, 4
      %v1739 = vsel %vm209, %v1738, %v1691
      %v1740 = vrot.slane %v1691, 4
      %v1741 = vsel %vm209, %v1715, %v1740
      %v1743 = vunpack.c.l.s4 1983009808
      %v1744 = vunpack.c.0.s8 %v1743
      %v1745 = vperm.slane %v1739, %v1744
      %v1747 = vunpack.c.l.s4 1983009808
      %v1748 = vunpack.c.0.s8 %v1747
      %v1749 = vperm.slane %v1741, %v1748
      %v1750 = vrot.slane %v1727, 4
      %v1751 = vsel %vm209, %v1750, %v1703
      %v1752 = vrot.slane %v1703, 4
      %v1753 = vsel %vm209, %v1727, %v1752
      %v1755 = vunpack.c.l.s4 1983009808
      %v1756 = vunpack.c.0.s8 %v1755
      %v1757 = vperm.slane %v1751, %v1756
      %v1759 = vunpack.c.l.s4 1983009808
      %v1760 = vunpack.c.0.s8 %v1759
      %v1761 = vperm.slane %v1753, %v1760
      %v1762 = vrot.slane %v1757, 4
      %v1763 = vsel %vm209, %v1762, %v1745
      %v1764 = vrot.slane %v1745, 4
      %v1765 = vsel %vm209, %v1757, %v1764
      %v1767 = vunpack.c.l.s4 1934713408
      %v1768 = vunpack.c.0.s8 %v1767
      %v1769 = vperm.slane %v1763, %v1768
      %v1771 = vunpack.c.l.s4 1934713408
      %v1772 = vunpack.c.0.s8 %v1771
      %v1773 = vperm.slane %v1765, %v1772
      %v1774 = vrot.slane %v1761, 4
      %v1775 = vsel %vm209, %v1774, %v1749
      %v1776 = vrot.slane %v1749, 4
      %v1777 = vsel %vm209, %v1761, %v1776
      %v1779 = vunpack.c.l.s4 1934713408
      %v1780 = vunpack.c.0.s8 %v1779
      %v1781 = vperm.slane %v1775, %v1780
      %v1783 = vunpack.c.l.s4 1934713408
      %v1784 = vunpack.c.0.s8 %v1783
      %v1785 = vperm.slane %v1777, %v1784
      %v1786 = vrot.slane %v1769, 4
      %v1787 = vsel %vm209, 0.0, %v1786
      %v1788 = vrot.slane %v1773, 4
      %v1789 = vsel %vm209, 0.0, %v1788
      %v1790 = vrot.slane %v1781, 4
      %v1791 = vsel %vm209, 0.0, %v1790
      %v1792 = vrot.slane %v1785, 4
      %v1793 = vsel %vm209, 0.0, %v1792
      %v1794 = vrot.slane %v1717, 4
      %v1795 = vsel %vm209, %v1794, %v1693
      %v1796 = vrot.slane %v1693, 4
      %v1797 = vsel %vm209, %v1717, %v1796
      %v1799 = vunpack.c.l.s4 1983009808
      %v1800 = vunpack.c.0.s8 %v1799
      %v1801 = vperm.slane %v1795, %v1800
      %v1803 = vunpack.c.l.s4 1983009808
      %v1804 = vunpack.c.0.s8 %v1803
      %v1805 = vperm.slane %v1797, %v1804
      %v1806 = vrot.slane %v1729, 4
      %v1807 = vsel %vm209, %v1806, %v1705
      %v1808 = vrot.slane %v1705, 4
      %v1809 = vsel %vm209, %v1729, %v1808
      %v1811 = vunpack.c.l.s4 1983009808
      %v1812 = vunpack.c.0.s8 %v1811
      %v1813 = vperm.slane %v1807, %v1812
      %v1815 = vunpack.c.l.s4 1983009808
      %v1816 = vunpack.c.0.s8 %v1815
      %v1817 = vperm.slane %v1809, %v1816
      %v1818 = vrot.slane %v1813, 4
      %v1819 = vsel %vm209, %v1818, %v1801
      %v1820 = vrot.slane %v1801, 4
      %v1821 = vsel %vm209, %v1813, %v1820
      %v1823 = vunpack.c.l.s4 1934713408
      %v1824 = vunpack.c.0.s8 %v1823
      %v1825 = vperm.slane %v1819, %v1824
      %v1827 = vunpack.c.l.s4 1934713408
      %v1828 = vunpack.c.0.s8 %v1827
      %v1829 = vperm.slane %v1821, %v1828
      %v1830 = vrot.slane %v1817, 4
      %v1831 = vsel %vm209, %v1830, %v1805
      %v1832 = vrot.slane %v1805, 4
      %v1833 = vsel %vm209, %v1817, %v1832
      %v1835 = vunpack.c.l.s4 1934713408
      %v1836 = vunpack.c.0.s8 %v1835
      %v1837 = vperm.slane %v1831, %v1836
      %v1839 = vunpack.c.l.s4 1934713408
      %v1840 = vunpack.c.0.s8 %v1839
      %v1841 = vperm.slane %v1833, %v1840
      %v1842 = vrot.slane %v1825, 4
      %v1843 = vsel %vm209, 0.0, %v1842
      %v1844 = vrot.slane %v1829, 4
      %v1845 = vsel %vm209, 0.0, %v1844
      %v1846 = vrot.slane %v1837, 4
      %v1847 = vsel %vm209, 0.0, %v1846
      %v1848 = vrot.slane %v1841, 4
      %v1849 = vsel %vm209, 0.0, %v1848
      %v1850 = vrot.slane %v1719, 4
      %v1851 = vsel %vm209, %v1850, %v1695
      %v1852 = vrot.slane %v1695, 4
      %v1853 = vsel %vm209, %v1719, %v1852
      %v1855 = vunpack.c.l.s4 1983009808
      %v1856 = vunpack.c.0.s8 %v1855
      %v1857 = vperm.slane %v1851, %v1856
      %v1859 = vunpack.c.l.s4 1983009808
      %v1860 = vunpack.c.0.s8 %v1859
      %v1861 = vperm.slane %v1853, %v1860
      %v1862 = vrot.slane %v1731, 4
      %v1863 = vsel %vm209, %v1862, %v1707
      %v1864 = vrot.slane %v1707, 4
      %v1865 = vsel %vm209, %v1731, %v1864
      %v1867 = vunpack.c.l.s4 1983009808
      %v1868 = vunpack.c.0.s8 %v1867
      %v1869 = vperm.slane %v1863, %v1868
      %v1871 = vunpack.c.l.s4 1983009808
      %v1872 = vunpack.c.0.s8 %v1871
      %v1873 = vperm.slane %v1865, %v1872
      %v1874 = vrot.slane %v1869, 4
      %v1875 = vsel %vm209, %v1874, %v1857
      %v1876 = vrot.slane %v1857, 4
      %v1877 = vsel %vm209, %v1869, %v1876
      %v1879 = vunpack.c.l.s4 1934713408
      %v1880 = vunpack.c.0.s8 %v1879
      %v1881 = vperm.slane %v1875, %v1880
      %v1883 = vunpack.c.l.s4 1934713408
      %v1884 = vunpack.c.0.s8 %v1883
      %v1885 = vperm.slane %v1877, %v1884
      %v1886 = vrot.slane %v1873, 4
      %v1887 = vsel %vm209, %v1886, %v1861
      %v1888 = vrot.slane %v1861, 4
      %v1889 = vsel %vm209, %v1873, %v1888
      %v1891 = vunpack.c.l.s4 1934713408
      %v1892 = vunpack.c.0.s8 %v1891
      %v1893 = vperm.slane %v1887, %v1892
      %v1895 = vunpack.c.l.s4 1934713408
      %v1896 = vunpack.c.0.s8 %v1895
      %v1897 = vperm.slane %v1889, %v1896
      %v1898 = vrot.slane %v1881, 4
      %v1899 = vsel %vm209, 0.0, %v1898
      %v1900 = vrot.slane %v1885, 4
      %v1901 = vsel %vm209, 0.0, %v1900
      %v1902 = vrot.slane %v1893, 4
      %v1903 = vsel %vm209, 0.0, %v1902
      %v1904 = vrot.slane %v1897, 4
      %v1905 = vsel %vm209, 0.0, %v1904
      %v1906 = vrot.slane %v1721, 4
      %v1907 = vsel %vm209, %v1906, %v1697
      %v1908 = vrot.slane %v1697, 4
      %v1909 = vsel %vm209, %v1721, %v1908
      %v1911 = vunpack.c.l.s4 1983009808
      %v1912 = vunpack.c.0.s8 %v1911
      %v1913 = vperm.slane %v1907, %v1912
      %v1915 = vunpack.c.l.s4 1983009808
      %v1916 = vunpack.c.0.s8 %v1915
      %v1917 = vperm.slane %v1909, %v1916
      %v1918 = vrot.slane %v1733, 4
      %v1919 = vsel %vm209, %v1918, %v1709
      %v1920 = vrot.slane %v1709, 4
      %v1921 = vsel %vm209, %v1733, %v1920
      %v1923 = vunpack.c.l.s4 1983009808
      %v1924 = vunpack.c.0.s8 %v1923
      %v1925 = vperm.slane %v1919, %v1924
      %v1927 = vunpack.c.l.s4 1983009808
      %v1928 = vunpack.c.0.s8 %v1927
      %v1929 = vperm.slane %v1921, %v1928
      %v1930 = vrot.slane %v1925, 4
      %v1931 = vsel %vm209, %v1930, %v1913
      %v1932 = vrot.slane %v1913, 4
      %v1933 = vsel %vm209, %v1925, %v1932
      %v1935 = vunpack.c.l.s4 1934713408
      %v1936 = vunpack.c.0.s8 %v1935
      %v1937 = vperm.slane %v1931, %v1936
      %v1939 = vunpack.c.l.s4 1934713408
      %v1940 = vunpack.c.0.s8 %v1939
      %v1941 = vperm.slane %v1933, %v1940
      %v1942 = vrot.slane %v1929, 4
      %v1943 = vsel %vm209, %v1942, %v1917
      %v1944 = vrot.slane %v1917, 4
      %v1945 = vsel %vm209, %v1929, %v1944
      %v1947 = vunpack.c.l.s4 1934713408
      %v1948 = vunpack.c.0.s8 %v1947
      %v1949 = vperm.slane %v1943, %v1948
      %v1951 = vunpack.c.l.s4 1934713408
      %v1952 = vunpack.c.0.s8 %v1951
      %v1953 = vperm.slane %v1945, %v1952
      %v1954 = vrot.slane %v1937, 4
      %v1955 = vsel %vm209, 0.0, %v1954
      %v1956 = vrot.slane %v1941, 4
      %v1957 = vsel %vm209, 0.0, %v1956
      %v1958 = vrot.slane %v1949, 4
      %v1959 = vsel %vm209, 0.0, %v1958
      %v1960 = vrot.slane %v1953, 4
      %v1961 = vsel %vm209, 0.0, %v1960
      %1962 = vxpose.xlu0.b32.start [1/16] %v1769, 128
      %1963 = vxpose.xlu0.b32.cont [2/16] 0.0, 128
      %1964 = vxpose.xlu0.b32.cont [3/16] 0.0, 128
      %1965 = vxpose.xlu0.b32.cont [4/16] 0.0, 128
      %1966 = vxpose.xlu0.b32.cont [5/16] 0.0, 128
      %1967 = vxpose.xlu0.b32.cont [6/16] 0.0, 128
      %1968 = vxpose.xlu0.b32.cont [7/16] 0.0, 128
      %1969 = vxpose.xlu0.b32.cont [8/16] 0.0, 128
      %1970 = vxpose.xlu0.b32.cont [9/16] 0.0, 128
      %1971 = vxpose.xlu0.b32.cont [10/16] 0.0, 128
      %1972 = vxpose.xlu0.b32.cont [11/16] 0.0, 128
      %1973 = vxpose.xlu0.b32.cont [12/16] 0.0, 128
      %1974 = vxpose.xlu0.b32.cont [13/16] 0.0, 128
      %1975 = vxpose.xlu0.b32.cont [14/16] 0.0, 128
      %1976 = vxpose.xlu0.b32.cont [15/16] 0.0, 128
      %1977 = vxpose.xlu0.b32.end [16/16] 0.0, 128
      %v1978 = vpop.trf.xlu0
      %v1979 = vpop.trf.xlu0
      %v1980 = vpop.trf.xlu0
      %v1981 = vpop.trf.xlu0
      %v1982 = vpop.trf.xlu0
      %v1983 = vpop.trf.xlu0
      %v1984 = vpop.trf.xlu0
      %v1985 = vpop.trf.xlu0
      %v1986 = vpop.trf.xlu0
      %v1987 = vpop.trf.xlu0
      %v1988 = vpop.trf.xlu0
      %v1989 = vpop.trf.xlu0
      %v1990 = vpop.trf.xlu0
      %v1991 = vpop.trf.xlu0
      %v1992 = vpop.trf.xlu0
      %v1993 = vpop.trf.xlu0
      %1994 = vxpose.xlu0.b32.start [1/16] %v1787, 128
      %1995 = vxpose.xlu0.b32.cont [2/16] 0.0, 128
      %1996 = vxpose.xlu0.b32.cont [3/16] 0.0, 128
      %1997 = vxpose.xlu0.b32.cont [4/16] 0.0, 128
      %1998 = vxpose.xlu0.b32.cont [5/16] 0.0, 128
      %1999 = vxpose.xlu0.b32.cont [6/16] 0.0, 128
      %2000 = vxpose.xlu0.b32.cont [7/16] 0.0, 128
      %2001 = vxpose.xlu0.b32.cont [8/16] 0.0, 128
      %2002 = vxpose.xlu0.b32.cont [9/16] 0.0, 128
      %2003 = vxpose.xlu0.b32.cont [10/16] 0.0, 128
      %2004 = vxpose.xlu0.b32.cont [11/16] 0.0, 128
      %2005 = vxpose.xlu0.b32.cont [12/16] 0.0, 128
      %2006 = vxpose.xlu0.b32.cont [13/16] 0.0, 128
      %2007 = vxpose.xlu0.b32.cont [14/16] 0.0, 128
      %2008 = vxpose.xlu0.b32.cont [15/16] 0.0, 128
      %2009 = vxpose.xlu0.b32.end [16/16] 0.0, 128
      %v2010 = vpop.trf.xlu0
      %v2011 = vpop.trf.xlu0
      %v2012 = vpop.trf.xlu0
      %v2013 = vpop.trf.xlu0
      %v2014 = vpop.trf.xlu0
      %v2015 = vpop.trf.xlu0
      %v2016 = vpop.trf.xlu0
      %v2017 = vpop.trf.xlu0
      %v2018 = vpop.trf.xlu0
      %v2019 = vpop.trf.xlu0
      %v2020 = vpop.trf.xlu0
      %v2021 = vpop.trf.xlu0
      %v2022 = vpop.trf.xlu0
      %v2023 = vpop.trf.xlu0
      %v2024 = vpop.trf.xlu0
      %v2025 = vpop.trf.xlu0
      %2026 = vxpose.xlu0.b32.start [1/16] %v1773, 128
      %2027 = vxpose.xlu0.b32.cont [2/16] 0.0, 128
      %2028 = vxpose.xlu0.b32.cont [3/16] 0.0, 128
      %2029 = vxpose.xlu0.b32.cont [4/16] 0.0, 128
      %2030 = vxpose.xlu0.b32.cont [5/16] 0.0, 128
      %2031 = vxpose.xlu0.b32.cont [6/16] 0.0, 128
      %2032 = vxpose.xlu0.b32.cont [7/16] 0.0, 128
      %2033 = vxpose.xlu0.b32.cont [8/16] 0.0, 128
      %2034 = vxpose.xlu0.b32.cont [9/16] 0.0, 128
      %2035 = vxpose.xlu0.b32.cont [10/16] 0.0, 128
      %2036 = vxpose.xlu0.b32.cont [11/16] 0.0, 128
      %2037 = vxpose.xlu0.b32.cont [12/16] 0.0, 128
      %2038 = vxpose.xlu0.b32.cont [13/16] 0.0, 128
      %2039 = vxpose.xlu0.b32.cont [14/16] 0.0, 128
      %2040 = vxpose.xlu0.b32.cont [15/16] 0.0, 128
      %2041 = vxpose.xlu0.b32.end [16/16] 0.0, 128
      %v2042 = vpop.trf.xlu0
      %v2043 = vpop.trf.xlu0
      %v2044 = vpop.trf.xlu0
      %v2045 = vpop.trf.xlu0
      %v2046 = vpop.trf.xlu0
      %v2047 = vpop.trf.xlu0
      %v2048 = vpop.trf.xlu0
      %v2049 = vpop.trf.xlu0
      %v2050 = vpop.trf.xlu0
      %v2051 = vpop.trf.xlu0
      %v2052 = vpop.trf.xlu0
      %v2053 = vpop.trf.xlu0
      %v2054 = vpop.trf.xlu0
      %v2055 = vpop.trf.xlu0
      %v2056 = vpop.trf.xlu0
      %v2057 = vpop.trf.xlu0
      %2058 = vxpose.xlu0.b32.start [1/16] %v1789, 128
      %2059 = vxpose.xlu0.b32.cont [2/16] 0.0, 128
      %2060 = vxpose.xlu0.b32.cont [3/16] 0.0, 128
      %2061 = vxpose.xlu0.b32.cont [4/16] 0.0, 128
      %2062 = vxpose.xlu0.b32.cont [5/16] 0.0, 128
      %2063 = vxpose.xlu0.b32.cont [6/16] 0.0, 128
      %2064 = vxpose.xlu0.b32.cont [7/16] 0.0, 128
      %2065 = vxpose.xlu0.b32.cont [8/16] 0.0, 128
      %2066 = vxpose.xlu0.b32.cont [9/16] 0.0, 128
      %2067 = vxpose.xlu0.b32.cont [10/16] 0.0, 128
      %2068 = vxpose.xlu0.b32.cont [11/16] 0.0, 128
      %2069 = vxpose.xlu0.b32.cont [12/16] 0.0, 128
      %2070 = vxpose.xlu0.b32.cont [13/16] 0.0, 128
      %2071 = vxpose.xlu0.b32.cont [14/16] 0.0, 128
      %2072 = vxpose.xlu0.b32.cont [15/16] 0.0, 128
      %2073 = vxpose.xlu0.b32.end [16/16] 0.0, 128
      %v2074 = vpop.trf.xlu0
      %v2075 = vpop.trf.xlu0
      %v2076 = vpop.trf.xlu0
      %v2077 = vpop.trf.xlu0
      %v2078 = vpop.trf.xlu0
      %v2079 = vpop.trf.xlu0
      %v2080 = vpop.trf.xlu0
      %v2081 = vpop.trf.xlu0
      %v2082 = vpop.trf.xlu0
      %v2083 = vpop.trf.xlu0
      %v2084 = vpop.trf.xlu0
      %v2085 = vpop.trf.xlu0
      %v2086 = vpop.trf.xlu0
      %v2087 = vpop.trf.xlu0
      %v2088 = vpop.trf.xlu0
      %v2089 = vpop.trf.xlu0
      %2090 = vxpose.xlu0.b32.start [1/16] %v1781, 128
      %2091 = vxpose.xlu0.b32.cont [2/16] 0.0, 128
      %2092 = vxpose.xlu0.b32.cont [3/16] 0.0, 128
      %2093 = vxpose.xlu0.b32.cont [4/16] 0.0, 128
      %2094 = vxpose.xlu0.b32.cont [5/16] 0.0, 128
      %2095 = vxpose.xlu0.b32.cont [6/16] 0.0, 128
      %2096 = vxpose.xlu0.b32.cont [7/16] 0.0, 128
      %2097 = vxpose.xlu0.b32.cont [8/16] 0.0, 128
      %2098 = vxpose.xlu0.b32.cont [9/16] 0.0, 128
      %2099 = vxpose.xlu0.b32.cont [10/16] 0.0, 128
      %2100 = vxpose.xlu0.b32.cont [11/16] 0.0, 128
      %2101 = vxpose.xlu0.b32.cont [12/16] 0.0, 128
      %2102 = vxpose.xlu0.b32.cont [13/16] 0.0, 128
      %2103 = vxpose.xlu0.b32.cont [14/16] 0.0, 128
      %2104 = vxpose.xlu0.b32.cont [15/16] 0.0, 128
      %2105 = vxpose.xlu0.b32.end [16/16] 0.0, 128
      %v2106 = vpop.trf.xlu0
      %v2107 = vpop.trf.xlu0
      %v2108 = vpop.trf.xlu0
      %v2109 = vpop.trf.xlu0
      %v2110 = vpop.trf.xlu0
      %v2111 = vpop.trf.xlu0
      %v2112 = vpop.trf.xlu0
      %v2113 = vpop.trf.xlu0
      %v2114 = vpop.trf.xlu0
      %v2115 = vpop.trf.xlu0
      %v2116 = vpop.trf.xlu0
      %v2117 = vpop.trf.xlu0
      %v2118 = vpop.trf.xlu0
      %v2119 = vpop.trf.xlu0
      %v2120 = vpop.trf.xlu0
      %v2121 = vpop.trf.xlu0
      %2122 = vxpose.xlu0.b32.start [1/16] %v1791, 128
      %2123 = vxpose.xlu0.b32.cont [2/16] 0.0, 128
      %2124 = vxpose.xlu0.b32.cont [3/16] 0.0, 128
      %2125 = vxpose.xlu0.b32.cont [4/16] 0.0, 128
      %2126 = vxpose.xlu0.b32.cont [5/16] 0.0, 128
      %2127 = vxpose.xlu0.b32.cont [6/16] 0.0, 128
      %2128 = vxpose.xlu0.b32.cont [7/16] 0.0, 128
      %2129 = vxpose.xlu0.b32.cont [8/16] 0.0, 128
      %2130 = vxpose.xlu0.b32.cont [9/16] 0.0, 128
      %2131 = vxpose.xlu0.b32.cont [10/16] 0.0, 128
      %2132 = vxpose.xlu0.b32.cont [11/16] 0.0, 128
      %2133 = vxpose.xlu0.b32.cont [12/16] 0.0, 128
      %2134 = vxpose.xlu0.b32.cont [13/16] 0.0, 128
      %2135 = vxpose.xlu0.b32.cont [14/16] 0.0, 128
      %2136 = vxpose.xlu0.b32.cont [15/16] 0.0, 128
      %2137 = vxpose.xlu0.b32.end [16/16] 0.0, 128
      %v2138 = vpop.trf.xlu0
      %v2139 = vpop.trf.xlu0
      %v2140 = vpop.trf.xlu0
      %v2141 = vpop.trf.xlu0
      %v2142 = vpop.trf.xlu0
      %v2143 = vpop.trf.xlu0
      %v2144 = vpop.trf.xlu0
      %v2145 = vpop.trf.xlu0
      %v2146 = vpop.trf.xlu0
      %v2147 = vpop.trf.xlu0
      %v2148 = vpop.trf.xlu0
      %v2149 = vpop.trf.xlu0
      %v2150 = vpop.trf.xlu0
      %v2151 = vpop.trf.xlu0
      %v2152 = vpop.trf.xlu0
      %v2153 = vpop.trf.xlu0
      %2154 = vxpose.xlu0.b32.start [1/16] %v1785, 128
      %2155 = vxpose.xlu0.b32.cont [2/16] 0.0, 128
      %2156 = vxpose.xlu0.b32.cont [3/16] 0.0, 128
      %2157 = vxpose.xlu0.b32.cont [4/16] 0.0, 128
      %2158 = vxpose.xlu0.b32.cont [5/16] 0.0, 128
      %2159 = vxpose.xlu0.b32.cont [6/16] 0.0, 128
      %2160 = vxpose.xlu0.b32.cont [7/16] 0.0, 128
      %2161 = vxpose.xlu0.b32.cont [8/16] 0.0, 128
      %2162 = vxpose.xlu0.b32.cont [9/16] 0.0, 128
      %2163 = vxpose.xlu0.b32.cont [10/16] 0.0, 128
      %2164 = vxpose.xlu0.b32.cont [11/16] 0.0, 128
      %2165 = vxpose.xlu0.b32.cont [12/16] 0.0, 128
      %2166 = vxpose.xlu0.b32.cont [13/16] 0.0, 128
      %2167 = vxpose.xlu0.b32.cont [14/16] 0.0, 128
      %2168 = vxpose.xlu0.b32.cont [15/16] 0.0, 128
      %2169 = vxpose.xlu0.b32.end [16/16] 0.0, 128
      %v2170 = vpop.trf.xlu0
      %v2171 = vpop.trf.xlu0
      %v2172 = vpop.trf.xlu0
      %v2173 = vpop.trf.xlu0
      %v2174 = vpop.trf.xlu0
      %v2175 = vpop.trf.xlu0
      %v2176 = vpop.trf.xlu0
      %v2177 = vpop.trf.xlu0
      %v2178 = vpop.trf.xlu0
      %v2179 = vpop.trf.xlu0
      %v2180 = vpop.trf.xlu0
      %v2181 = vpop.trf.xlu0
      %v2182 = vpop.trf.xlu0
      %v2183 = vpop.trf.xlu0
      %v2184 = vpop.trf.xlu0
      %v2185 = vpop.trf.xlu0
      %2186 = vxpose.xlu0.b32.start [1/16] %v1793, 128
      %2187 = vxpose.xlu0.b32.cont [2/16] 0.0, 128
      %2188 = vxpose.xlu0.b32.cont [3/16] 0.0, 128
      %2189 = vxpose.xlu0.b32.cont [4/16] 0.0, 128
      %2190 = vxpose.xlu0.b32.cont [5/16] 0.0, 128
      %2191 = vxpose.xlu0.b32.cont [6/16] 0.0, 128
      %2192 = vxpose.xlu0.b32.cont [7/16] 0.0, 128
      %2193 = vxpose.xlu0.b32.cont [8/16] 0.0, 128
      %2194 = vxpose.xlu0.b32.cont [9/16] 0.0, 128
      %2195 = vxpose.xlu0.b32.cont [10/16] 0.0, 128
      %2196 = vxpose.xlu0.b32.cont [11/16] 0.0, 128
      %2197 = vxpose.xlu0.b32.cont [12/16] 0.0, 128
      %2198 = vxpose.xlu0.b32.cont [13/16] 0.0, 128
      %2199 = vxpose.xlu0.b32.cont [14/16] 0.0, 128
      %2200 = vxpose.xlu0.b32.cont [15/16] 0.0, 128
      %2201 = vxpose.xlu0.b32.end [16/16] 0.0, 128
      %v2202 = vpop.trf.xlu0
      %v2203 = vpop.trf.xlu0
      %v2204 = vpop.trf.xlu0
      %v2205 = vpop.trf.xlu0
      %v2206 = vpop.trf.xlu0
      %v2207 = vpop.trf.xlu0
      %v2208 = vpop.trf.xlu0
      %v2209 = vpop.trf.xlu0
      %v2210 = vpop.trf.xlu0
      %v2211 = vpop.trf.xlu0
      %v2212 = vpop.trf.xlu0
      %v2213 = vpop.trf.xlu0
      %v2214 = vpop.trf.xlu0
      %v2215 = vpop.trf.xlu0
      %v2216 = vpop.trf.xlu0
      %v2217 = vpop.trf.xlu0
      %2218 = vxpose.xlu0.b32.start [1/16] %v1825, 128
      %2219 = vxpose.xlu0.b32.cont [2/16] 0.0, 128
      %2220 = vxpose.xlu0.b32.cont [3/16] 0.0, 128
      %2221 = vxpose.xlu0.b32.cont [4/16] 0.0, 128
      %2222 = vxpose.xlu0.b32.cont [5/16] 0.0, 128
      %2223 = vxpose.xlu0.b32.cont [6/16] 0.0, 128
      %2224 = vxpose.xlu0.b32.cont [7/16] 0.0, 128
      %2225 = vxpose.xlu0.b32.cont [8/16] 0.0, 128
      %2226 = vxpose.xlu0.b32.cont [9/16] 0.0, 128
      %2227 = vxpose.xlu0.b32.cont [10/16] 0.0, 128
      %2228 = vxpose.xlu0.b32.cont [11/16] 0.0, 128
      %2229 = vxpose.xlu0.b32.cont [12/16] 0.0, 128
      %2230 = vxpose.xlu0.b32.cont [13/16] 0.0, 128
      %2231 = vxpose.xlu0.b32.cont [14/16] 0.0, 128
      %2232 = vxpose.xlu0.b32.cont [15/16] 0.0, 128
      %2233 = vxpose.xlu0.b32.end [16/16] 0.0, 128
      %v2234 = vpop.trf.xlu0
      %v2235 = vpop.trf.xlu0
      %v2236 = vpop.trf.xlu0
      %v2237 = vpop.trf.xlu0
      %v2238 = vpop.trf.xlu0
      %v2239 = vpop.trf.xlu0
      %v2240 = vpop.trf.xlu0
      %v2241 = vpop.trf.xlu0
      %v2242 = vpop.trf.xlu0
      %v2243 = vpop.trf.xlu0
      %v2244 = vpop.trf.xlu0
      %v2245 = vpop.trf.xlu0
      %v2246 = vpop.trf.xlu0
      %v2247 = vpop.trf.xlu0
      %v2248 = vpop.trf.xlu0
      %v2249 = vpop.trf.xlu0
      %2250 = vxpose.xlu0.b32.start [1/16] %v1843, 128
      %2251 = vxpose.xlu0.b32.cont [2/16] 0.0, 128
      %2252 = vxpose.xlu0.b32.cont [3/16] 0.0, 128
      %2253 = vxpose.xlu0.b32.cont [4/16] 0.0, 128
      %2254 = vxpose.xlu0.b32.cont [5/16] 0.0, 128
      %2255 = vxpose.xlu0.b32.cont [6/16] 0.0, 128
      %2256 = vxpose.xlu0.b32.cont [7/16] 0.0, 128
      %2257 = vxpose.xlu0.b32.cont [8/16] 0.0, 128
      %2258 = vxpose.xlu0.b32.cont [9/16] 0.0, 128
      %2259 = vxpose.xlu0.b32.cont [10/16] 0.0, 128
      %2260 = vxpose.xlu0.b32.cont [11/16] 0.0, 128
      %2261 = vxpose.xlu0.b32.cont [12/16] 0.0, 128
      %2262 = vxpose.xlu0.b32.cont [13/16] 0.0, 128
      %2263 = vxpose.xlu0.b32.cont [14/16] 0.0, 128
      %2264 = vxpose.xlu0.b32.cont [15/16] 0.0, 128
      %2265 = vxpose.xlu0.b32.end [16/16] 0.0, 128
      %v2266 = vpop.trf.xlu0
      %v2267 = vpop.trf.xlu0
      %v2268 = vpop.trf.xlu0
      %v2269 = vpop.trf.xlu0
      %v2270 = vpop.trf.xlu0
      %v2271 = vpop.trf.xlu0
      %v2272 = vpop.trf.xlu0
      %v2273 = vpop.trf.xlu0
      %v2274 = vpop.trf.xlu0
      %v2275 = vpop.trf.xlu0
      %v2276 = vpop.trf.xlu0
      %v2277 = vpop.trf.xlu0
      %v2278 = vpop.trf.xlu0
      %v2279 = vpop.trf.xlu0
      %v2280 = vpop.trf.xlu0
      %v2281 = vpop.trf.xlu0
      %2282 = vxpose.xlu0.b32.start [1/16] %v1829, 128
      %2283 = vxpose.xlu0.b32.cont [2/16] 0.0, 128
      %2284 = vxpose.xlu0.b32.cont [3/16] 0.0, 128
      %2285 = vxpose.xlu0.b32.cont [4/16] 0.0, 128
      %2286 = vxpose.xlu0.b32.cont [5/16] 0.0, 128
      %2287 = vxpose.xlu0.b32.cont [6/16] 0.0, 128
      %2288 = vxpose.xlu0.b32.cont [7/16] 0.0, 128
      %2289 = vxpose.xlu0.b32.cont [8/16] 0.0, 128
      %2290 = vxpose.xlu0.b32.cont [9/16] 0.0, 128
      %2291 = vxpose.xlu0.b32.cont [10/16] 0.0, 128
      %2292 = vxpose.xlu0.b32.cont [11/16] 0.0, 128
      %2293 = vxpose.xlu0.b32.cont [12/16] 0.0, 128
      %2294 = vxpose.xlu0.b32.cont [13/16] 0.0, 128
      %2295 = vxpose.xlu0.b32.cont [14/16] 0.0, 128
      %2296 = vxpose.xlu0.b32.cont [15/16] 0.0, 128
      %2297 = vxpose.xlu0.b32.end [16/16] 0.0, 128
      %v2298 = vpop.trf.xlu0
      %v2299 = vpop.trf.xlu0
      %v2300 = vpop.trf.xlu0
      %v2301 = vpop.trf.xlu0
      %v2302 = vpop.trf.xlu0
      %v2303 = vpop.trf.xlu0
      %v2304 = vpop.trf.xlu0
      %v2305 = vpop.trf.xlu0
      %v2306 = vpop.trf.xlu0
      %v2307 = vpop.trf.xlu0
      %v2308 = vpop.trf.xlu0
      %v2309 = vpop.trf.xlu0
      %v2310 = vpop.trf.xlu0
      %v2311 = vpop.trf.xlu0
      %v2312 = vpop.trf.xlu0
      %v2313 = vpop.trf.xlu0
      %2314 = vxpose.xlu0.b32.start [1/16] %v1845, 128
      %2315 = vxpose.xlu0.b32.cont [2/16] 0.0, 128
      %2316 = vxpose.xlu0.b32.cont [3/16] 0.0, 128
      %2317 = vxpose.xlu0.b32.cont [4/16] 0.0, 128
      %2318 = vxpose.xlu0.b32.cont [5/16] 0.0, 128
      %2319 = vxpose.xlu0.b32.cont [6/16] 0.0, 128
      %2320 = vxpose.xlu0.b32.cont [7/16] 0.0, 128
      %2321 = vxpose.xlu0.b32.cont [8/16] 0.0, 128
      %2322 = vxpose.xlu0.b32.cont [9/16] 0.0, 128
      %2323 = vxpose.xlu0.b32.cont [10/16] 0.0, 128
      %2324 = vxpose.xlu0.b32.cont [11/16] 0.0, 128
      %2325 = vxpose.xlu0.b32.cont [12/16] 0.0, 128
      %2326 = vxpose.xlu0.b32.cont [13/16] 0.0, 128
      %2327 = vxpose.xlu0.b32.cont [14/16] 0.0, 128
      %2328 = vxpose.xlu0.b32.cont [15/16] 0.0, 128
      %2329 = vxpose.xlu0.b32.end [16/16] 0.0, 128
      %v2330 = vpop.trf.xlu0
      %v2331 = vpop.trf.xlu0
      %v2332 = vpop.trf.xlu0
      %v2333 = vpop.trf.xlu0
      %v2334 = vpop.trf.xlu0
      %v2335 = vpop.trf.xlu0
      %v2336 = vpop.trf.xlu0
      %v2337 = vpop.trf.xlu0
      %v2338 = vpop.trf.xlu0
      %v2339 = vpop.trf.xlu0
      %v2340 = vpop.trf.xlu0
      %v2341 = vpop.trf.xlu0
      %v2342 = vpop.trf.xlu0
      %v2343 = vpop.trf.xlu0
      %v2344 = vpop.trf.xlu0
      %v2345 = vpop.trf.xlu0
      %2346 = vxpose.xlu0.b32.start [1/16] %v1837, 128
      %2347 = vxpose.xlu0.b32.cont [2/16] 0.0, 128
      %2348 = vxpose.xlu0.b32.cont [3/16] 0.0, 128
      %2349 = vxpose.xlu0.b32.cont [4/16] 0.0, 128
      %2350 = vxpose.xlu0.b32.cont [5/16] 0.0, 128
      %2351 = vxpose.xlu0.b32.cont [6/16] 0.0, 128
      %2352 = vxpose.xlu0.b32.cont [7/16] 0.0, 128
      %2353 = vxpose.xlu0.b32.cont [8/16] 0.0, 128
      %2354 = vxpose.xlu0.b32.cont [9/16] 0.0, 128
      %2355 = vxpose.xlu0.b32.cont [10/16] 0.0, 128
      %2356 = vxpose.xlu0.b32.cont [11/16] 0.0, 128
      %2357 = vxpose.xlu0.b32.cont [12/16] 0.0, 128
      %2358 = vxpose.xlu0.b32.cont [13/16] 0.0, 128
      %2359 = vxpose.xlu0.b32.cont [14/16] 0.0, 128
      %2360 = vxpose.xlu0.b32.cont [15/16] 0.0, 128
      %2361 = vxpose.xlu0.b32.end [16/16] 0.0, 128
      %v2362 = vpop.trf.xlu0
      %v2363 = vpop.trf.xlu0
      %v2364 = vpop.trf.xlu0
      %v2365 = vpop.trf.xlu0
      %v2366 = vpop.trf.xlu0
      %v2367 = vpop.trf.xlu0
      %v2368 = vpop.trf.xlu0
      %v2369 = vpop.trf.xlu0
      %v2370 = vpop.trf.xlu0
      %v2371 = vpop.trf.xlu0
      %v2372 = vpop.trf.xlu0
      %v2373 = vpop.trf.xlu0
      %v2374 = vpop.trf.xlu0
      %v2375 = vpop.trf.xlu0
      %v2376 = vpop.trf.xlu0
      %v2377 = vpop.trf.xlu0
      %2378 = vxpose.xlu0.b32.start [1/16] %v1847, 128
      %2379 = vxpose.xlu0.b32.cont [2/16] 0.0, 128
      %2380 = vxpose.xlu0.b32.cont [3/16] 0.0, 128
      %2381 = vxpose.xlu0.b32.cont [4/16] 0.0, 128
      %2382 = vxpose.xlu0.b32.cont [5/16] 0.0, 128
      %2383 = vxpose.xlu0.b32.cont [6/16] 0.0, 128
      %2384 = vxpose.xlu0.b32.cont [7/16] 0.0, 128
      %2385 = vxpose.xlu0.b32.cont [8/16] 0.0, 128
      %2386 = vxpose.xlu0.b32.cont [9/16] 0.0, 128
      %2387 = vxpose.xlu0.b32.cont [10/16] 0.0, 128
      %2388 = vxpose.xlu0.b32.cont [11/16] 0.0, 128
      %2389 = vxpose.xlu0.b32.cont [12/16] 0.0, 128
      %2390 = vxpose.xlu0.b32.cont [13/16] 0.0, 128
      %2391 = vxpose.xlu0.b32.cont [14/16] 0.0, 128
      %2392 = vxpose.xlu0.b32.cont [15/16] 0.0, 128
      %2393 = vxpose.xlu0.b32.end [16/16] 0.0, 128
      %v2394 = vpop.trf.xlu0
      %v2395 = vpop.trf.xlu0
      %v2396 = vpop.trf.xlu0
      %v2397 = vpop.trf.xlu0
      %v2398 = vpop.trf.xlu0
      %v2399 = vpop.trf.xlu0
      %v2400 = vpop.trf.xlu0
      %v2401 = vpop.trf.xlu0
      %v2402 = vpop.trf.xlu0
      %v2403 = vpop.trf.xlu0
      %v2404 = vpop.trf.xlu0
      %v2405 = vpop.trf.xlu0
      %v2406 = vpop.trf.xlu0
      %v2407 = vpop.trf.xlu0
      %v2408 = vpop.trf.xlu0
      %v2409 = vpop.trf.xlu0
      %2410 = vxpose.xlu0.b32.start [1/16] %v1841, 128
      %2411 = vxpose.xlu0.b32.cont [2/16] 0.0, 128
      %2412 = vxpose.xlu0.b32.cont [3/16] 0.0, 128
      %2413 = vxpose.xlu0.b32.cont [4/16] 0.0, 128
      %2414 = vxpose.xlu0.b32.cont [5/16] 0.0, 128
      %2415 = vxpose.xlu0.b32.cont [6/16] 0.0, 128
      %2416 = vxpose.xlu0.b32.cont [7/16] 0.0, 128
      %2417 = vxpose.xlu0.b32.cont [8/16] 0.0, 128
      %2418 = vxpose.xlu0.b32.cont [9/16] 0.0, 128
      %2419 = vxpose.xlu0.b32.cont [10/16] 0.0, 128
      %2420 = vxpose.xlu0.b32.cont [11/16] 0.0, 128
      %2421 = vxpose.xlu0.b32.cont [12/16] 0.0, 128
      %2422 = vxpose.xlu0.b32.cont [13/16] 0.0, 128
      %2423 = vxpose.xlu0.b32.cont [14/16] 0.0, 128
      %2424 = vxpose.xlu0.b32.cont [15/16] 0.0, 128
      %2425 = vxpose.xlu0.b32.end [16/16] 0.0, 128
      %v2426 = vpop.trf.xlu0
      %v2427 = vpop.trf.xlu0
      %v2428 = vpop.trf.xlu0
      %v2429 = vpop.trf.xlu0
      %v2430 = vpop.trf.xlu0
      %v2431 = vpop.trf.xlu0
      %v2432 = vpop.trf.xlu0
      %v2433 = vpop.trf.xlu0
      %v2434 = vpop.trf.xlu0
      %v2435 = vpop.trf.xlu0
      %v2436 = vpop.trf.xlu0
      %v2437 = vpop.trf.xlu0
      %v2438 = vpop.trf.xlu0
      %v2439 = vpop.trf.xlu0
      %v2440 = vpop.trf.xlu0
      %v2441 = vpop.trf.xlu0
      %2442 = vxpose.xlu0.b32.start [1/16] %v1849, 128
      %2443 = vxpose.xlu0.b32.cont [2/16] 0.0, 128
      %2444 = vxpose.xlu0.b32.cont [3/16] 0.0, 128
      %2445 = vxpose.xlu0.b32.cont [4/16] 0.0, 128
      %2446 = vxpose.xlu0.b32.cont [5/16] 0.0, 128
      %2447 = vxpose.xlu0.b32.cont [6/16] 0.0, 128
      %2448 = vxpose.xlu0.b32.cont [7/16] 0.0, 128
      %2449 = vxpose.xlu0.b32.cont [8/16] 0.0, 128
      %2450 = vxpose.xlu0.b32.cont [9/16] 0.0, 128
      %2451 = vxpose.xlu0.b32.cont [10/16] 0.0, 128
      %2452 = vxpose.xlu0.b32.cont [11/16] 0.0, 128
      %2453 = vxpose.xlu0.b32.cont [12/16] 0.0, 128
      %2454 = vxpose.xlu0.b32.cont [13/16] 0.0, 128
      %2455 = vxpose.xlu0.b32.cont [14/16] 0.0, 128
      %2456 = vxpose.xlu0.b32.cont [15/16] 0.0, 128
      %2457 = vxpose.xlu0.b32.end [16/16] 0.0, 128
      %v2458 = vpop.trf.xlu0
      %v2459 = vpop.trf.xlu0
      %v2460 = vpop.trf.xlu0
      %v2461 = vpop.trf.xlu0
      %v2462 = vpop.trf.xlu0
      %v2463 = vpop.trf.xlu0
      %v2464 = vpop.trf.xlu0
      %v2465 = vpop.trf.xlu0
      %v2466 = vpop.trf.xlu0
      %v2467 = vpop.trf.xlu0
      %v2468 = vpop.trf.xlu0
      %v2469 = vpop.trf.xlu0
      %v2470 = vpop.trf.xlu0
      %v2471 = vpop.trf.xlu0
      %v2472 = vpop.trf.xlu0
      %v2473 = vpop.trf.xlu0
      %2474 = vxpose.xlu0.b32.start [1/16] %v1881, 128
      %2475 = vxpose.xlu0.b32.cont [2/16] 0.0, 128
      %2476 = vxpose.xlu0.b32.cont [3/16] 0.0, 128
      %2477 = vxpose.xlu0.b32.cont [4/16] 0.0, 128
      %2478 = vxpose.xlu0.b32.cont [5/16] 0.0, 128
      %2479 = vxpose.xlu0.b32.cont [6/16] 0.0, 128
      %2480 = vxpose.xlu0.b32.cont [7/16] 0.0, 128
      %2481 = vxpose.xlu0.b32.cont [8/16] 0.0, 128
      %2482 = vxpose.xlu0.b32.cont [9/16] 0.0, 128
      %2483 = vxpose.xlu0.b32.cont [10/16] 0.0, 128
      %2484 = vxpose.xlu0.b32.cont [11/16] 0.0, 128
      %2485 = vxpose.xlu0.b32.cont [12/16] 0.0, 128
      %2486 = vxpose.xlu0.b32.cont [13/16] 0.0, 128
      %2487 = vxpose.xlu0.b32.cont [14/16] 0.0, 128
      %2488 = vxpose.xlu0.b32.cont [15/16] 0.0, 128
      %2489 = vxpose.xlu0.b32.end [16/16] 0.0, 128
      %v2490 = vpop.trf.xlu0
      %v2491 = vpop.trf.xlu0
      %v2492 = vpop.trf.xlu0
      %v2493 = vpop.trf.xlu0
      %v2494 = vpop.trf.xlu0
      %v2495 = vpop.trf.xlu0
      %v2496 = vpop.trf.xlu0
      %v2497 = vpop.trf.xlu0
      %v2498 = vpop.trf.xlu0
      %v2499 = vpop.trf.xlu0
      %v2500 = vpop.trf.xlu0
      %v2501 = vpop.trf.xlu0
      %v2502 = vpop.trf.xlu0
      %v2503 = vpop.trf.xlu0
      %v2504 = vpop.trf.xlu0
      %v2505 = vpop.trf.xlu0
      %2506 = vxpose.xlu0.b32.start [1/16] %v1899, 128
      %2507 = vxpose.xlu0.b32.cont [2/16] 0.0, 128
      %2508 = vxpose.xlu0.b32.cont [3/16] 0.0, 128
      %2509 = vxpose.xlu0.b32.cont [4/16] 0.0, 128
      %2510 = vxpose.xlu0.b32.cont [5/16] 0.0, 128
      %2511 = vxpose.xlu0.b32.cont [6/16] 0.0, 128
      %2512 = vxpose.xlu0.b32.cont [7/16] 0.0, 128
      %2513 = vxpose.xlu0.b32.cont [8/16] 0.0, 128
      %2514 = vxpose.xlu0.b32.cont [9/16] 0.0, 128
      %2515 = vxpose.xlu0.b32.cont [10/16] 0.0, 128
      %2516 = vxpose.xlu0.b32.cont [11/16] 0.0, 128
      %2517 = vxpose.xlu0.b32.cont [12/16] 0.0, 128
      %2518 = vxpose.xlu0.b32.cont [13/16] 0.0, 128
      %2519 = vxpose.xlu0.b32.cont [14/16] 0.0, 128
      %2520 = vxpose.xlu0.b32.cont [15/16] 0.0, 128
      %2521 = vxpose.xlu0.b32.end [16/16] 0.0, 128
      %v2522 = vpop.trf.xlu0
      %v2523 = vpop.trf.xlu0
      %v2524 = vpop.trf.xlu0
      %v2525 = vpop.trf.xlu0
      %v2526 = vpop.trf.xlu0
      %v2527 = vpop.trf.xlu0
      %v2528 = vpop.trf.xlu0
      %v2529 = vpop.trf.xlu0
      %v2530 = vpop.trf.xlu0
      %v2531 = vpop.trf.xlu0
      %v2532 = vpop.trf.xlu0
      %v2533 = vpop.trf.xlu0
      %v2534 = vpop.trf.xlu0
      %v2535 = vpop.trf.xlu0
      %v2536 = vpop.trf.xlu0
      %v2537 = vpop.trf.xlu0
      %2538 = vxpose.xlu0.b32.start [1/16] %v1885, 128
      %2539 = vxpose.xlu0.b32.cont [2/16] 0.0, 128
      %2540 = vxpose.xlu0.b32.cont [3/16] 0.0, 128
      %2541 = vxpose.xlu0.b32.cont [4/16] 0.0, 128
      %2542 = vxpose.xlu0.b32.cont [5/16] 0.0, 128
      %2543 = vxpose.xlu0.b32.cont [6/16] 0.0, 128
      %2544 = vxpose.xlu0.b32.cont [7/16] 0.0, 128
      %2545 = vxpose.xlu0.b32.cont [8/16] 0.0, 128
      %2546 = vxpose.xlu0.b32.cont [9/16] 0.0, 128
      %2547 = vxpose.xlu0.b32.cont [10/16] 0.0, 128
      %2548 = vxpose.xlu0.b32.cont [11/16] 0.0, 128
      %2549 = vxpose.xlu0.b32.cont [12/16] 0.0, 128
      %2550 = vxpose.xlu0.b32.cont [13/16] 0.0, 128
      %2551 = vxpose.xlu0.b32.cont [14/16] 0.0, 128
      %2552 = vxpose.xlu0.b32.cont [15/16] 0.0, 128
      %2553 = vxpose.xlu0.b32.end [16/16] 0.0, 128
      %v2554 = vpop.trf.xlu0
      %v2555 = vpop.trf.xlu0
      %v2556 = vpop.trf.xlu0
      %v2557 = vpop.trf.xlu0
      %v2558 = vpop.trf.xlu0
      %v2559 = vpop.trf.xlu0
      %v2560 = vpop.trf.xlu0
      %v2561 = vpop.trf.xlu0
      %v2562 = vpop.trf.xlu0
      %v2563 = vpop.trf.xlu0
      %v2564 = vpop.trf.xlu0
      %v2565 = vpop.trf.xlu0
      %v2566 = vpop.trf.xlu0
      %v2567 = vpop.trf.xlu0
      %v2568 = vpop.trf.xlu0
      %v2569 = vpop.trf.xlu0
      %2570 = vxpose.xlu0.b32.start [1/16] %v1901, 128
      %2571 = vxpose.xlu0.b32.cont [2/16] 0.0, 128
      %2572 = vxpose.xlu0.b32.cont [3/16] 0.0, 128
      %2573 = vxpose.xlu0.b32.cont [4/16] 0.0, 128
      %2574 = vxpose.xlu0.b32.cont [5/16] 0.0, 128
      %2575 = vxpose.xlu0.b32.cont [6/16] 0.0, 128
      %2576 = vxpose.xlu0.b32.cont [7/16] 0.0, 128
      %2577 = vxpose.xlu0.b32.cont [8/16] 0.0, 128
      %2578 = vxpose.xlu0.b32.cont [9/16] 0.0, 128
      %2579 = vxpose.xlu0.b32.cont [10/16] 0.0, 128
      %2580 = vxpose.xlu0.b32.cont [11/16] 0.0, 128
      %2581 = vxpose.xlu0.b32.cont [12/16] 0.0, 128
      %2582 = vxpose.xlu0.b32.cont [13/16] 0.0, 128
      %2583 = vxpose.xlu0.b32.cont [14/16] 0.0, 128
      %2584 = vxpose.xlu0.b32.cont [15/16] 0.0, 128
      %2585 = vxpose.xlu0.b32.end [16/16] 0.0, 128
      %v2586 = vpop.trf.xlu0
      %v2587 = vpop.trf.xlu0
      %v2588 = vpop.trf.xlu0
      %v2589 = vpop.trf.xlu0
      %v2590 = vpop.trf.xlu0
      %v2591 = vpop.trf.xlu0
      %v2592 = vpop.trf.xlu0
      %v2593 = vpop.trf.xlu0
      %v2594 = vpop.trf.xlu0
      %v2595 = vpop.trf.xlu0
      %v2596 = vpop.trf.xlu0
      %v2597 = vpop.trf.xlu0
      %v2598 = vpop.trf.xlu0
      %v2599 = vpop.trf.xlu0
      %v2600 = vpop.trf.xlu0
      %v2601 = vpop.trf.xlu0
      %2602 = vxpose.xlu0.b32.start [1/16] %v1893, 128
      %2603 = vxpose.xlu0.b32.cont [2/16] 0.0, 128
      %2604 = vxpose.xlu0.b32.cont [3/16] 0.0, 128
      %2605 = vxpose.xlu0.b32.cont [4/16] 0.0, 128
      %2606 = vxpose.xlu0.b32.cont [5/16] 0.0, 128
      %2607 = vxpose.xlu0.b32.cont [6/16] 0.0, 128
      %2608 = vxpose.xlu0.b32.cont [7/16] 0.0, 128
      %2609 = vxpose.xlu0.b32.cont [8/16] 0.0, 128
      %2610 = vxpose.xlu0.b32.cont [9/16] 0.0, 128
      %2611 = vxpose.xlu0.b32.cont [10/16] 0.0, 128
      %2612 = vxpose.xlu0.b32.cont [11/16] 0.0, 128
      %2613 = vxpose.xlu0.b32.cont [12/16] 0.0, 128
      %2614 = vxpose.xlu0.b32.cont [13/16] 0.0, 128
      %2615 = vxpose.xlu0.b32.cont [14/16] 0.0, 128
      %2616 = vxpose.xlu0.b32.cont [15/16] 0.0, 128
      %2617 = vxpose.xlu0.b32.end [16/16] 0.0, 128
      %v2618 = vpop.trf.xlu0
      %v2619 = vpop.trf.xlu0
      %v2620 = vpop.trf.xlu0
      %v2621 = vpop.trf.xlu0
      %v2622 = vpop.trf.xlu0
      %v2623 = vpop.trf.xlu0
      %v2624 = vpop.trf.xlu0
      %v2625 = vpop.trf.xlu0
      %v2626 = vpop.trf.xlu0
      %v2627 = vpop.trf.xlu0
      %v2628 = vpop.trf.xlu0
      %v2629 = vpop.trf.xlu0
      %v2630 = vpop.trf.xlu0
      %v2631 = vpop.trf.xlu0
      %v2632 = vpop.trf.xlu0
      %v2633 = vpop.trf.xlu0
      %2634 = vxpose.xlu0.b32.start [1/16] %v1903, 128
      %2635 = vxpose.xlu0.b32.cont [2/16] 0.0, 128
      %2636 = vxpose.xlu0.b32.cont [3/16] 0.0, 128
      %2637 = vxpose.xlu0.b32.cont [4/16] 0.0, 128
      %2638 = vxpose.xlu0.b32.cont [5/16] 0.0, 128
      %2639 = vxpose.xlu0.b32.cont [6/16] 0.0, 128
      %2640 = vxpose.xlu0.b32.cont [7/16] 0.0, 128
      %2641 = vxpose.xlu0.b32.cont [8/16] 0.0, 128
      %2642 = vxpose.xlu0.b32.cont [9/16] 0.0, 128
      %2643 = vxpose.xlu0.b32.cont [10/16] 0.0, 128
      %2644 = vxpose.xlu0.b32.cont [11/16] 0.0, 128
      %2645 = vxpose.xlu0.b32.cont [12/16] 0.0, 128
      %2646 = vxpose.xlu0.b32.cont [13/16] 0.0, 128
      %2647 = vxpose.xlu0.b32.cont [14/16] 0.0, 128
      %2648 = vxpose.xlu0.b32.cont [15/16] 0.0, 128
      %2649 = vxpose.xlu0.b32.end [16/16] 0.0, 128
      %v2650 = vpop.trf.xlu0
      %v2651 = vpop.trf.xlu0
      %v2652 = vpop.trf.xlu0
      %v2653 = vpop.trf.xlu0
      %v2654 = vpop.trf.xlu0
      %v2655 = vpop.trf.xlu0
      %v2656 = vpop.trf.xlu0
      %v2657 = vpop.trf.xlu0
      %v2658 = vpop.trf.xlu0
      %v2659 = vpop.trf.xlu0
      %v2660 = vpop.trf.xlu0
      %v2661 = vpop.trf.xlu0
      %v2662 = vpop.trf.xlu0
      %v2663 = vpop.trf.xlu0
      %v2664 = vpop.trf.xlu0
      %v2665 = vpop.trf.xlu0
      %2666 = vxpose.xlu0.b32.start [1/16] %v1897, 128
      %2667 = vxpose.xlu0.b32.cont [2/16] 0.0, 128
      %2668 = vxpose.xlu0.b32.cont [3/16] 0.0, 128
      %2669 = vxpose.xlu0.b32.cont [4/16] 0.0, 128
      %2670 = vxpose.xlu0.b32.cont [5/16] 0.0, 128
      %2671 = vxpose.xlu0.b32.cont [6/16] 0.0, 128
      %2672 = vxpose.xlu0.b32.cont [7/16] 0.0, 128
      %2673 = vxpose.xlu0.b32.cont [8/16] 0.0, 128
      %2674 = vxpose.xlu0.b32.cont [9/16] 0.0, 128
      %2675 = vxpose.xlu0.b32.cont [10/16] 0.0, 128
      %2676 = vxpose.xlu0.b32.cont [11/16] 0.0, 128
      %2677 = vxpose.xlu0.b32.cont [12/16] 0.0, 128
      %2678 = vxpose.xlu0.b32.cont [13/16] 0.0, 128
      %2679 = vxpose.xlu0.b32.cont [14/16] 0.0, 128
      %2680 = vxpose.xlu0.b32.cont [15/16] 0.0, 128
      %2681 = vxpose.xlu0.b32.end [16/16] 0.0, 128
      %v2682 = vpop.trf.xlu0
      %v2683 = vpop.trf.xlu0
      %v2684 = vpop.trf.xlu0
      %v2685 = vpop.trf.xlu0
      %v2686 = vpop.trf.xlu0
      %v2687 = vpop.trf.xlu0
      %v2688 = vpop.trf.xlu0
      %v2689 = vpop.trf.xlu0
      %v2690 = vpop.trf.xlu0
      %v2691 = vpop.trf.xlu0
      %v2692 = vpop.trf.xlu0
      %v2693 = vpop.trf.xlu0
      %v2694 = vpop.trf.xlu0
      %v2695 = vpop.trf.xlu0
      %v2696 = vpop.trf.xlu0
      %v2697 = vpop.trf.xlu0
      %2698 = vxpose.xlu0.b32.start [1/16] %v1905, 128
      %2699 = vxpose.xlu0.b32.cont [2/16] 0.0, 128
      %2700 = vxpose.xlu0.b32.cont [3/16] 0.0, 128
      %2701 = vxpose.xlu0.b32.cont [4/16] 0.0, 128
      %2702 = vxpose.xlu0.b32.cont [5/16] 0.0, 128
      %2703 = vxpose.xlu0.b32.cont [6/16] 0.0, 128
      %2704 = vxpose.xlu0.b32.cont [7/16] 0.0, 128
      %2705 = vxpose.xlu0.b32.cont [8/16] 0.0, 128
      %2706 = vxpose.xlu0.b32.cont [9/16] 0.0, 128
      %2707 = vxpose.xlu0.b32.cont [10/16] 0.0, 128
      %2708 = vxpose.xlu0.b32.cont [11/16] 0.0, 128
      %2709 = vxpose.xlu0.b32.cont [12/16] 0.0, 128
      %2710 = vxpose.xlu0.b32.cont [13/16] 0.0, 128
      %2711 = vxpose.xlu0.b32.cont [14/16] 0.0, 128
      %2712 = vxpose.xlu0.b32.cont [15/16] 0.0, 128
      %2713 = vxpose.xlu0.b32.end [16/16] 0.0, 128
      %v2714 = vpop.trf.xlu0
      %v2715 = vpop.trf.xlu0
      %v2716 = vpop.trf.xlu0
      %v2717 = vpop.trf.xlu0
      %v2718 = vpop.trf.xlu0
      %v2719 = vpop.trf.xlu0
      %v2720 = vpop.trf.xlu0
      %v2721 = vpop.trf.xlu0
      %v2722 = vpop.trf.xlu0
      %v2723 = vpop.trf.xlu0
      %v2724 = vpop.trf.xlu0
      %v2725 = vpop.trf.xlu0
      %v2726 = vpop.trf.xlu0
      %v2727 = vpop.trf.xlu0
      %v2728 = vpop.trf.xlu0
      %v2729 = vpop.trf.xlu0
      %2730 = vxpose.xlu0.b32.start [1/16] %v1937, 128
      %2731 = vxpose.xlu0.b32.cont [2/16] 0.0, 128
      %2732 = vxpose.xlu0.b32.cont [3/16] 0.0, 128
      %2733 = vxpose.xlu0.b32.cont [4/16] 0.0, 128
      %2734 = vxpose.xlu0.b32.cont [5/16] 0.0, 128
      %2735 = vxpose.xlu0.b32.cont [6/16] 0.0, 128
      %2736 = vxpose.xlu0.b32.cont [7/16] 0.0, 128
      %2737 = vxpose.xlu0.b32.cont [8/16] 0.0, 128
      %2738 = vxpose.xlu0.b32.cont [9/16] 0.0, 128
      %2739 = vxpose.xlu0.b32.cont [10/16] 0.0, 128
      %2740 = vxpose.xlu0.b32.cont [11/16] 0.0, 128
      %2741 = vxpose.xlu0.b32.cont [12/16] 0.0, 128
      %2742 = vxpose.xlu0.b32.cont [13/16] 0.0, 128
      %2743 = vxpose.xlu0.b32.cont [14/16] 0.0, 128
      %2744 = vxpose.xlu0.b32.cont [15/16] 0.0, 128
      %2745 = vxpose.xlu0.b32.end [16/16] 0.0, 128
      %v2746 = vpop.trf.xlu0
      %v2747 = vpop.trf.xlu0
      %v2748 = vpop.trf.xlu0
      %v2749 = vpop.trf.xlu0
      %v2750 = vpop.trf.xlu0
      %v2751 = vpop.trf.xlu0
      %v2752 = vpop.trf.xlu0
      %v2753 = vpop.trf.xlu0
      %v2754 = vpop.trf.xlu0
      %v2755 = vpop.trf.xlu0
      %v2756 = vpop.trf.xlu0
      %v2757 = vpop.trf.xlu0
      %v2758 = vpop.trf.xlu0
      %v2759 = vpop.trf.xlu0
      %v2760 = vpop.trf.xlu0
      %v2761 = vpop.trf.xlu0
      %2762 = vxpose.xlu0.b32.start [1/16] %v1955, 128
      %2763 = vxpose.xlu0.b32.cont [2/16] 0.0, 128
      %2764 = vxpose.xlu0.b32.cont [3/16] 0.0, 128
      %2765 = vxpose.xlu0.b32.cont [4/16] 0.0, 128
      %2766 = vxpose.xlu0.b32.cont [5/16] 0.0, 128
      %2767 = vxpose.xlu0.b32.cont [6/16] 0.0, 128
      %2768 = vxpose.xlu0.b32.cont [7/16] 0.0, 128
      %2769 = vxpose.xlu0.b32.cont [8/16] 0.0, 128
      %2770 = vxpose.xlu0.b32.cont [9/16] 0.0, 128
      %2771 = vxpose.xlu0.b32.cont [10/16] 0.0, 128
      %2772 = vxpose.xlu0.b32.cont [11/16] 0.0, 128
      %2773 = vxpose.xlu0.b32.cont [12/16] 0.0, 128
      %2774 = vxpose.xlu0.b32.cont [13/16] 0.0, 128
      %2775 = vxpose.xlu0.b32.cont [14/16] 0.0, 128
      %2776 = vxpose.xlu0.b32.cont [15/16] 0.0, 128
      %2777 = vxpose.xlu0.b32.end [16/16] 0.0, 128
      %v2778 = vpop.trf.xlu0
      %v2779 = vpop.trf.xlu0
      %v2780 = vpop.trf.xlu0
      %v2781 = vpop.trf.xlu0
      %v2782 = vpop.trf.xlu0
      %v2783 = vpop.trf.xlu0
      %v2784 = vpop.trf.xlu0
      %v2785 = vpop.trf.xlu0
      %v2786 = vpop.trf.xlu0
      %v2787 = vpop.trf.xlu0
      %v2788 = vpop.trf.xlu0
      %v2789 = vpop.trf.xlu0
      %v2790 = vpop.trf.xlu0
      %v2791 = vpop.trf.xlu0
      %v2792 = vpop.trf.xlu0
      %v2793 = vpop.trf.xlu0
      %2794 = vxpose.xlu0.b32.start [1/16] %v1941, 128
      %2795 = vxpose.xlu0.b32.cont [2/16] 0.0, 128
      %2796 = vxpose.xlu0.b32.cont [3/16] 0.0, 128
      %2797 = vxpose.xlu0.b32.cont [4/16] 0.0, 128
      %2798 = vxpose.xlu0.b32.cont [5/16] 0.0, 128
      %2799 = vxpose.xlu0.b32.cont [6/16] 0.0, 128
      %2800 = vxpose.xlu0.b32.cont [7/16] 0.0, 128
      %2801 = vxpose.xlu0.b32.cont [8/16] 0.0, 128
      %2802 = vxpose.xlu0.b32.cont [9/16] 0.0, 128
      %2803 = vxpose.xlu0.b32.cont [10/16] 0.0, 128
      %2804 = vxpose.xlu0.b32.cont [11/16] 0.0, 128
      %2805 = vxpose.xlu0.b32.cont [12/16] 0.0, 128
      %2806 = vxpose.xlu0.b32.cont [13/16] 0.0, 128
      %2807 = vxpose.xlu0.b32.cont [14/16] 0.0, 128
      %2808 = vxpose.xlu0.b32.cont [15/16] 0.0, 128
      %2809 = vxpose.xlu0.b32.end [16/16] 0.0, 128
      %v2810 = vpop.trf.xlu0
      %v2811 = vpop.trf.xlu0
      %v2812 = vpop.trf.xlu0
      %v2813 = vpop.trf.xlu0
      %v2814 = vpop.trf.xlu0
      %v2815 = vpop.trf.xlu0
      %v2816 = vpop.trf.xlu0
      %v2817 = vpop.trf.xlu0
      %v2818 = vpop.trf.xlu0
      %v2819 = vpop.trf.xlu0
      %v2820 = vpop.trf.xlu0
      %v2821 = vpop.trf.xlu0
      %v2822 = vpop.trf.xlu0
      %v2823 = vpop.trf.xlu0
      %v2824 = vpop.trf.xlu0
      %v2825 = vpop.trf.xlu0
      %2826 = vxpose.xlu0.b32.start [1/16] %v1957, 128
      %2827 = vxpose.xlu0.b32.cont [2/16] 0.0, 128
      %2828 = vxpose.xlu0.b32.cont [3/16] 0.0, 128
      %2829 = vxpose.xlu0.b32.cont [4/16] 0.0, 128
      %2830 = vxpose.xlu0.b32.cont [5/16] 0.0, 128
      %2831 = vxpose.xlu0.b32.cont [6/16] 0.0, 128
      %2832 = vxpose.xlu0.b32.cont [7/16] 0.0, 128
      %2833 = vxpose.xlu0.b32.cont [8/16] 0.0, 128
      %2834 = vxpose.xlu0.b32.cont [9/16] 0.0, 128
      %2835 = vxpose.xlu0.b32.cont [10/16] 0.0, 128
      %2836 = vxpose.xlu0.b32.cont [11/16] 0.0, 128
      %2837 = vxpose.xlu0.b32.cont [12/16] 0.0, 128
      %2838 = vxpose.xlu0.b32.cont [13/16] 0.0, 128
      %2839 = vxpose.xlu0.b32.cont [14/16] 0.0, 128
      %2840 = vxpose.xlu0.b32.cont [15/16] 0.0, 128
      %2841 = vxpose.xlu0.b32.end [16/16] 0.0, 128
      %v2842 = vpop.trf.xlu0
      %v2843 = vpop.trf.xlu0
      %v2844 = vpop.trf.xlu0
      %v2845 = vpop.trf.xlu0
      %v2846 = vpop.trf.xlu0
      %v2847 = vpop.trf.xlu0
      %v2848 = vpop.trf.xlu0
      %v2849 = vpop.trf.xlu0
      %v2850 = vpop.trf.xlu0
      %v2851 = vpop.trf.xlu0
      %v2852 = vpop.trf.xlu0
      %v2853 = vpop.trf.xlu0
      %v2854 = vpop.trf.xlu0
      %v2855 = vpop.trf.xlu0
      %v2856 = vpop.trf.xlu0
      %v2857 = vpop.trf.xlu0
      %2858 = vxpose.xlu0.b32.start [1/16] %v1949, 128
      %2859 = vxpose.xlu0.b32.cont [2/16] 0.0, 128
      %2860 = vxpose.xlu0.b32.cont [3/16] 0.0, 128
      %2861 = vxpose.xlu0.b32.cont [4/16] 0.0, 128
      %2862 = vxpose.xlu0.b32.cont [5/16] 0.0, 128
      %2863 = vxpose.xlu0.b32.cont [6/16] 0.0, 128
      %2864 = vxpose.xlu0.b32.cont [7/16] 0.0, 128
      %2865 = vxpose.xlu0.b32.cont [8/16] 0.0, 128
      %2866 = vxpose.xlu0.b32.cont [9/16] 0.0, 128
      %2867 = vxpose.xlu0.b32.cont [10/16] 0.0, 128
      %2868 = vxpose.xlu0.b32.cont [11/16] 0.0, 128
      %2869 = vxpose.xlu0.b32.cont [12/16] 0.0, 128
      %2870 = vxpose.xlu0.b32.cont [13/16] 0.0, 128
      %2871 = vxpose.xlu0.b32.cont [14/16] 0.0, 128
      %2872 = vxpose.xlu0.b32.cont [15/16] 0.0, 128
      %2873 = vxpose.xlu0.b32.end [16/16] 0.0, 128
      %v2874 = vpop.trf.xlu0
      %v2875 = vpop.trf.xlu0
      %v2876 = vpop.trf.xlu0
      %v2877 = vpop.trf.xlu0
      %v2878 = vpop.trf.xlu0
      %v2879 = vpop.trf.xlu0
      %v2880 = vpop.trf.xlu0
      %v2881 = vpop.trf.xlu0
      %v2882 = vpop.trf.xlu0
      %v2883 = vpop.trf.xlu0
      %v2884 = vpop.trf.xlu0
      %v2885 = vpop.trf.xlu0
      %v2886 = vpop.trf.xlu0
      %v2887 = vpop.trf.xlu0
      %v2888 = vpop.trf.xlu0
      %v2889 = vpop.trf.xlu0
      %2890 = vxpose.xlu0.b32.start [1/16] %v1959, 128
      %2891 = vxpose.xlu0.b32.cont [2/16] 0.0, 128
      %2892 = vxpose.xlu0.b32.cont [3/16] 0.0, 128
      %2893 = vxpose.xlu0.b32.cont [4/16] 0.0, 128
      %2894 = vxpose.xlu0.b32.cont [5/16] 0.0, 128
      %2895 = vxpose.xlu0.b32.cont [6/16] 0.0, 128
      %2896 = vxpose.xlu0.b32.cont [7/16] 0.0, 128
      %2897 = vxpose.xlu0.b32.cont [8/16] 0.0, 128
      %2898 = vxpose.xlu0.b32.cont [9/16] 0.0, 128
      %2899 = vxpose.xlu0.b32.cont [10/16] 0.0, 128
      %2900 = vxpose.xlu0.b32.cont [11/16] 0.0, 128
      %2901 = vxpose.xlu0.b32.cont [12/16] 0.0, 128
      %2902 = vxpose.xlu0.b32.cont [13/16] 0.0, 128
      %2903 = vxpose.xlu0.b32.cont [14/16] 0.0, 128
      %2904 = vxpose.xlu0.b32.cont [15/16] 0.0, 128
      %2905 = vxpose.xlu0.b32.end [16/16] 0.0, 128
      %v2906 = vpop.trf.xlu0
      %v2907 = vpop.trf.xlu0
      %v2908 = vpop.trf.xlu0
      %v2909 = vpop.trf.xlu0
      %v2910 = vpop.trf.xlu0
      %v2911 = vpop.trf.xlu0
      %v2912 = vpop.trf.xlu0
      %v2913 = vpop.trf.xlu0
      %v2914 = vpop.trf.xlu0
      %v2915 = vpop.trf.xlu0
      %v2916 = vpop.trf.xlu0
      %v2917 = vpop.trf.xlu0
      %v2918 = vpop.trf.xlu0
      %v2919 = vpop.trf.xlu0
      %v2920 = vpop.trf.xlu0
      %v2921 = vpop.trf.xlu0
      %2922 = vxpose.xlu0.b32.start [1/16] %v1953, 128
      %2923 = vxpose.xlu0.b32.cont [2/16] 0.0, 128
      %2924 = vxpose.xlu0.b32.cont [3/16] 0.0, 128
      %2925 = vxpose.xlu0.b32.cont [4/16] 0.0, 128
      %2926 = vxpose.xlu0.b32.cont [5/16] 0.0, 128
      %2927 = vxpose.xlu0.b32.cont [6/16] 0.0, 128
      %2928 = vxpose.xlu0.b32.cont [7/16] 0.0, 128
      %2929 = vxpose.xlu0.b32.cont [8/16] 0.0, 128
      %2930 = vxpose.xlu0.b32.cont [9/16] 0.0, 128
      %2931 = vxpose.xlu0.b32.cont [10/16] 0.0, 128
      %2932 = vxpose.xlu0.b32.cont [11/16] 0.0, 128
      %2933 = vxpose.xlu0.b32.cont [12/16] 0.0, 128
      %2934 = vxpose.xlu0.b32.cont [13/16] 0.0, 128
      %2935 = vxpose.xlu0.b32.cont [14/16] 0.0, 128
      %2936 = vxpose.xlu0.b32.cont [15/16] 0.0, 128
      %2937 = vxpose.xlu0.b32.end [16/16] 0.0, 128
      %v2938 = vpop.trf.xlu0
      %v2939 = vpop.trf.xlu0
      %v2940 = vpop.trf.xlu0
      %v2941 = vpop.trf.xlu0
      %v2942 = vpop.trf.xlu0
      %v2943 = vpop.trf.xlu0
      %v2944 = vpop.trf.xlu0
      %v2945 = vpop.trf.xlu0
      %v2946 = vpop.trf.xlu0
      %v2947 = vpop.trf.xlu0
      %v2948 = vpop.trf.xlu0
      %v2949 = vpop.trf.xlu0
      %v2950 = vpop.trf.xlu0
      %v2951 = vpop.trf.xlu0
      %v2952 = vpop.trf.xlu0
      %v2953 = vpop.trf.xlu0
      %2954 = vxpose.xlu0.b32.start [1/16] %v1961, 128
      %2955 = vxpose.xlu0.b32.cont [2/16] 0.0, 128
      %2956 = vxpose.xlu0.b32.cont [3/16] 0.0, 128
      %2957 = vxpose.xlu0.b32.cont [4/16] 0.0, 128
      %2958 = vxpose.xlu0.b32.cont [5/16] 0.0, 128
      %2959 = vxpose.xlu0.b32.cont [6/16] 0.0, 128
      %2960 = vxpose.xlu0.b32.cont [7/16] 0.0, 128
      %2961 = vxpose.xlu0.b32.cont [8/16] 0.0, 128
      %2962 = vxpose.xlu0.b32.cont [9/16] 0.0, 128
      %2963 = vxpose.xlu0.b32.cont [10/16] 0.0, 128
      %2964 = vxpose.xlu0.b32.cont [11/16] 0.0, 128
      %2965 = vxpose.xlu0.b32.cont [12/16] 0.0, 128
      %2966 = vxpose.xlu0.b32.cont [13/16] 0.0, 128
      %2967 = vxpose.xlu0.b32.cont [14/16] 0.0, 128
      %2968 = vxpose.xlu0.b32.cont [15/16] 0.0, 128
      %2969 = vxpose.xlu0.b32.end [16/16] 0.0, 128
      %v2970 = vpop.trf.xlu0
      %v2971 = vpop.trf.xlu0
      %v2972 = vpop.trf.xlu0
      %v2973 = vpop.trf.xlu0
      %v2974 = vpop.trf.xlu0
      %v2975 = vpop.trf.xlu0
      %v2976 = vpop.trf.xlu0
      %v2977 = vpop.trf.xlu0
      %v2978 = vpop.trf.xlu0
      %v2979 = vpop.trf.xlu0
      %v2980 = vpop.trf.xlu0
      %v2981 = vpop.trf.xlu0
      %v2982 = vpop.trf.xlu0
      %v2983 = vpop.trf.xlu0
      %v2984 = vpop.trf.xlu0
      %v2985 = vpop.trf.xlu0
      %v3018 = vrot.slane %v2010, 7
      %v3019 = vsel %vm1490, %v3018, %v1978
      %v3020 = vrot.slane %v2042, 6
      %v3021 = vsel %vm1493, %v3020, %v3019
      %v3022 = vrot.slane %v2074, 5
      %v3023 = vsel %vm1496, %v3022, %v3021
      %v3024 = vrot.slane %v2106, 4
      %v3025 = vsel %vm1499, %v3024, %v3023
      %v3026 = vrot.slane %v2138, 3
      %v3027 = vsel %vm1502, %v3026, %v3025
      %v3028 = vrot.slane %v2170, 2
      %v3029 = vsel %vm1505, %v3028, %v3027
      %v3030 = vrot.slane %v2202, 1
      %v3031 = vsel %vm1508, %v3030, %v3029
      %v3032 = vrot.slane %v2266, 7
      %v3033 = vsel %vm1490, %v3032, %v2234
      %v3034 = vrot.slane %v2298, 6
      %v3035 = vsel %vm1493, %v3034, %v3033
      %v3036 = vrot.slane %v2330, 5
      %v3037 = vsel %vm1496, %v3036, %v3035
      %v3038 = vrot.slane %v2362, 4
      %v3039 = vsel %vm1499, %v3038, %v3037
      %v3040 = vrot.slane %v2394, 3
      %v3041 = vsel %vm1502, %v3040, %v3039
      %v3042 = vrot.slane %v2426, 2
      %v3043 = vsel %vm1505, %v3042, %v3041
      %v3044 = vrot.slane %v2458, 1
      %v3045 = vsel %vm1508, %v3044, %v3043
      %v3046 = vrot.slane %v2522, 7
      %v3047 = vsel %vm1490, %v3046, %v2490
      %v3048 = vrot.slane %v2554, 6
      %v3049 = vsel %vm1493, %v3048, %v3047
      %v3050 = vrot.slane %v2586, 5
      %v3051 = vsel %vm1496, %v3050, %v3049
      %v3052 = vrot.slane %v2618, 4
      %v3053 = vsel %vm1499, %v3052, %v3051
      %v3054 = vrot.slane %v2650, 3
      %v3055 = vsel %vm1502, %v3054, %v3053
      %v3056 = vrot.slane %v2682, 2
      %v3057 = vsel %vm1505, %v3056, %v3055
      %v3058 = vrot.slane %v2714, 1
      %v3059 = vsel %vm1508, %v3058, %v3057
      %v3060 = vrot.slane %v2778, 7
      %v3061 = vsel %vm1490, %v3060, %v2746
      %v3062 = vrot.slane %v2810, 6
      %v3063 = vsel %vm1493, %v3062, %v3061
      %v3064 = vrot.slane %v2842, 5
      %v3065 = vsel %vm1496, %v3064, %v3063
      %v3066 = vrot.slane %v2874, 4
      %v3067 = vsel %vm1499, %v3066, %v3065
      %v3068 = vrot.slane %v2906, 3
      %v3069 = vsel %vm1502, %v3068, %v3067
      %v3070 = vrot.slane %v2938, 2
      %v3071 = vsel %vm1505, %v3070, %v3069
      %v3072 = vrot.slane %v2970, 1
      %v3073 = vsel %vm1508, %v3072, %v3071
      %s3078 = scalar_lea.vmem %s159, 32
      %3079 = vst.msk [vmem:[%s3078] sm:$0xff] %vm1556, %v3031
      %3080 = vst.msk [vmem:[%s3078 + $0x80] sm:$0xff] %vm1556, %v3045
      %3081 = vst.msk [vmem:[%s3078 + $0x100] sm:$0xff] %vm1556, %v3059
      %3082 = vst.msk [vmem:[%s3078 + $0x180] sm:$0xff] %vm1556, %v3073
      %v3083 = vsel %vm1493, %v3018, %v1978
      %v3084 = vsel %vm1496, %v3020, %v3083
      %v3085 = vsel %vm1499, %v3022, %v3084
      %v3086 = vsel %vm1502, %v3024, %v3085
      %v3087 = vsel %vm1505, %v3026, %v3086
      %v3088 = vsel %vm1508, %v3028, %v3087
      %v3089 = vsel %vm1493, %v3032, %v2234
      %v3090 = vsel %vm1496, %v3034, %v3089
      %v3091 = vsel %vm1499, %v3036, %v3090
      %v3092 = vsel %vm1502, %v3038, %v3091
      %v3093 = vsel %vm1505, %v3040, %v3092
      %v3094 = vsel %vm1508, %v3042, %v3093
      %v3095 = vsel %vm1493, %v3046, %v2490
      %v3096 = vsel %vm1496, %v3048, %v3095
      %v3097 = vsel %vm1499, %v3050, %v3096
      %v3098 = vsel %vm1502, %v3052, %v3097
      %v3099 = vsel %vm1505, %v3054, %v3098
      %v3100 = vsel %vm1508, %v3056, %v3099
      %v3101 = vsel %vm1493, %v3060, %v2746
      %v3102 = vsel %vm1496, %v3062, %v3101
      %v3103 = vsel %vm1499, %v3064, %v3102
      %v3104 = vsel %vm1502, %v3066, %v3103
      %v3105 = vsel %vm1505, %v3068, %v3104
      %v3106 = vsel %vm1508, %v3070, %v3105
      %s3115 = scalar_lea.vmem %s159, 40
      %3116 = vst.msk [vmem:[%s3115 - $0x1] sm:$0xfe] %vm1594, %v3088
      %3117 = vst.msk [vmem:[%s3115 + $0x7] sm:$0x1] %vm1596, %v3030
      %3118 = vst.msk [vmem:[%s3115 + $0x7f] sm:$0xfe] %vm1594, %v3094
      %3119 = vst.msk [vmem:[%s3115 + $0x87] sm:$0x1] %vm1596, %v3044
      %3120 = vst.msk [vmem:[%s3115 + $0xff] sm:$0xfe] %vm1594, %v3100
      %3121 = vst.msk [vmem:[%s3115 + $0x107] sm:$0x1] %vm1596, %v3058
      %3122 = vst.msk [vmem:[%s3115 + $0x17f] sm:$0xfe] %vm1594, %v3106
      %3123 = vst.msk [vmem:[%s3115 + $0x187] sm:$0x1] %vm1596, %v3072
      %v3124 = vsel %vm1496, %v3018, %v1978
      %v3125 = vsel %vm1499, %v3020, %v3124
      %v3126 = vsel %vm1502, %v3022, %v3125
      %v3127 = vsel %vm1505, %v3024, %v3126
      %v3128 = vsel %vm1508, %v3026, %v3127
      %v3129 = vsel %vm1490, %v3030, %v3028
      %v3130 = vsel %vm1496, %v3032, %v2234
      %v3131 = vsel %vm1499, %v3034, %v3130
      %v3132 = vsel %vm1502, %v3036, %v3131
      %v3133 = vsel %vm1505, %v3038, %v3132
      %v3134 = vsel %vm1508, %v3040, %v3133
      %v3135 = vsel %vm1490, %v3044, %v3042
      %v3136 = vsel %vm1496, %v3046, %v2490
      %v3137 = vsel %vm1499, %v3048, %v3136
      %v3138 = vsel %vm1502, %v3050, %v3137
      %v3139 = vsel %vm1505, %v3052, %v3138
      %v3140 = vsel %vm1508, %v3054, %v3139
      %v3141 = vsel %vm1490, %v3058, %v3056
      %v3142 = vsel %vm1496, %v3060, %v2746
      %v3143 = vsel %vm1499, %v3062, %v3142
      %v3144 = vsel %vm1502, %v3064, %v3143
      %v3145 = vsel %vm1505, %v3066, %v3144
      %v3146 = vsel %vm1508, %v3068, %v3145
      %v3147 = vsel %vm1490, %v3072, %v3070
      %s3156 = scalar_lea.vmem %s159, 48
      %3157 = vst.msk [vmem:[%s3156 - $0x2] sm:$0xfc] %vm1637, %v3128
      %3158 = vst.msk [vmem:[%s3156 + $0x6] sm:$0x3] %vm1639, %v3129
      %3159 = vst.msk [vmem:[%s3156 + $0x7e] sm:$0xfc] %vm1637, %v3134
      %3160 = vst.msk [vmem:[%s3156 + $0x86] sm:$0x3] %vm1639, %v3135
      %3161 = vst.msk [vmem:[%s3156 + $0xfe] sm:$0xfc] %vm1637, %v3140
      %3162 = vst.msk [vmem:[%s3156 + $0x106] sm:$0x3] %vm1639, %v3141
      %3163 = vst.msk [vmem:[%s3156 + $0x17e] sm:$0xfc] %vm1637, %v3146
      %3164 = vst.msk [vmem:[%s3156 + $0x186] sm:$0x3] %vm1639, %v3147
      %v3165 = vsel %vm1499, %v3018, %v1978
      %v3166 = vsel %vm1502, %v3020, %v3165
      %v3167 = vsel %vm1505, %v3022, %v3166
      %v3168 = vsel %vm1508, %v3024, %v3167
      %v3169 = vsel %vm1490, %v3028, %v3026
      %v3170 = vsel %vm1493, %v3030, %v3169
      %v3171 = vsel %vm1499, %v3032, %v2234
      %v3172 = vsel %vm1502, %v3034, %v3171
      %v3173 = vsel %vm1505, %v3036, %v3172
      %v3174 = vsel %vm1508, %v3038, %v3173
      %v3175 = vsel %vm1490, %v3042, %v3040
      %v3176 = vsel %vm1493, %v3044, %v3175
      %v3177 = vsel %vm1499, %v3046, %v2490
      %v3178 = vsel %vm1502, %v3048, %v3177
      %v3179 = vsel %vm1505, %v3050, %v3178
      %v3180 = vsel %vm1508, %v3052, %v3179
      %v3181 = vsel %vm1490, %v3056, %v3054
      %v3182 = vsel %vm1493, %v3058, %v3181
      %v3183 = vsel %vm1499, %v3060, %v2746
      %v3184 = vsel %vm1502, %v3062, %v3183
      %v3185 = vsel %vm1505, %v3064, %v3184
      %v3186 = vsel %vm1508, %v3066, %v3185
      %v3187 = vsel %vm1490, %v3070, %v3068
      %v3188 = vsel %vm1493, %v3072, %v3187
      %s3197 = scalar_lea.vmem %s159, 56
      %3198 = vst.msk [vmem:[%s3197 - $0x3] sm:$0xf8] %vm1680, %v3168
      %3199 = vst.msk [vmem:[%s3197 + $0x5] sm:$0x7] %vm1682, %v3170
      %3200 = vst.msk [vmem:[%s3197 + $0x7d] sm:$0xf8] %vm1680, %v3174
      %3201 = vst.msk [vmem:[%s3197 + $0x85] sm:$0x7] %vm1682, %v3176
      %3202 = vst.msk [vmem:[%s3197 + $0xfd] sm:$0xf8] %vm1680, %v3180
      %3203 = vst.msk [vmem:[%s3197 + $0x105] sm:$0x7] %vm1682, %v3182
      %3204 = vst.msk [vmem:[%s3197 + $0x17d] sm:$0xf8] %vm1680, %v3186
      %3205 = vst.msk [vmem:[%s3197 + $0x185] sm:$0x7] %vm1682, %v3188
      %s3206 = scalar_lea.vmem %s148, 2
      %v3207 = vld [vmem:[%s3206] ss:$4 sm:$0xff]
      %s3208 = scalar_lea.vmem %s148, 34
      %v3209 = vld [vmem:[%s3208] ss:$4 sm:$0xff]
      %s3210 = scalar_lea.vmem %s148, 66
      %v3211 = vld [vmem:[%s3210] ss:$4 sm:$0xff]
      %s3212 = scalar_lea.vmem %s148, 98
      %v3213 = vld [vmem:[%s3212] ss:$4 sm:$0xff]
      %3218 = vrot.lane.b32.xlu0 %v3207, 124
      %v3219 = vpop.permute.xlu0 %3218
      %3220 = vrot.lane.b32.xlu0 %v3209, 124
      %v3221 = vpop.permute.xlu0 %3220
      %3222 = vrot.lane.b32.xlu0 %v3211, 124
      %v3223 = vpop.permute.xlu0 %3222
      %3224 = vrot.lane.b32.xlu0 %v3213, 124
      %v3225 = vpop.permute.xlu0 %3224
      %3230 = vrot.lane.b32.xlu0 %v3207, 120
      %v3231 = vpop.permute.xlu0 %3230
      %3232 = vrot.lane.b32.xlu0 %v3209, 120
      %v3233 = vpop.permute.xlu0 %3232
      %3234 = vrot.lane.b32.xlu0 %v3211, 120
      %v3235 = vpop.permute.xlu0 %3234
      %3236 = vrot.lane.b32.xlu0 %v3213, 120
      %v3237 = vpop.permute.xlu0 %3236
      %3242 = vrot.lane.b32.xlu0 %v3207, 116
      %v3243 = vpop.permute.xlu0 %3242
      %3244 = vrot.lane.b32.xlu0 %v3209, 116
      %v3245 = vpop.permute.xlu0 %3244
      %3246 = vrot.lane.b32.xlu0 %v3211, 116
      %v3247 = vpop.permute.xlu0 %3246
      %3248 = vrot.lane.b32.xlu0 %v3213, 116
      %v3249 = vpop.permute.xlu0 %3248
      %v3254 = vrot.slane %v3231, 4
      %v3255 = vsel %vm209, %v3254, %v3207
      %v3256 = vrot.slane %v3207, 4
      %v3257 = vsel %vm209, %v3231, %v3256
      %v3259 = vunpack.c.l.s4 1983009808
      %v3260 = vunpack.c.0.s8 %v3259
      %v3261 = vperm.slane %v3255, %v3260
      %v3263 = vunpack.c.l.s4 1983009808
      %v3264 = vunpack.c.0.s8 %v3263
      %v3265 = vperm.slane %v3257, %v3264
      %v3266 = vrot.slane %v3243, 4
      %v3267 = vsel %vm209, %v3266, %v3219
      %v3268 = vrot.slane %v3219, 4
      %v3269 = vsel %vm209, %v3243, %v3268
      %v3271 = vunpack.c.l.s4 1983009808
      %v3272 = vunpack.c.0.s8 %v3271
      %v3273 = vperm.slane %v3267, %v3272
      %v3275 = vunpack.c.l.s4 1983009808
      %v3276 = vunpack.c.0.s8 %v3275
      %v3277 = vperm.slane %v3269, %v3276
      %v3278 = vrot.slane %v3273, 4
      %v3279 = vsel %vm209, %v3278, %v3261
      %v3280 = vrot.slane %v3261, 4
      %v3281 = vsel %vm209, %v3273, %v3280
      %v3283 = vunpack.c.l.s4 1934713408
      %v3284 = vunpack.c.0.s8 %v3283
      %v3285 = vperm.slane %v3279, %v3284
      %v3287 = vunpack.c.l.s4 1934713408
      %v3288 = vunpack.c.0.s8 %v3287
      %v3289 = vperm.slane %v3281, %v3288
      %v3290 = vrot.slane %v3277, 4
      %v3291 = vsel %vm209, %v3290, %v3265
      %v3292 = vrot.slane %v3265, 4
      %v3293 = vsel %vm209, %v3277, %v3292
      %v3295 = vunpack.c.l.s4 1934713408
      %v3296 = vunpack.c.0.s8 %v3295
      %v3297 = vperm.slane %v3291, %v3296
      %v3299 = vunpack.c.l.s4 1934713408
      %v3300 = vunpack.c.0.s8 %v3299
      %v3301 = vperm.slane %v3293, %v3300
      %v3302 = vrot.slane %v3285, 4
      %v3303 = vsel %vm209, 0.0, %v3302
      %v3304 = vrot.slane %v3289, 4
      %v3305 = vsel %vm209, 0.0, %v3304
      %v3306 = vrot.slane %v3297, 4
      %v3307 = vsel %vm209, 0.0, %v3306
      %v3308 = vrot.slane %v3301, 4
      %v3309 = vsel %vm209, 0.0, %v3308
      %v3310 = vrot.slane %v3233, 4
      %v3311 = vsel %vm209, %v3310, %v3209
      %v3312 = vrot.slane %v3209, 4
      %v3313 = vsel %vm209, %v3233, %v3312
      %v3315 = vunpack.c.l.s4 1983009808
      %v3316 = vunpack.c.0.s8 %v3315
      %v3317 = vperm.slane %v3311, %v3316
      %v3319 = vunpack.c.l.s4 1983009808
      %v3320 = vunpack.c.0.s8 %v3319
      %v3321 = vperm.slane %v3313, %v3320
      %v3322 = vrot.slane %v3245, 4
      %v3323 = vsel %vm209, %v3322, %v3221
      %v3324 = vrot.slane %v3221, 4
      %v3325 = vsel %vm209, %v3245, %v3324
      %v3327 = vunpack.c.l.s4 1983009808
      %v3328 = vunpack.c.0.s8 %v3327
      %v3329 = vperm.slane %v3323, %v3328
      %v3331 = vunpack.c.l.s4 1983009808
      %v3332 = vunpack.c.0.s8 %v3331
      %v3333 = vperm.slane %v3325, %v3332
      %v3334 = vrot.slane %v3329, 4
      %v3335 = vsel %vm209, %v3334, %v3317
      %v3336 = vrot.slane %v3317, 4
      %v3337 = vsel %vm209, %v3329, %v3336
      %v3339 = vunpack.c.l.s4 1934713408
      %v3340 = vunpack.c.0.s8 %v3339
      %v3341 = vperm.slane %v3335, %v3340
      %v3343 = vunpack.c.l.s4 1934713408
      %v3344 = vunpack.c.0.s8 %v3343
      %v3345 = vperm.slane %v3337, %v3344
      %v3346 = vrot.slane %v3333, 4
      %v3347 = vsel %vm209, %v3346, %v3321
      %v3348 = vrot.slane %v3321, 4
      %v3349 = vsel %vm209, %v3333, %v3348
      %v3351 = vunpack.c.l.s4 1934713408
      %v3352 = vunpack.c.0.s8 %v3351
      %v3353 = vperm.slane %v3347, %v3352
      %v3355 = vunpack.c.l.s4 1934713408
      %v3356 = vunpack.c.0.s8 %v3355
      %v3357 = vperm.slane %v3349, %v3356
      %v3358 = vrot.slane %v3341, 4
      %v3359 = vsel %vm209, 0.0, %v3358
      %v3360 = vrot.slane %v3345, 4
      %v3361 = vsel %vm209, 0.0, %v3360
      %v3362 = vrot.slane %v3353, 4
      %v3363 = vsel %vm209, 0.0, %v3362
      %v3364 = vrot.slane %v3357, 4
      %v3365 = vsel %vm209, 0.0, %v3364
      %v3366 = vrot.slane %v3235, 4
      %v3367 = vsel %vm209, %v3366, %v3211
      %v3368 = vrot.slane %v3211, 4
      %v3369 = vsel %vm209, %v3235, %v3368
      %v3371 = vunpack.c.l.s4 1983009808
      %v3372 = vunpack.c.0.s8 %v3371
      %v3373 = vperm.slane %v3367, %v3372
      %v3375 = vunpack.c.l.s4 1983009808
      %v3376 = vunpack.c.0.s8 %v3375
      %v3377 = vperm.slane %v3369, %v3376
      %v3378 = vrot.slane %v3247, 4
      %v3379 = vsel %vm209, %v3378, %v3223
      %v3380 = vrot.slane %v3223, 4
      %v3381 = vsel %vm209, %v3247, %v3380
      %v3383 = vunpack.c.l.s4 1983009808
      %v3384 = vunpack.c.0.s8 %v3383
      %v3385 = vperm.slane %v3379, %v3384
      %v3387 = vunpack.c.l.s4 1983009808
      %v3388 = vunpack.c.0.s8 %v3387
      %v3389 = vperm.slane %v3381, %v3388
      %v3390 = vrot.slane %v3385, 4
      %v3391 = vsel %vm209, %v3390, %v3373
      %v3392 = vrot.slane %v3373, 4
      %v3393 = vsel %vm209, %v3385, %v3392
      %v3395 = vunpack.c.l.s4 1934713408
      %v3396 = vunpack.c.0.s8 %v3395
      %v3397 = vperm.slane %v3391, %v3396
      %v3399 = vunpack.c.l.s4 1934713408
      %v3400 = vunpack.c.0.s8 %v3399
      %v3401 = vperm.slane %v3393, %v3400
      %v3402 = vrot.slane %v3389, 4
      %v3403 = vsel %vm209, %v3402, %v3377
      %v3404 = vrot.slane %v3377, 4
      %v3405 = vsel %vm209, %v3389, %v3404
      %v3407 = vunpack.c.l.s4 1934713408
      %v3408 = vunpack.c.0.s8 %v3407
      %v3409 = vperm.slane %v3403, %v3408
      %v3411 = vunpack.c.l.s4 1934713408
      %v3412 = vunpack.c.0.s8 %v3411
      %v3413 = vperm.slane %v3405, %v3412
      %v3414 = vrot.slane %v3397, 4
      %v3415 = vsel %vm209, 0.0, %v3414
      %v3416 = vrot.slane %v3401, 4
      %v3417 = vsel %vm209, 0.0, %v3416
      %v3418 = vrot.slane %v3409, 4
      %v3419 = vsel %vm209, 0.0, %v3418
      %v3420 = vrot.slane %v3413, 4
      %v3421 = vsel %vm209, 0.0, %v3420
      %v3422 = vrot.slane %v3237, 4
      %v3423 = vsel %vm209, %v3422, %v3213
      %v3424 = vrot.slane %v3213, 4
      %v3425 = vsel %vm209, %v3237, %v3424
      %v3427 = vunpack.c.l.s4 1983009808
      %v3428 = vunpack.c.0.s8 %v3427
      %v3429 = vperm.slane %v3423, %v3428
      %v3431 = vunpack.c.l.s4 1983009808
      %v3432 = vunpack.c.0.s8 %v3431
      %v3433 = vperm.slane %v3425, %v3432
      %v3434 = vrot.slane %v3249, 4
      %v3435 = vsel %vm209, %v3434, %v3225
      %v3436 = vrot.slane %v3225, 4
      %v3437 = vsel %vm209, %v3249, %v3436
      %v3439 = vunpack.c.l.s4 1983009808
      %v3440 = vunpack.c.0.s8 %v3439
      %v3441 = vperm.slane %v3435, %v3440
      %v3443 = vunpack.c.l.s4 1983009808
      %v3444 = vunpack.c.0.s8 %v3443
      %v3445 = vperm.slane %v3437, %v3444
      %v3446 = vrot.slane %v3441, 4
      %v3447 = vsel %vm209, %v3446, %v3429
      %v3448 = vrot.slane %v3429, 4
      %v3449 = vsel %vm209, %v3441, %v3448
      %v3451 = vunpack.c.l.s4 1934713408
      %v3452 = vunpack.c.0.s8 %v3451
      %v3453 = vperm.slane %v3447, %v3452
      %v3455 = vunpack.c.l.s4 1934713408
      %v3456 = vunpack.c.0.s8 %v3455
      %v3457 = vperm.slane %v3449, %v3456
      %v3458 = vrot.slane %v3445, 4
      %v3459 = vsel %vm209, %v3458, %v3433
      %v3460 = vrot.slane %v3433, 4
      %v3461 = vsel %vm209, %v3445, %v3460
      %v3463 = vunpack.c.l.s4 1934713408
      %v3464 = vunpack.c.0.s8 %v3463
      %v3465 = vperm.slane %v3459, %v3464
      %v3467 = vunpack.c.l.s4 1934713408
      %v3468 = vunpack.c.0.s8 %v3467
      %v3469 = vperm.slane %v3461, %v3468
      %v3470 = vrot.slane %v3453, 4
      %v3471 = vsel %vm209, 0.0, %v3470
      %v3472 = vrot.slane %v3457, 4
      %v3473 = vsel %vm209, 0.0, %v3472
      %v3474 = vrot.slane %v3465, 4
      %v3475 = vsel %vm209, 0.0, %v3474
      %v3476 = vrot.slane %v3469, 4
      %v3477 = vsel %vm209, 0.0, %v3476
      %3478 = vxpose.xlu0.b32.start [1/16] %v3285, 128
      %3479 = vxpose.xlu0.b32.cont [2/16] 0.0, 128
      %3480 = vxpose.xlu0.b32.cont [3/16] 0.0, 128
      %3481 = vxpose.xlu0.b32.cont [4/16] 0.0, 128
      %3482 = vxpose.xlu0.b32.cont [5/16] 0.0, 128
      %3483 = vxpose.xlu0.b32.cont [6/16] 0.0, 128
      %3484 = vxpose.xlu0.b32.cont [7/16] 0.0, 128
      %3485 = vxpose.xlu0.b32.cont [8/16] 0.0, 128
      %3486 = vxpose.xlu0.b32.cont [9/16] 0.0, 128
      %3487 = vxpose.xlu0.b32.cont [10/16] 0.0, 128
      %3488 = vxpose.xlu0.b32.cont [11/16] 0.0, 128
      %3489 = vxpose.xlu0.b32.cont [12/16] 0.0, 128
      %3490 = vxpose.xlu0.b32.cont [13/16] 0.0, 128
      %3491 = vxpose.xlu0.b32.cont [14/16] 0.0, 128
      %3492 = vxpose.xlu0.b32.cont [15/16] 0.0, 128
      %3493 = vxpose.xlu0.b32.end [16/16] 0.0, 128
      %v3494 = vpop.trf.xlu0
      %v3495 = vpop.trf.xlu0
      %v3496 = vpop.trf.xlu0
      %v3497 = vpop.trf.xlu0
      %v3498 = vpop.trf.xlu0
      %v3499 = vpop.trf.xlu0
      %v3500 = vpop.trf.xlu0
      %v3501 = vpop.trf.xlu0
      %v3502 = vpop.trf.xlu0
      %v3503 = vpop.trf.xlu0
      %v3504 = vpop.trf.xlu0
      %v3505 = vpop.trf.xlu0
      %v3506 = vpop.trf.xlu0
      %v3507 = vpop.trf.xlu0
      %v3508 = vpop.trf.xlu0
      %v3509 = vpop.trf.xlu0
      %3510 = vxpose.xlu0.b32.start [1/16] %v3303, 128
      %3511 = vxpose.xlu0.b32.cont [2/16] 0.0, 128
      %3512 = vxpose.xlu0.b32.cont [3/16] 0.0, 128
      %3513 = vxpose.xlu0.b32.cont [4/16] 0.0, 128
      %3514 = vxpose.xlu0.b32.cont [5/16] 0.0, 128
      %3515 = vxpose.xlu0.b32.cont [6/16] 0.0, 128
      %3516 = vxpose.xlu0.b32.cont [7/16] 0.0, 128
      %3517 = vxpose.xlu0.b32.cont [8/16] 0.0, 128
      %3518 = vxpose.xlu0.b32.cont [9/16] 0.0, 128
      %3519 = vxpose.xlu0.b32.cont [10/16] 0.0, 128
      %3520 = vxpose.xlu0.b32.cont [11/16] 0.0, 128
      %3521 = vxpose.xlu0.b32.cont [12/16] 0.0, 128
      %3522 = vxpose.xlu0.b32.cont [13/16] 0.0, 128
      %3523 = vxpose.xlu0.b32.cont [14/16] 0.0, 128
      %3524 = vxpose.xlu0.b32.cont [15/16] 0.0, 128
      %3525 = vxpose.xlu0.b32.end [16/16] 0.0, 128
      %v3526 = vpop.trf.xlu0
      %v3527 = vpop.trf.xlu0
      %v3528 = vpop.trf.xlu0
      %v3529 = vpop.trf.xlu0
      %v3530 = vpop.trf.xlu0
      %v3531 = vpop.trf.xlu0
      %v3532 = vpop.trf.xlu0
      %v3533 = vpop.trf.xlu0
      %v3534 = vpop.trf.xlu0
      %v3535 = vpop.trf.xlu0
      %v3536 = vpop.trf.xlu0
      %v3537 = vpop.trf.xlu0
      %v3538 = vpop.trf.xlu0
      %v3539 = vpop.trf.xlu0
      %v3540 = vpop.trf.xlu0
      %v3541 = vpop.trf.xlu0
      %3542 = vxpose.xlu0.b32.start [1/16] %v3289, 128
      %3543 = vxpose.xlu0.b32.cont [2/16] 0.0, 128
      %3544 = vxpose.xlu0.b32.cont [3/16] 0.0, 128
      %3545 = vxpose.xlu0.b32.cont [4/16] 0.0, 128
      %3546 = vxpose.xlu0.b32.cont [5/16] 0.0, 128
      %3547 = vxpose.xlu0.b32.cont [6/16] 0.0, 128
      %3548 = vxpose.xlu0.b32.cont [7/16] 0.0, 128
      %3549 = vxpose.xlu0.b32.cont [8/16] 0.0, 128
      %3550 = vxpose.xlu0.b32.cont [9/16] 0.0, 128
      %3551 = vxpose.xlu0.b32.cont [10/16] 0.0, 128
      %3552 = vxpose.xlu0.b32.cont [11/16] 0.0, 128
      %3553 = vxpose.xlu0.b32.cont [12/16] 0.0, 128
      %3554 = vxpose.xlu0.b32.cont [13/16] 0.0, 128
      %3555 = vxpose.xlu0.b32.cont [14/16] 0.0, 128
      %3556 = vxpose.xlu0.b32.cont [15/16] 0.0, 128
      %3557 = vxpose.xlu0.b32.end [16/16] 0.0, 128
      %v3558 = vpop.trf.xlu0
      %v3559 = vpop.trf.xlu0
      %v3560 = vpop.trf.xlu0
      %v3561 = vpop.trf.xlu0
      %v3562 = vpop.trf.xlu0
      %v3563 = vpop.trf.xlu0
      %v3564 = vpop.trf.xlu0
      %v3565 = vpop.trf.xlu0
      %v3566 = vpop.trf.xlu0
      %v3567 = vpop.trf.xlu0
      %v3568 = vpop.trf.xlu0
      %v3569 = vpop.trf.xlu0
      %v3570 = vpop.trf.xlu0
      %v3571 = vpop.trf.xlu0
      %v3572 = vpop.trf.xlu0
      %v3573 = vpop.trf.xlu0
      %3574 = vxpose.xlu0.b32.start [1/16] %v3305, 128
      %3575 = vxpose.xlu0.b32.cont [2/16] 0.0, 128
      %3576 = vxpose.xlu0.b32.cont [3/16] 0.0, 128
      %3577 = vxpose.xlu0.b32.cont [4/16] 0.0, 128
      %3578 = vxpose.xlu0.b32.cont [5/16] 0.0, 128
      %3579 = vxpose.xlu0.b32.cont [6/16] 0.0, 128
      %3580 = vxpose.xlu0.b32.cont [7/16] 0.0, 128
      %3581 = vxpose.xlu0.b32.cont [8/16] 0.0, 128
      %3582 = vxpose.xlu0.b32.cont [9/16] 0.0, 128
      %3583 = vxpose.xlu0.b32.cont [10/16] 0.0, 128
      %3584 = vxpose.xlu0.b32.cont [11/16] 0.0, 128
      %3585 = vxpose.xlu0.b32.cont [12/16] 0.0, 128
      %3586 = vxpose.xlu0.b32.cont [13/16] 0.0, 128
      %3587 = vxpose.xlu0.b32.cont [14/16] 0.0, 128
      %3588 = vxpose.xlu0.b32.cont [15/16] 0.0, 128
      %3589 = vxpose.xlu0.b32.end [16/16] 0.0, 128
      %v3590 = vpop.trf.xlu0
      %v3591 = vpop.trf.xlu0
      %v3592 = vpop.trf.xlu0
      %v3593 = vpop.trf.xlu0
      %v3594 = vpop.trf.xlu0
      %v3595 = vpop.trf.xlu0
      %v3596 = vpop.trf.xlu0
      %v3597 = vpop.trf.xlu0
      %v3598 = vpop.trf.xlu0
      %v3599 = vpop.trf.xlu0
      %v3600 = vpop.trf.xlu0
      %v3601 = vpop.trf.xlu0
      %v3602 = vpop.trf.xlu0
      %v3603 = vpop.trf.xlu0
      %v3604 = vpop.trf.xlu0
      %v3605 = vpop.trf.xlu0
      %3606 = vxpose.xlu0.b32.start [1/16] %v3297, 128
      %3607 = vxpose.xlu0.b32.cont [2/16] 0.0, 128
      %3608 = vxpose.xlu0.b32.cont [3/16] 0.0, 128
      %3609 = vxpose.xlu0.b32.cont [4/16] 0.0, 128
      %3610 = vxpose.xlu0.b32.cont [5/16] 0.0, 128
      %3611 = vxpose.xlu0.b32.cont [6/16] 0.0, 128
      %3612 = vxpose.xlu0.b32.cont [7/16] 0.0, 128
      %3613 = vxpose.xlu0.b32.cont [8/16] 0.0, 128
      %3614 = vxpose.xlu0.b32.cont [9/16] 0.0, 128
      %3615 = vxpose.xlu0.b32.cont [10/16] 0.0, 128
      %3616 = vxpose.xlu0.b32.cont [11/16] 0.0, 128
      %3617 = vxpose.xlu0.b32.cont [12/16] 0.0, 128
      %3618 = vxpose.xlu0.b32.cont [13/16] 0.0, 128
      %3619 = vxpose.xlu0.b32.cont [14/16] 0.0, 128
      %3620 = vxpose.xlu0.b32.cont [15/16] 0.0, 128
      %3621 = vxpose.xlu0.b32.end [16/16] 0.0, 128
      %v3622 = vpop.trf.xlu0
      %v3623 = vpop.trf.xlu0
      %v3624 = vpop.trf.xlu0
      %v3625 = vpop.trf.xlu0
      %v3626 = vpop.trf.xlu0
      %v3627 = vpop.trf.xlu0
      %v3628 = vpop.trf.xlu0
      %v3629 = vpop.trf.xlu0
      %v3630 = vpop.trf.xlu0
      %v3631 = vpop.trf.xlu0
      %v3632 = vpop.trf.xlu0
      %v3633 = vpop.trf.xlu0
      %v3634 = vpop.trf.xlu0
      %v3635 = vpop.trf.xlu0
      %v3636 = vpop.trf.xlu0
      %v3637 = vpop.trf.xlu0
      %3638 = vxpose.xlu0.b32.start [1/16] %v3307, 128
      %3639 = vxpose.xlu0.b32.cont [2/16] 0.0, 128
      %3640 = vxpose.xlu0.b32.cont [3/16] 0.0, 128
      %3641 = vxpose.xlu0.b32.cont [4/16] 0.0, 128
      %3642 = vxpose.xlu0.b32.cont [5/16] 0.0, 128
      %3643 = vxpose.xlu0.b32.cont [6/16] 0.0, 128
      %3644 = vxpose.xlu0.b32.cont [7/16] 0.0, 128
      %3645 = vxpose.xlu0.b32.cont [8/16] 0.0, 128
      %3646 = vxpose.xlu0.b32.cont [9/16] 0.0, 128
      %3647 = vxpose.xlu0.b32.cont [10/16] 0.0, 128
      %3648 = vxpose.xlu0.b32.cont [11/16] 0.0, 128
      %3649 = vxpose.xlu0.b32.cont [12/16] 0.0, 128
      %3650 = vxpose.xlu0.b32.cont [13/16] 0.0, 128
      %3651 = vxpose.xlu0.b32.cont [14/16] 0.0, 128
      %3652 = vxpose.xlu0.b32.cont [15/16] 0.0, 128
      %3653 = vxpose.xlu0.b32.end [16/16] 0.0, 128
      %v3654 = vpop.trf.xlu0
      %v3655 = vpop.trf.xlu0
      %v3656 = vpop.trf.xlu0
      %v3657 = vpop.trf.xlu0
      %v3658 = vpop.trf.xlu0
      %v3659 = vpop.trf.xlu0
      %v3660 = vpop.trf.xlu0
      %v3661 = vpop.trf.xlu0
      %v3662 = vpop.trf.xlu0
      %v3663 = vpop.trf.xlu0
      %v3664 = vpop.trf.xlu0
      %v3665 = vpop.trf.xlu0
      %v3666 = vpop.trf.xlu0
      %v3667 = vpop.trf.xlu0
      %v3668 = vpop.trf.xlu0
      %v3669 = vpop.trf.xlu0
      %3670 = vxpose.xlu0.b32.start [1/16] %v3301, 128
      %3671 = vxpose.xlu0.b32.cont [2/16] 0.0, 128
      %3672 = vxpose.xlu0.b32.cont [3/16] 0.0, 128
      %3673 = vxpose.xlu0.b32.cont [4/16] 0.0, 128
      %3674 = vxpose.xlu0.b32.cont [5/16] 0.0, 128
      %3675 = vxpose.xlu0.b32.cont [6/16] 0.0, 128
      %3676 = vxpose.xlu0.b32.cont [7/16] 0.0, 128
      %3677 = vxpose.xlu0.b32.cont [8/16] 0.0, 128
      %3678 = vxpose.xlu0.b32.cont [9/16] 0.0, 128
      %3679 = vxpose.xlu0.b32.cont [10/16] 0.0, 128
      %3680 = vxpose.xlu0.b32.cont [11/16] 0.0, 128
      %3681 = vxpose.xlu0.b32.cont [12/16] 0.0, 128
      %3682 = vxpose.xlu0.b32.cont [13/16] 0.0, 128
      %3683 = vxpose.xlu0.b32.cont [14/16] 0.0, 128
      %3684 = vxpose.xlu0.b32.cont [15/16] 0.0, 128
      %3685 = vxpose.xlu0.b32.end [16/16] 0.0, 128
      %v3686 = vpop.trf.xlu0
      %v3687 = vpop.trf.xlu0
      %v3688 = vpop.trf.xlu0
      %v3689 = vpop.trf.xlu0
      %v3690 = vpop.trf.xlu0
      %v3691 = vpop.trf.xlu0
      %v3692 = vpop.trf.xlu0
      %v3693 = vpop.trf.xlu0
      %v3694 = vpop.trf.xlu0
      %v3695 = vpop.trf.xlu0
      %v3696 = vpop.trf.xlu0
      %v3697 = vpop.trf.xlu0
      %v3698 = vpop.trf.xlu0
      %v3699 = vpop.trf.xlu0
      %v3700 = vpop.trf.xlu0
      %v3701 = vpop.trf.xlu0
      %3702 = vxpose.xlu0.b32.start [1/16] %v3309, 128
      %3703 = vxpose.xlu0.b32.cont [2/16] 0.0, 128
      %3704 = vxpose.xlu0.b32.cont [3/16] 0.0, 128
      %3705 = vxpose.xlu0.b32.cont [4/16] 0.0, 128
      %3706 = vxpose.xlu0.b32.cont [5/16] 0.0, 128
      %3707 = vxpose.xlu0.b32.cont [6/16] 0.0, 128
      %3708 = vxpose.xlu0.b32.cont [7/16] 0.0, 128
      %3709 = vxpose.xlu0.b32.cont [8/16] 0.0, 128
      %3710 = vxpose.xlu0.b32.cont [9/16] 0.0, 128
      %3711 = vxpose.xlu0.b32.cont [10/16] 0.0, 128
      %3712 = vxpose.xlu0.b32.cont [11/16] 0.0, 128
      %3713 = vxpose.xlu0.b32.cont [12/16] 0.0, 128
      %3714 = vxpose.xlu0.b32.cont [13/16] 0.0, 128
      %3715 = vxpose.xlu0.b32.cont [14/16] 0.0, 128
      %3716 = vxpose.xlu0.b32.cont [15/16] 0.0, 128
      %3717 = vxpose.xlu0.b32.end [16/16] 0.0, 128
      %v3718 = vpop.trf.xlu0
      %v3719 = vpop.trf.xlu0
      %v3720 = vpop.trf.xlu0
      %v3721 = vpop.trf.xlu0
      %v3722 = vpop.trf.xlu0
      %v3723 = vpop.trf.xlu0
      %v3724 = vpop.trf.xlu0
      %v3725 = vpop.trf.xlu0
      %v3726 = vpop.trf.xlu0
      %v3727 = vpop.trf.xlu0
      %v3728 = vpop.trf.xlu0
      %v3729 = vpop.trf.xlu0
      %v3730 = vpop.trf.xlu0
      %v3731 = vpop.trf.xlu0
      %v3732 = vpop.trf.xlu0
      %v3733 = vpop.trf.xlu0
      %3734 = vxpose.xlu0.b32.start [1/16] %v3341, 128
      %3735 = vxpose.xlu0.b32.cont [2/16] 0.0, 128
      %3736 = vxpose.xlu0.b32.cont [3/16] 0.0, 128
      %3737 = vxpose.xlu0.b32.cont [4/16] 0.0, 128
      %3738 = vxpose.xlu0.b32.cont [5/16] 0.0, 128
      %3739 = vxpose.xlu0.b32.cont [6/16] 0.0, 128
      %3740 = vxpose.xlu0.b32.cont [7/16] 0.0, 128
      %3741 = vxpose.xlu0.b32.cont [8/16] 0.0, 128
      %3742 = vxpose.xlu0.b32.cont [9/16] 0.0, 128
      %3743 = vxpose.xlu0.b32.cont [10/16] 0.0, 128
      %3744 = vxpose.xlu0.b32.cont [11/16] 0.0, 128
      %3745 = vxpose.xlu0.b32.cont [12/16] 0.0, 128
      %3746 = vxpose.xlu0.b32.cont [13/16] 0.0, 128
      %3747 = vxpose.xlu0.b32.cont [14/16] 0.0, 128
      %3748 = vxpose.xlu0.b32.cont [15/16] 0.0, 128
      %3749 = vxpose.xlu0.b32.end [16/16] 0.0, 128
      %v3750 = vpop.trf.xlu0
      %v3751 = vpop.trf.xlu0
      %v3752 = vpop.trf.xlu0
      %v3753 = vpop.trf.xlu0
      %v3754 = vpop.trf.xlu0
      %v3755 = vpop.trf.xlu0
      %v3756 = vpop.trf.xlu0
      %v3757 = vpop.trf.xlu0
      %v3758 = vpop.trf.xlu0
      %v3759 = vpop.trf.xlu0
      %v3760 = vpop.trf.xlu0
      %v3761 = vpop.trf.xlu0
      %v3762 = vpop.trf.xlu0
      %v3763 = vpop.trf.xlu0
      %v3764 = vpop.trf.xlu0
      %v3765 = vpop.trf.xlu0
      %3766 = vxpose.xlu0.b32.start [1/16] %v3359, 128
      %3767 = vxpose.xlu0.b32.cont [2/16] 0.0, 128
      %3768 = vxpose.xlu0.b32.cont [3/16] 0.0, 128
      %3769 = vxpose.xlu0.b32.cont [4/16] 0.0, 128
      %3770 = vxpose.xlu0.b32.cont [5/16] 0.0, 128
      %3771 = vxpose.xlu0.b32.cont [6/16] 0.0, 128
      %3772 = vxpose.xlu0.b32.cont [7/16] 0.0, 128
      %3773 = vxpose.xlu0.b32.cont [8/16] 0.0, 128
      %3774 = vxpose.xlu0.b32.cont [9/16] 0.0, 128
      %3775 = vxpose.xlu0.b32.cont [10/16] 0.0, 128
      %3776 = vxpose.xlu0.b32.cont [11/16] 0.0, 128
      %3777 = vxpose.xlu0.b32.cont [12/16] 0.0, 128
      %3778 = vxpose.xlu0.b32.cont [13/16] 0.0, 128
      %3779 = vxpose.xlu0.b32.cont [14/16] 0.0, 128
      %3780 = vxpose.xlu0.b32.cont [15/16] 0.0, 128
      %3781 = vxpose.xlu0.b32.end [16/16] 0.0, 128
      %v3782 = vpop.trf.xlu0
      %v3783 = vpop.trf.xlu0
      %v3784 = vpop.trf.xlu0
      %v3785 = vpop.trf.xlu0
      %v3786 = vpop.trf.xlu0
      %v3787 = vpop.trf.xlu0
      %v3788 = vpop.trf.xlu0
      %v3789 = vpop.trf.xlu0
      %v3790 = vpop.trf.xlu0
      %v3791 = vpop.trf.xlu0
      %v3792 = vpop.trf.xlu0
      %v3793 = vpop.trf.xlu0
      %v3794 = vpop.trf.xlu0
      %v3795 = vpop.trf.xlu0
      %v3796 = vpop.trf.xlu0
      %v3797 = vpop.trf.xlu0
      %3798 = vxpose.xlu0.b32.start [1/16] %v3345, 128
      %3799 = vxpose.xlu0.b32.cont [2/16] 0.0, 128
      %3800 = vxpose.xlu0.b32.cont [3/16] 0.0, 128
      %3801 = vxpose.xlu0.b32.cont [4/16] 0.0, 128
      %3802 = vxpose.xlu0.b32.cont [5/16] 0.0, 128
      %3803 = vxpose.xlu0.b32.cont [6/16] 0.0, 128
      %3804 = vxpose.xlu0.b32.cont [7/16] 0.0, 128
      %3805 = vxpose.xlu0.b32.cont [8/16] 0.0, 128
      %3806 = vxpose.xlu0.b32.cont [9/16] 0.0, 128
      %3807 = vxpose.xlu0.b32.cont [10/16] 0.0, 128
      %3808 = vxpose.xlu0.b32.cont [11/16] 0.0, 128
      %3809 = vxpose.xlu0.b32.cont [12/16] 0.0, 128
      %3810 = vxpose.xlu0.b32.cont [13/16] 0.0, 128
      %3811 = vxpose.xlu0.b32.cont [14/16] 0.0, 128
      %3812 = vxpose.xlu0.b32.cont [15/16] 0.0, 128
      %3813 = vxpose.xlu0.b32.end [16/16] 0.0, 128
      %v3814 = vpop.trf.xlu0
      %v3815 = vpop.trf.xlu0
      %v3816 = vpop.trf.xlu0
      %v3817 = vpop.trf.xlu0
      %v3818 = vpop.trf.xlu0
      %v3819 = vpop.trf.xlu0
      %v3820 = vpop.trf.xlu0
      %v3821 = vpop.trf.xlu0
      %v3822 = vpop.trf.xlu0
      %v3823 = vpop.trf.xlu0
      %v3824 = vpop.trf.xlu0
      %v3825 = vpop.trf.xlu0
      %v3826 = vpop.trf.xlu0
      %v3827 = vpop.trf.xlu0
      %v3828 = vpop.trf.xlu0
      %v3829 = vpop.trf.xlu0
      %3830 = vxpose.xlu0.b32.start [1/16] %v3361, 128
      %3831 = vxpose.xlu0.b32.cont [2/16] 0.0, 128
      %3832 = vxpose.xlu0.b32.cont [3/16] 0.0, 128
      %3833 = vxpose.xlu0.b32.cont [4/16] 0.0, 128
      %3834 = vxpose.xlu0.b32.cont [5/16] 0.0, 128
      %3835 = vxpose.xlu0.b32.cont [6/16] 0.0, 128
      %3836 = vxpose.xlu0.b32.cont [7/16] 0.0, 128
      %3837 = vxpose.xlu0.b32.cont [8/16] 0.0, 128
      %3838 = vxpose.xlu0.b32.cont [9/16] 0.0, 128
      %3839 = vxpose.xlu0.b32.cont [10/16] 0.0, 128
      %3840 = vxpose.xlu0.b32.cont [11/16] 0.0, 128
      %3841 = vxpose.xlu0.b32.cont [12/16] 0.0, 128
      %3842 = vxpose.xlu0.b32.cont [13/16] 0.0, 128
      %3843 = vxpose.xlu0.b32.cont [14/16] 0.0, 128
      %3844 = vxpose.xlu0.b32.cont [15/16] 0.0, 128
      %3845 = vxpose.xlu0.b32.end [16/16] 0.0, 128
      %v3846 = vpop.trf.xlu0
      %v3847 = vpop.trf.xlu0
      %v3848 = vpop.trf.xlu0
      %v3849 = vpop.trf.xlu0
      %v3850 = vpop.trf.xlu0
      %v3851 = vpop.trf.xlu0
      %v3852 = vpop.trf.xlu0
      %v3853 = vpop.trf.xlu0
      %v3854 = vpop.trf.xlu0
      %v3855 = vpop.trf.xlu0
      %v3856 = vpop.trf.xlu0
      %v3857 = vpop.trf.xlu0
      %v3858 = vpop.trf.xlu0
      %v3859 = vpop.trf.xlu0
      %v3860 = vpop.trf.xlu0
      %v3861 = vpop.trf.xlu0
      %3862 = vxpose.xlu0.b32.start [1/16] %v3353, 128
      %3863 = vxpose.xlu0.b32.cont [2/16] 0.0, 128
      %3864 = vxpose.xlu0.b32.cont [3/16] 0.0, 128
      %3865 = vxpose.xlu0.b32.cont [4/16] 0.0, 128
      %3866 = vxpose.xlu0.b32.cont [5/16] 0.0, 128
      %3867 = vxpose.xlu0.b32.cont [6/16] 0.0, 128
      %3868 = vxpose.xlu0.b32.cont [7/16] 0.0, 128
      %3869 = vxpose.xlu0.b32.cont [8/16] 0.0, 128
      %3870 = vxpose.xlu0.b32.cont [9/16] 0.0, 128
      %3871 = vxpose.xlu0.b32.cont [10/16] 0.0, 128
      %3872 = vxpose.xlu0.b32.cont [11/16] 0.0, 128
      %3873 = vxpose.xlu0.b32.cont [12/16] 0.0, 128
      %3874 = vxpose.xlu0.b32.cont [13/16] 0.0, 128
      %3875 = vxpose.xlu0.b32.cont [14/16] 0.0, 128
      %3876 = vxpose.xlu0.b32.cont [15/16] 0.0, 128
      %3877 = vxpose.xlu0.b32.end [16/16] 0.0, 128
      %v3878 = vpop.trf.xlu0
      %v3879 = vpop.trf.xlu0
      %v3880 = vpop.trf.xlu0
      %v3881 = vpop.trf.xlu0
      %v3882 = vpop.trf.xlu0
      %v3883 = vpop.trf.xlu0
      %v3884 = vpop.trf.xlu0
      %v3885 = vpop.trf.xlu0
      %v3886 = vpop.trf.xlu0
      %v3887 = vpop.trf.xlu0
      %v3888 = vpop.trf.xlu0
      %v3889 = vpop.trf.xlu0
      %v3890 = vpop.trf.xlu0
      %v3891 = vpop.trf.xlu0
      %v3892 = vpop.trf.xlu0
      %v3893 = vpop.trf.xlu0
      %3894 = vxpose.xlu0.b32.start [1/16] %v3363, 128
      %3895 = vxpose.xlu0.b32.cont [2/16] 0.0, 128
      %3896 = vxpose.xlu0.b32.cont [3/16] 0.0, 128
      %3897 = vxpose.xlu0.b32.cont [4/16] 0.0, 128
      %3898 = vxpose.xlu0.b32.cont [5/16] 0.0, 128
      %3899 = vxpose.xlu0.b32.cont [6/16] 0.0, 128
      %3900 = vxpose.xlu0.b32.cont [7/16] 0.0, 128
      %3901 = vxpose.xlu0.b32.cont [8/16] 0.0, 128
      %3902 = vxpose.xlu0.b32.cont [9/16] 0.0, 128
      %3903 = vxpose.xlu0.b32.cont [10/16] 0.0, 128
      %3904 = vxpose.xlu0.b32.cont [11/16] 0.0, 128
      %3905 = vxpose.xlu0.b32.cont [12/16] 0.0, 128
      %3906 = vxpose.xlu0.b32.cont [13/16] 0.0, 128
      %3907 = vxpose.xlu0.b32.cont [14/16] 0.0, 128
      %3908 = vxpose.xlu0.b32.cont [15/16] 0.0, 128
      %3909 = vxpose.xlu0.b32.end [16/16] 0.0, 128
      %v3910 = vpop.trf.xlu0
      %v3911 = vpop.trf.xlu0
      %v3912 = vpop.trf.xlu0
      %v3913 = vpop.trf.xlu0
      %v3914 = vpop.trf.xlu0
      %v3915 = vpop.trf.xlu0
      %v3916 = vpop.trf.xlu0
      %v3917 = vpop.trf.xlu0
      %v3918 = vpop.trf.xlu0
      %v3919 = vpop.trf.xlu0
      %v3920 = vpop.trf.xlu0
      %v3921 = vpop.trf.xlu0
      %v3922 = vpop.trf.xlu0
      %v3923 = vpop.trf.xlu0
      %v3924 = vpop.trf.xlu0
      %v3925 = vpop.trf.xlu0
      %3926 = vxpose.xlu0.b32.start [1/16] %v3357, 128
      %3927 = vxpose.xlu0.b32.cont [2/16] 0.0, 128
      %3928 = vxpose.xlu0.b32.cont [3/16] 0.0, 128
      %3929 = vxpose.xlu0.b32.cont [4/16] 0.0, 128
      %3930 = vxpose.xlu0.b32.cont [5/16] 0.0, 128
      %3931 = vxpose.xlu0.b32.cont [6/16] 0.0, 128
      %3932 = vxpose.xlu0.b32.cont [7/16] 0.0, 128
      %3933 = vxpose.xlu0.b32.cont [8/16] 0.0, 128
      %3934 = vxpose.xlu0.b32.cont [9/16] 0.0, 128
      %3935 = vxpose.xlu0.b32.cont [10/16] 0.0, 128
      %3936 = vxpose.xlu0.b32.cont [11/16] 0.0, 128
      %3937 = vxpose.xlu0.b32.cont [12/16] 0.0, 128
      %3938 = vxpose.xlu0.b32.cont [13/16] 0.0, 128
      %3939 = vxpose.xlu0.b32.cont [14/16] 0.0, 128
      %3940 = vxpose.xlu0.b32.cont [15/16] 0.0, 128
      %3941 = vxpose.xlu0.b32.end [16/16] 0.0, 128
      %v3942 = vpop.trf.xlu0
      %v3943 = vpop.trf.xlu0
      %v3944 = vpop.trf.xlu0
      %v3945 = vpop.trf.xlu0
      %v3946 = vpop.trf.xlu0
      %v3947 = vpop.trf.xlu0
      %v3948 = vpop.trf.xlu0
      %v3949 = vpop.trf.xlu0
      %v3950 = vpop.trf.xlu0
      %v3951 = vpop.trf.xlu0
      %v3952 = vpop.trf.xlu0
      %v3953 = vpop.trf.xlu0
      %v3954 = vpop.trf.xlu0
      %v3955 = vpop.trf.xlu0
      %v3956 = vpop.trf.xlu0
      %v3957 = vpop.trf.xlu0
      %3958 = vxpose.xlu0.b32.start [1/16] %v3365, 128
      %3959 = vxpose.xlu0.b32.cont [2/16] 0.0, 128
      %3960 = vxpose.xlu0.b32.cont [3/16] 0.0, 128
      %3961 = vxpose.xlu0.b32.cont [4/16] 0.0, 128
      %3962 = vxpose.xlu0.b32.cont [5/16] 0.0, 128
      %3963 = vxpose.xlu0.b32.cont [6/16] 0.0, 128
      %3964 = vxpose.xlu0.b32.cont [7/16] 0.0, 128
      %3965 = vxpose.xlu0.b32.cont [8/16] 0.0, 128
      %3966 = vxpose.xlu0.b32.cont [9/16] 0.0, 128
      %3967 = vxpose.xlu0.b32.cont [10/16] 0.0, 128
      %3968 = vxpose.xlu0.b32.cont [11/16] 0.0, 128
      %3969 = vxpose.xlu0.b32.cont [12/16] 0.0, 128
      %3970 = vxpose.xlu0.b32.cont [13/16] 0.0, 128
      %3971 = vxpose.xlu0.b32.cont [14/16] 0.0, 128
      %3972 = vxpose.xlu0.b32.cont [15/16] 0.0, 128
      %3973 = vxpose.xlu0.b32.end [16/16] 0.0, 128
      %v3974 = vpop.trf.xlu0
      %v3975 = vpop.trf.xlu0
      %v3976 = vpop.trf.xlu0
      %v3977 = vpop.trf.xlu0
      %v3978 = vpop.trf.xlu0
      %v3979 = vpop.trf.xlu0
      %v3980 = vpop.trf.xlu0
      %v3981 = vpop.trf.xlu0
      %v3982 = vpop.trf.xlu0
      %v3983 = vpop.trf.xlu0
      %v3984 = vpop.trf.xlu0
      %v3985 = vpop.trf.xlu0
      %v3986 = vpop.trf.xlu0
      %v3987 = vpop.trf.xlu0
      %v3988 = vpop.trf.xlu0
      %v3989 = vpop.trf.xlu0
      %3990 = vxpose.xlu0.b32.start [1/16] %v3397, 128
      %3991 = vxpose.xlu0.b32.cont [2/16] 0.0, 128
      %3992 = vxpose.xlu0.b32.cont [3/16] 0.0, 128
      %3993 = vxpose.xlu0.b32.cont [4/16] 0.0, 128
      %3994 = vxpose.xlu0.b32.cont [5/16] 0.0, 128
      %3995 = vxpose.xlu0.b32.cont [6/16] 0.0, 128
      %3996 = vxpose.xlu0.b32.cont [7/16] 0.0, 128
      %3997 = vxpose.xlu0.b32.cont [8/16] 0.0, 128
      %3998 = vxpose.xlu0.b32.cont [9/16] 0.0, 128
      %3999 = vxpose.xlu0.b32.cont [10/16] 0.0, 128
      %4000 = vxpose.xlu0.b32.cont [11/16] 0.0, 128
      %4001 = vxpose.xlu0.b32.cont [12/16] 0.0, 128
      %4002 = vxpose.xlu0.b32.cont [13/16] 0.0, 128
      %4003 = vxpose.xlu0.b32.cont [14/16] 0.0, 128
      %4004 = vxpose.xlu0.b32.cont [15/16] 0.0, 128
      %4005 = vxpose.xlu0.b32.end [16/16] 0.0, 128
      %v4006 = vpop.trf.xlu0
      %v4007 = vpop.trf.xlu0
      %v4008 = vpop.trf.xlu0
      %v4009 = vpop.trf.xlu0
      %v4010 = vpop.trf.xlu0
      %v4011 = vpop.trf.xlu0
      %v4012 = vpop.trf.xlu0
      %v4013 = vpop.trf.xlu0
      %v4014 = vpop.trf.xlu0
      %v4015 = vpop.trf.xlu0
      %v4016 = vpop.trf.xlu0
      %v4017 = vpop.trf.xlu0
      %v4018 = vpop.trf.xlu0
      %v4019 = vpop.trf.xlu0
      %v4020 = vpop.trf.xlu0
      %v4021 = vpop.trf.xlu0
      %4022 = vxpose.xlu0.b32.start [1/16] %v3415, 128
      %4023 = vxpose.xlu0.b32.cont [2/16] 0.0, 128
      %4024 = vxpose.xlu0.b32.cont [3/16] 0.0, 128
      %4025 = vxpose.xlu0.b32.cont [4/16] 0.0, 128
      %4026 = vxpose.xlu0.b32.cont [5/16] 0.0, 128
      %4027 = vxpose.xlu0.b32.cont [6/16] 0.0, 128
      %4028 = vxpose.xlu0.b32.cont [7/16] 0.0, 128
      %4029 = vxpose.xlu0.b32.cont [8/16] 0.0, 128
      %4030 = vxpose.xlu0.b32.cont [9/16] 0.0, 128
      %4031 = vxpose.xlu0.b32.cont [10/16] 0.0, 128
      %4032 = vxpose.xlu0.b32.cont [11/16] 0.0, 128
      %4033 = vxpose.xlu0.b32.cont [12/16] 0.0, 128
      %4034 = vxpose.xlu0.b32.cont [13/16] 0.0, 128
      %4035 = vxpose.xlu0.b32.cont [14/16] 0.0, 128
      %4036 = vxpose.xlu0.b32.cont [15/16] 0.0, 128
      %4037 = vxpose.xlu0.b32.end [16/16] 0.0, 128
      %v4038 = vpop.trf.xlu0
      %v4039 = vpop.trf.xlu0
      %v4040 = vpop.trf.xlu0
      %v4041 = vpop.trf.xlu0
      %v4042 = vpop.trf.xlu0
      %v4043 = vpop.trf.xlu0
      %v4044 = vpop.trf.xlu0
      %v4045 = vpop.trf.xlu0
      %v4046 = vpop.trf.xlu0
      %v4047 = vpop.trf.xlu0
      %v4048 = vpop.trf.xlu0
      %v4049 = vpop.trf.xlu0
      %v4050 = vpop.trf.xlu0
      %v4051 = vpop.trf.xlu0
      %v4052 = vpop.trf.xlu0
      %v4053 = vpop.trf.xlu0
      %4054 = vxpose.xlu0.b32.start [1/16] %v3401, 128
      %4055 = vxpose.xlu0.b32.cont [2/16] 0.0, 128
      %4056 = vxpose.xlu0.b32.cont [3/16] 0.0, 128
      %4057 = vxpose.xlu0.b32.cont [4/16] 0.0, 128
      %4058 = vxpose.xlu0.b32.cont [5/16] 0.0, 128
      %4059 = vxpose.xlu0.b32.cont [6/16] 0.0, 128
      %4060 = vxpose.xlu0.b32.cont [7/16] 0.0, 128
      %4061 = vxpose.xlu0.b32.cont [8/16] 0.0, 128
      %4062 = vxpose.xlu0.b32.cont [9/16] 0.0, 128
      %4063 = vxpose.xlu0.b32.cont [10/16] 0.0, 128
      %4064 = vxpose.xlu0.b32.cont [11/16] 0.0, 128
      %4065 = vxpose.xlu0.b32.cont [12/16] 0.0, 128
      %4066 = vxpose.xlu0.b32.cont [13/16] 0.0, 128
      %4067 = vxpose.xlu0.b32.cont [14/16] 0.0, 128
      %4068 = vxpose.xlu0.b32.cont [15/16] 0.0, 128
      %4069 = vxpose.xlu0.b32.end [16/16] 0.0, 128
      %v4070 = vpop.trf.xlu0
      %v4071 = vpop.trf.xlu0
      %v4072 = vpop.trf.xlu0
      %v4073 = vpop.trf.xlu0
      %v4074 = vpop.trf.xlu0
      %v4075 = vpop.trf.xlu0
      %v4076 = vpop.trf.xlu0
      %v4077 = vpop.trf.xlu0
      %v4078 = vpop.trf.xlu0
      %v4079 = vpop.trf.xlu0
      %v4080 = vpop.trf.xlu0
      %v4081 = vpop.trf.xlu0
      %v4082 = vpop.trf.xlu0
      %v4083 = vpop.trf.xlu0
      %v4084 = vpop.trf.xlu0
      %v4085 = vpop.trf.xlu0
      %4086 = vxpose.xlu0.b32.start [1/16] %v3417, 128
      %4087 = vxpose.xlu0.b32.cont [2/16] 0.0, 128
      %4088 = vxpose.xlu0.b32.cont [3/16] 0.0, 128
      %4089 = vxpose.xlu0.b32.cont [4/16] 0.0, 128
      %4090 = vxpose.xlu0.b32.cont [5/16] 0.0, 128
      %4091 = vxpose.xlu0.b32.cont [6/16] 0.0, 128
      %4092 = vxpose.xlu0.b32.cont [7/16] 0.0, 128
      %4093 = vxpose.xlu0.b32.cont [8/16] 0.0, 128
      %4094 = vxpose.xlu0.b32.cont [9/16] 0.0, 128
      %4095 = vxpose.xlu0.b32.cont [10/16] 0.0, 128
      %4096 = vxpose.xlu0.b32.cont [11/16] 0.0, 128
      %4097 = vxpose.xlu0.b32.cont [12/16] 0.0, 128
      %4098 = vxpose.xlu0.b32.cont [13/16] 0.0, 128
      %4099 = vxpose.xlu0.b32.cont [14/16] 0.0, 128
      %4100 = vxpose.xlu0.b32.cont [15/16] 0.0, 128
      %4101 = vxpose.xlu0.b32.end [16/16] 0.0, 128
      %v4102 = vpop.trf.xlu0
      %v4103 = vpop.trf.xlu0
      %v4104 = vpop.trf.xlu0
      %v4105 = vpop.trf.xlu0
      %v4106 = vpop.trf.xlu0
      %v4107 = vpop.trf.xlu0
      %v4108 = vpop.trf.xlu0
      %v4109 = vpop.trf.xlu0
      %v4110 = vpop.trf.xlu0
      %v4111 = vpop.trf.xlu0
      %v4112 = vpop.trf.xlu0
      %v4113 = vpop.trf.xlu0
      %v4114 = vpop.trf.xlu0
      %v4115 = vpop.trf.xlu0
      %v4116 = vpop.trf.xlu0
      %v4117 = vpop.trf.xlu0
      %4118 = vxpose.xlu0.b32.start [1/16] %v3409, 128
      %4119 = vxpose.xlu0.b32.cont [2/16] 0.0, 128
      %4120 = vxpose.xlu0.b32.cont [3/16] 0.0, 128
      %4121 = vxpose.xlu0.b32.cont [4/16] 0.0, 128
      %4122 = vxpose.xlu0.b32.cont [5/16] 0.0, 128
      %4123 = vxpose.xlu0.b32.cont [6/16] 0.0, 128
      %4124 = vxpose.xlu0.b32.cont [7/16] 0.0, 128
      %4125 = vxpose.xlu0.b32.cont [8/16] 0.0, 128
      %4126 = vxpose.xlu0.b32.cont [9/16] 0.0, 128
      %4127 = vxpose.xlu0.b32.cont [10/16] 0.0, 128
      %4128 = vxpose.xlu0.b32.cont [11/16] 0.0, 128
      %4129 = vxpose.xlu0.b32.cont [12/16] 0.0, 128
      %4130 = vxpose.xlu0.b32.cont [13/16] 0.0, 128
      %4131 = vxpose.xlu0.b32.cont [14/16] 0.0, 128
      %4132 = vxpose.xlu0.b32.cont [15/16] 0.0, 128
      %4133 = vxpose.xlu0.b32.end [16/16] 0.0, 128
      %v4134 = vpop.trf.xlu0
      %v4135 = vpop.trf.xlu0
      %v4136 = vpop.trf.xlu0
      %v4137 = vpop.trf.xlu0
      %v4138 = vpop.trf.xlu0
      %v4139 = vpop.trf.xlu0
      %v4140 = vpop.trf.xlu0
      %v4141 = vpop.trf.xlu0
      %v4142 = vpop.trf.xlu0
      %v4143 = vpop.trf.xlu0
      %v4144 = vpop.trf.xlu0
      %v4145 = vpop.trf.xlu0
      %v4146 = vpop.trf.xlu0
      %v4147 = vpop.trf.xlu0
      %v4148 = vpop.trf.xlu0
      %v4149 = vpop.trf.xlu0
      %4150 = vxpose.xlu0.b32.start [1/16] %v3419, 128
      %4151 = vxpose.xlu0.b32.cont [2/16] 0.0, 128
      %4152 = vxpose.xlu0.b32.cont [3/16] 0.0, 128
      %4153 = vxpose.xlu0.b32.cont [4/16] 0.0, 128
      %4154 = vxpose.xlu0.b32.cont [5/16] 0.0, 128
      %4155 = vxpose.xlu0.b32.cont [6/16] 0.0, 128
      %4156 = vxpose.xlu0.b32.cont [7/16] 0.0, 128
      %4157 = vxpose.xlu0.b32.cont [8/16] 0.0, 128
      %4158 = vxpose.xlu0.b32.cont [9/16] 0.0, 128
      %4159 = vxpose.xlu0.b32.cont [10/16] 0.0, 128
      %4160 = vxpose.xlu0.b32.cont [11/16] 0.0, 128
      %4161 = vxpose.xlu0.b32.cont [12/16] 0.0, 128
      %4162 = vxpose.xlu0.b32.cont [13/16] 0.0, 128
      %4163 = vxpose.xlu0.b32.cont [14/16] 0.0, 128
      %4164 = vxpose.xlu0.b32.cont [15/16] 0.0, 128
      %4165 = vxpose.xlu0.b32.end [16/16] 0.0, 128
      %v4166 = vpop.trf.xlu0
      %v4167 = vpop.trf.xlu0
      %v4168 = vpop.trf.xlu0
      %v4169 = vpop.trf.xlu0
      %v4170 = vpop.trf.xlu0
      %v4171 = vpop.trf.xlu0
      %v4172 = vpop.trf.xlu0
      %v4173 = vpop.trf.xlu0
      %v4174 = vpop.trf.xlu0
      %v4175 = vpop.trf.xlu0
      %v4176 = vpop.trf.xlu0
      %v4177 = vpop.trf.xlu0
      %v4178 = vpop.trf.xlu0
      %v4179 = vpop.trf.xlu0
      %v4180 = vpop.trf.xlu0
      %v4181 = vpop.trf.xlu0
      %4182 = vxpose.xlu0.b32.start [1/16] %v3413, 128
      %4183 = vxpose.xlu0.b32.cont [2/16] 0.0, 128
      %4184 = vxpose.xlu0.b32.cont [3/16] 0.0, 128
      %4185 = vxpose.xlu0.b32.cont [4/16] 0.0, 128
      %4186 = vxpose.xlu0.b32.cont [5/16] 0.0, 128
      %4187 = vxpose.xlu0.b32.cont [6/16] 0.0, 128
      %4188 = vxpose.xlu0.b32.cont [7/16] 0.0, 128
      %4189 = vxpose.xlu0.b32.cont [8/16] 0.0, 128
      %4190 = vxpose.xlu0.b32.cont [9/16] 0.0, 128
      %4191 = vxpose.xlu0.b32.cont [10/16] 0.0, 128
      %4192 = vxpose.xlu0.b32.cont [11/16] 0.0, 128
      %4193 = vxpose.xlu0.b32.cont [12/16] 0.0, 128
      %4194 = vxpose.xlu0.b32.cont [13/16] 0.0, 128
      %4195 = vxpose.xlu0.b32.cont [14/16] 0.0, 128
      %4196 = vxpose.xlu0.b32.cont [15/16] 0.0, 128
      %4197 = vxpose.xlu0.b32.end [16/16] 0.0, 128
      %v4198 = vpop.trf.xlu0
      %v4199 = vpop.trf.xlu0
      %v4200 = vpop.trf.xlu0
      %v4201 = vpop.trf.xlu0
      %v4202 = vpop.trf.xlu0
      %v4203 = vpop.trf.xlu0
      %v4204 = vpop.trf.xlu0
      %v4205 = vpop.trf.xlu0
      %v4206 = vpop.trf.xlu0
      %v4207 = vpop.trf.xlu0
      %v4208 = vpop.trf.xlu0
      %v4209 = vpop.trf.xlu0
      %v4210 = vpop.trf.xlu0
      %v4211 = vpop.trf.xlu0
      %v4212 = vpop.trf.xlu0
      %v4213 = vpop.trf.xlu0
      %4214 = vxpose.xlu0.b32.start [1/16] %v3421, 128
      %4215 = vxpose.xlu0.b32.cont [2/16] 0.0, 128
      %4216 = vxpose.xlu0.b32.cont [3/16] 0.0, 128
      %4217 = vxpose.xlu0.b32.cont [4/16] 0.0, 128
      %4218 = vxpose.xlu0.b32.cont [5/16] 0.0, 128
      %4219 = vxpose.xlu0.b32.cont [6/16] 0.0, 128
      %4220 = vxpose.xlu0.b32.cont [7/16] 0.0, 128
      %4221 = vxpose.xlu0.b32.cont [8/16] 0.0, 128
      %4222 = vxpose.xlu0.b32.cont [9/16] 0.0, 128
      %4223 = vxpose.xlu0.b32.cont [10/16] 0.0, 128
      %4224 = vxpose.xlu0.b32.cont [11/16] 0.0, 128
      %4225 = vxpose.xlu0.b32.cont [12/16] 0.0, 128
      %4226 = vxpose.xlu0.b32.cont [13/16] 0.0, 128
      %4227 = vxpose.xlu0.b32.cont [14/16] 0.0, 128
      %4228 = vxpose.xlu0.b32.cont [15/16] 0.0, 128
      %4229 = vxpose.xlu0.b32.end [16/16] 0.0, 128
      %v4230 = vpop.trf.xlu0
      %v4231 = vpop.trf.xlu0
      %v4232 = vpop.trf.xlu0
      %v4233 = vpop.trf.xlu0
      %v4234 = vpop.trf.xlu0
      %v4235 = vpop.trf.xlu0
      %v4236 = vpop.trf.xlu0
      %v4237 = vpop.trf.xlu0
      %v4238 = vpop.trf.xlu0
      %v4239 = vpop.trf.xlu0
      %v4240 = vpop.trf.xlu0
      %v4241 = vpop.trf.xlu0
      %v4242 = vpop.trf.xlu0
      %v4243 = vpop.trf.xlu0
      %v4244 = vpop.trf.xlu0
      %v4245 = vpop.trf.xlu0
      %4246 = vxpose.xlu0.b32.start [1/16] %v3453, 128
      %4247 = vxpose.xlu0.b32.cont [2/16] 0.0, 128
      %4248 = vxpose.xlu0.b32.cont [3/16] 0.0, 128
      %4249 = vxpose.xlu0.b32.cont [4/16] 0.0, 128
      %4250 = vxpose.xlu0.b32.cont [5/16] 0.0, 128
      %4251 = vxpose.xlu0.b32.cont [6/16] 0.0, 128
      %4252 = vxpose.xlu0.b32.cont [7/16] 0.0, 128
      %4253 = vxpose.xlu0.b32.cont [8/16] 0.0, 128
      %4254 = vxpose.xlu0.b32.cont [9/16] 0.0, 128
      %4255 = vxpose.xlu0.b32.cont [10/16] 0.0, 128
      %4256 = vxpose.xlu0.b32.cont [11/16] 0.0, 128
      %4257 = vxpose.xlu0.b32.cont [12/16] 0.0, 128
      %4258 = vxpose.xlu0.b32.cont [13/16] 0.0, 128
      %4259 = vxpose.xlu0.b32.cont [14/16] 0.0, 128
      %4260 = vxpose.xlu0.b32.cont [15/16] 0.0, 128
      %4261 = vxpose.xlu0.b32.end [16/16] 0.0, 128
      %v4262 = vpop.trf.xlu0
      %v4263 = vpop.trf.xlu0
      %v4264 = vpop.trf.xlu0
      %v4265 = vpop.trf.xlu0
      %v4266 = vpop.trf.xlu0
      %v4267 = vpop.trf.xlu0
      %v4268 = vpop.trf.xlu0
      %v4269 = vpop.trf.xlu0
      %v4270 = vpop.trf.xlu0
      %v4271 = vpop.trf.xlu0
      %v4272 = vpop.trf.xlu0
      %v4273 = vpop.trf.xlu0
      %v4274 = vpop.trf.xlu0
      %v4275 = vpop.trf.xlu0
      %v4276 = vpop.trf.xlu0
      %v4277 = vpop.trf.xlu0
      %4278 = vxpose.xlu0.b32.start [1/16] %v3471, 128
      %4279 = vxpose.xlu0.b32.cont [2/16] 0.0, 128
      %4280 = vxpose.xlu0.b32.cont [3/16] 0.0, 128
      %4281 = vxpose.xlu0.b32.cont [4/16] 0.0, 128
      %4282 = vxpose.xlu0.b32.cont [5/16] 0.0, 128
      %4283 = vxpose.xlu0.b32.cont [6/16] 0.0, 128
      %4284 = vxpose.xlu0.b32.cont [7/16] 0.0, 128
      %4285 = vxpose.xlu0.b32.cont [8/16] 0.0, 128
      %4286 = vxpose.xlu0.b32.cont [9/16] 0.0, 128
      %4287 = vxpose.xlu0.b32.cont [10/16] 0.0, 128
      %4288 = vxpose.xlu0.b32.cont [11/16] 0.0, 128
      %4289 = vxpose.xlu0.b32.cont [12/16] 0.0, 128
      %4290 = vxpose.xlu0.b32.cont [13/16] 0.0, 128
      %4291 = vxpose.xlu0.b32.cont [14/16] 0.0, 128
      %4292 = vxpose.xlu0.b32.cont [15/16] 0.0, 128
      %4293 = vxpose.xlu0.b32.end [16/16] 0.0, 128
      %v4294 = vpop.trf.xlu0
      %v4295 = vpop.trf.xlu0
      %v4296 = vpop.trf.xlu0
      %v4297 = vpop.trf.xlu0
      %v4298 = vpop.trf.xlu0
      %v4299 = vpop.trf.xlu0
      %v4300 = vpop.trf.xlu0
      %v4301 = vpop.trf.xlu0
      %v4302 = vpop.trf.xlu0
      %v4303 = vpop.trf.xlu0
      %v4304 = vpop.trf.xlu0
      %v4305 = vpop.trf.xlu0
      %v4306 = vpop.trf.xlu0
      %v4307 = vpop.trf.xlu0
      %v4308 = vpop.trf.xlu0
      %v4309 = vpop.trf.xlu0
      %4310 = vxpose.xlu0.b32.start [1/16] %v3457, 128
      %4311 = vxpose.xlu0.b32.cont [2/16] 0.0, 128
      %4312 = vxpose.xlu0.b32.cont [3/16] 0.0, 128
      %4313 = vxpose.xlu0.b32.cont [4/16] 0.0, 128
      %4314 = vxpose.xlu0.b32.cont [5/16] 0.0, 128
      %4315 = vxpose.xlu0.b32.cont [6/16] 0.0, 128
      %4316 = vxpose.xlu0.b32.cont [7/16] 0.0, 128
      %4317 = vxpose.xlu0.b32.cont [8/16] 0.0, 128
      %4318 = vxpose.xlu0.b32.cont [9/16] 0.0, 128
      %4319 = vxpose.xlu0.b32.cont [10/16] 0.0, 128
      %4320 = vxpose.xlu0.b32.cont [11/16] 0.0, 128
      %4321 = vxpose.xlu0.b32.cont [12/16] 0.0, 128
      %4322 = vxpose.xlu0.b32.cont [13/16] 0.0, 128
      %4323 = vxpose.xlu0.b32.cont [14/16] 0.0, 128
      %4324 = vxpose.xlu0.b32.cont [15/16] 0.0, 128
      %4325 = vxpose.xlu0.b32.end [16/16] 0.0, 128
      %v4326 = vpop.trf.xlu0
      %v4327 = vpop.trf.xlu0
      %v4328 = vpop.trf.xlu0
      %v4329 = vpop.trf.xlu0
      %v4330 = vpop.trf.xlu0
      %v4331 = vpop.trf.xlu0
      %v4332 = vpop.trf.xlu0
      %v4333 = vpop.trf.xlu0
      %v4334 = vpop.trf.xlu0
      %v4335 = vpop.trf.xlu0
      %v4336 = vpop.trf.xlu0
      %v4337 = vpop.trf.xlu0
      %v4338 = vpop.trf.xlu0
      %v4339 = vpop.trf.xlu0
      %v4340 = vpop.trf.xlu0
      %v4341 = vpop.trf.xlu0
      %4342 = vxpose.xlu0.b32.start [1/16] %v3473, 128
      %4343 = vxpose.xlu0.b32.cont [2/16] 0.0, 128
      %4344 = vxpose.xlu0.b32.cont [3/16] 0.0, 128
      %4345 = vxpose.xlu0.b32.cont [4/16] 0.0, 128
      %4346 = vxpose.xlu0.b32.cont [5/16] 0.0, 128
      %4347 = vxpose.xlu0.b32.cont [6/16] 0.0, 128
      %4348 = vxpose.xlu0.b32.cont [7/16] 0.0, 128
      %4349 = vxpose.xlu0.b32.cont [8/16] 0.0, 128
      %4350 = vxpose.xlu0.b32.cont [9/16] 0.0, 128
      %4351 = vxpose.xlu0.b32.cont [10/16] 0.0, 128
      %4352 = vxpose.xlu0.b32.cont [11/16] 0.0, 128
      %4353 = vxpose.xlu0.b32.cont [12/16] 0.0, 128
      %4354 = vxpose.xlu0.b32.cont [13/16] 0.0, 128
      %4355 = vxpose.xlu0.b32.cont [14/16] 0.0, 128
      %4356 = vxpose.xlu0.b32.cont [15/16] 0.0, 128
      %4357 = vxpose.xlu0.b32.end [16/16] 0.0, 128
      %v4358 = vpop.trf.xlu0
      %v4359 = vpop.trf.xlu0
      %v4360 = vpop.trf.xlu0
      %v4361 = vpop.trf.xlu0
      %v4362 = vpop.trf.xlu0
      %v4363 = vpop.trf.xlu0
      %v4364 = vpop.trf.xlu0
      %v4365 = vpop.trf.xlu0
      %v4366 = vpop.trf.xlu0
      %v4367 = vpop.trf.xlu0
      %v4368 = vpop.trf.xlu0
      %v4369 = vpop.trf.xlu0
      %v4370 = vpop.trf.xlu0
      %v4371 = vpop.trf.xlu0
      %v4372 = vpop.trf.xlu0
      %v4373 = vpop.trf.xlu0
      %4374 = vxpose.xlu0.b32.start [1/16] %v3465, 128
      %4375 = vxpose.xlu0.b32.cont [2/16] 0.0, 128
      %4376 = vxpose.xlu0.b32.cont [3/16] 0.0, 128
      %4377 = vxpose.xlu0.b32.cont [4/16] 0.0, 128
      %4378 = vxpose.xlu0.b32.cont [5/16] 0.0, 128
      %4379 = vxpose.xlu0.b32.cont [6/16] 0.0, 128
      %4380 = vxpose.xlu0.b32.cont [7/16] 0.0, 128
      %4381 = vxpose.xlu0.b32.cont [8/16] 0.0, 128
      %4382 = vxpose.xlu0.b32.cont [9/16] 0.0, 128
      %4383 = vxpose.xlu0.b32.cont [10/16] 0.0, 128
      %4384 = vxpose.xlu0.b32.cont [11/16] 0.0, 128
      %4385 = vxpose.xlu0.b32.cont [12/16] 0.0, 128
      %4386 = vxpose.xlu0.b32.cont [13/16] 0.0, 128
      %4387 = vxpose.xlu0.b32.cont [14/16] 0.0, 128
      %4388 = vxpose.xlu0.b32.cont [15/16] 0.0, 128
      %4389 = vxpose.xlu0.b32.end [16/16] 0.0, 128
      %v4390 = vpop.trf.xlu0
      %v4391 = vpop.trf.xlu0
      %v4392 = vpop.trf.xlu0
      %v4393 = vpop.trf.xlu0
      %v4394 = vpop.trf.xlu0
      %v4395 = vpop.trf.xlu0
      %v4396 = vpop.trf.xlu0
      %v4397 = vpop.trf.xlu0
      %v4398 = vpop.trf.xlu0
      %v4399 = vpop.trf.xlu0
      %v4400 = vpop.trf.xlu0
      %v4401 = vpop.trf.xlu0
      %v4402 = vpop.trf.xlu0
      %v4403 = vpop.trf.xlu0
      %v4404 = vpop.trf.xlu0
      %v4405 = vpop.trf.xlu0
      %4406 = vxpose.xlu0.b32.start [1/16] %v3475, 128
      %4407 = vxpose.xlu0.b32.cont [2/16] 0.0, 128
      %4408 = vxpose.xlu0.b32.cont [3/16] 0.0, 128
      %4409 = vxpose.xlu0.b32.cont [4/16] 0.0, 128
      %4410 = vxpose.xlu0.b32.cont [5/16] 0.0, 128
      %4411 = vxpose.xlu0.b32.cont [6/16] 0.0, 128
      %4412 = vxpose.xlu0.b32.cont [7/16] 0.0, 128
      %4413 = vxpose.xlu0.b32.cont [8/16] 0.0, 128
      %4414 = vxpose.xlu0.b32.cont [9/16] 0.0, 128
      %4415 = vxpose.xlu0.b32.cont [10/16] 0.0, 128
      %4416 = vxpose.xlu0.b32.cont [11/16] 0.0, 128
      %4417 = vxpose.xlu0.b32.cont [12/16] 0.0, 128
      %4418 = vxpose.xlu0.b32.cont [13/16] 0.0, 128
      %4419 = vxpose.xlu0.b32.cont [14/16] 0.0, 128
      %4420 = vxpose.xlu0.b32.cont [15/16] 0.0, 128
      %4421 = vxpose.xlu0.b32.end [16/16] 0.0, 128
      %v4422 = vpop.trf.xlu0
      %v4423 = vpop.trf.xlu0
      %v4424 = vpop.trf.xlu0
      %v4425 = vpop.trf.xlu0
      %v4426 = vpop.trf.xlu0
      %v4427 = vpop.trf.xlu0
      %v4428 = vpop.trf.xlu0
      %v4429 = vpop.trf.xlu0
      %v4430 = vpop.trf.xlu0
      %v4431 = vpop.trf.xlu0
      %v4432 = vpop.trf.xlu0
      %v4433 = vpop.trf.xlu0
      %v4434 = vpop.trf.xlu0
      %v4435 = vpop.trf.xlu0
      %v4436 = vpop.trf.xlu0
      %v4437 = vpop.trf.xlu0
      %4438 = vxpose.xlu0.b32.start [1/16] %v3469, 128
      %4439 = vxpose.xlu0.b32.cont [2/16] 0.0, 128
      %4440 = vxpose.xlu0.b32.cont [3/16] 0.0, 128
      %4441 = vxpose.xlu0.b32.cont [4/16] 0.0, 128
      %4442 = vxpose.xlu0.b32.cont [5/16] 0.0, 128
      %4443 = vxpose.xlu0.b32.cont [6/16] 0.0, 128
      %4444 = vxpose.xlu0.b32.cont [7/16] 0.0, 128
      %4445 = vxpose.xlu0.b32.cont [8/16] 0.0, 128
      %4446 = vxpose.xlu0.b32.cont [9/16] 0.0, 128
      %4447 = vxpose.xlu0.b32.cont [10/16] 0.0, 128
      %4448 = vxpose.xlu0.b32.cont [11/16] 0.0, 128
      %4449 = vxpose.xlu0.b32.cont [12/16] 0.0, 128
      %4450 = vxpose.xlu0.b32.cont [13/16] 0.0, 128
      %4451 = vxpose.xlu0.b32.cont [14/16] 0.0, 128
      %4452 = vxpose.xlu0.b32.cont [15/16] 0.0, 128
      %4453 = vxpose.xlu0.b32.end [16/16] 0.0, 128
      %v4454 = vpop.trf.xlu0
      %v4455 = vpop.trf.xlu0
      %v4456 = vpop.trf.xlu0
      %v4457 = vpop.trf.xlu0
      %v4458 = vpop.trf.xlu0
      %v4459 = vpop.trf.xlu0
      %v4460 = vpop.trf.xlu0
      %v4461 = vpop.trf.xlu0
      %v4462 = vpop.trf.xlu0
      %v4463 = vpop.trf.xlu0
      %v4464 = vpop.trf.xlu0
      %v4465 = vpop.trf.xlu0
      %v4466 = vpop.trf.xlu0
      %v4467 = vpop.trf.xlu0
      %v4468 = vpop.trf.xlu0
      %v4469 = vpop.trf.xlu0
      %4470 = vxpose.xlu0.b32.start [1/16] %v3477, 128
      %4471 = vxpose.xlu0.b32.cont [2/16] 0.0, 128
      %4472 = vxpose.xlu0.b32.cont [3/16] 0.0, 128
      %4473 = vxpose.xlu0.b32.cont [4/16] 0.0, 128
      %4474 = vxpose.xlu0.b32.cont [5/16] 0.0, 128
      %4475 = vxpose.xlu0.b32.cont [6/16] 0.0, 128
      %4476 = vxpose.xlu0.b32.cont [7/16] 0.0, 128
      %4477 = vxpose.xlu0.b32.cont [8/16] 0.0, 128
      %4478 = vxpose.xlu0.b32.cont [9/16] 0.0, 128
      %4479 = vxpose.xlu0.b32.cont [10/16] 0.0, 128
      %4480 = vxpose.xlu0.b32.cont [11/16] 0.0, 128
      %4481 = vxpose.xlu0.b32.cont [12/16] 0.0, 128
      %4482 = vxpose.xlu0.b32.cont [13/16] 0.0, 128
      %4483 = vxpose.xlu0.b32.cont [14/16] 0.0, 128
      %4484 = vxpose.xlu0.b32.cont [15/16] 0.0, 128
      %4485 = vxpose.xlu0.b32.end [16/16] 0.0, 128
      %v4486 = vpop.trf.xlu0
      %v4487 = vpop.trf.xlu0
      %v4488 = vpop.trf.xlu0
      %v4489 = vpop.trf.xlu0
      %v4490 = vpop.trf.xlu0
      %v4491 = vpop.trf.xlu0
      %v4492 = vpop.trf.xlu0
      %v4493 = vpop.trf.xlu0
      %v4494 = vpop.trf.xlu0
      %v4495 = vpop.trf.xlu0
      %v4496 = vpop.trf.xlu0
      %v4497 = vpop.trf.xlu0
      %v4498 = vpop.trf.xlu0
      %v4499 = vpop.trf.xlu0
      %v4500 = vpop.trf.xlu0
      %v4501 = vpop.trf.xlu0
      %v4534 = vrot.slane %v3526, 7
      %v4535 = vsel %vm1490, %v4534, %v3494
      %v4536 = vrot.slane %v3558, 6
      %v4537 = vsel %vm1493, %v4536, %v4535
      %v4538 = vrot.slane %v3590, 5
      %v4539 = vsel %vm1496, %v4538, %v4537
      %v4540 = vrot.slane %v3622, 4
      %v4541 = vsel %vm1499, %v4540, %v4539
      %v4542 = vrot.slane %v3654, 3
      %v4543 = vsel %vm1502, %v4542, %v4541
      %v4544 = vrot.slane %v3686, 2
      %v4545 = vsel %vm1505, %v4544, %v4543
      %v4546 = vrot.slane %v3718, 1
      %v4547 = vsel %vm1508, %v4546, %v4545
      %v4548 = vrot.slane %v3782, 7
      %v4549 = vsel %vm1490, %v4548, %v3750
      %v4550 = vrot.slane %v3814, 6
      %v4551 = vsel %vm1493, %v4550, %v4549
      %v4552 = vrot.slane %v3846, 5
      %v4553 = vsel %vm1496, %v4552, %v4551
      %v4554 = vrot.slane %v3878, 4
      %v4555 = vsel %vm1499, %v4554, %v4553
      %v4556 = vrot.slane %v3910, 3
      %v4557 = vsel %vm1502, %v4556, %v4555
      %v4558 = vrot.slane %v3942, 2
      %v4559 = vsel %vm1505, %v4558, %v4557
      %v4560 = vrot.slane %v3974, 1
      %v4561 = vsel %vm1508, %v4560, %v4559
      %v4562 = vrot.slane %v4038, 7
      %v4563 = vsel %vm1490, %v4562, %v4006
      %v4564 = vrot.slane %v4070, 6
      %v4565 = vsel %vm1493, %v4564, %v4563
      %v4566 = vrot.slane %v4102, 5
      %v4567 = vsel %vm1496, %v4566, %v4565
      %v4568 = vrot.slane %v4134, 4
      %v4569 = vsel %vm1499, %v4568, %v4567
      %v4570 = vrot.slane %v4166, 3
      %v4571 = vsel %vm1502, %v4570, %v4569
      %v4572 = vrot.slane %v4198, 2
      %v4573 = vsel %vm1505, %v4572, %v4571
      %v4574 = vrot.slane %v4230, 1
      %v4575 = vsel %vm1508, %v4574, %v4573
      %v4576 = vrot.slane %v4294, 7
      %v4577 = vsel %vm1490, %v4576, %v4262
      %v4578 = vrot.slane %v4326, 6
      %v4579 = vsel %vm1493, %v4578, %v4577
      %v4580 = vrot.slane %v4358, 5
      %v4581 = vsel %vm1496, %v4580, %v4579
      %v4582 = vrot.slane %v4390, 4
      %v4583 = vsel %vm1499, %v4582, %v4581
      %v4584 = vrot.slane %v4422, 3
      %v4585 = vsel %vm1502, %v4584, %v4583
      %v4586 = vrot.slane %v4454, 2
      %v4587 = vsel %vm1505, %v4586, %v4585
      %v4588 = vrot.slane %v4486, 1
      %v4589 = vsel %vm1508, %v4588, %v4587
      %s4594 = scalar_lea.vmem %s159, 64
      %4595 = vst.msk [vmem:[%s4594] sm:$0xff] %vm1556, %v4547
      %4596 = vst.msk [vmem:[%s4594 + $0x80] sm:$0xff] %vm1556, %v4561
      %4597 = vst.msk [vmem:[%s4594 + $0x100] sm:$0xff] %vm1556, %v4575
      %4598 = vst.msk [vmem:[%s4594 + $0x180] sm:$0xff] %vm1556, %v4589
      %v4599 = vsel %vm1493, %v4534, %v3494
      %v4600 = vsel %vm1496, %v4536, %v4599
      %v4601 = vsel %vm1499, %v4538, %v4600
      %v4602 = vsel %vm1502, %v4540, %v4601
      %v4603 = vsel %vm1505, %v4542, %v4602
      %v4604 = vsel %vm1508, %v4544, %v4603
      %v4605 = vsel %vm1493, %v4548, %v3750
      %v4606 = vsel %vm1496, %v4550, %v4605
      %v4607 = vsel %vm1499, %v4552, %v4606
      %v4608 = vsel %vm1502, %v4554, %v4607
      %v4609 = vsel %vm1505, %v4556, %v4608
      %v4610 = vsel %vm1508, %v4558, %v4609
      %v4611 = vsel %vm1493, %v4562, %v4006
      %v4612 = vsel %vm1496, %v4564, %v4611
      %v4613 = vsel %vm1499, %v4566, %v4612
      %v4614 = vsel %vm1502, %v4568, %v4613
      %v4615 = vsel %vm1505, %v4570, %v4614
      %v4616 = vsel %vm1508, %v4572, %v4615
      %v4617 = vsel %vm1493, %v4576, %v4262
      %v4618 = vsel %vm1496, %v4578, %v4617
      %v4619 = vsel %vm1499, %v4580, %v4618
      %v4620 = vsel %vm1502, %v4582, %v4619
      %v4621 = vsel %vm1505, %v4584, %v4620
      %v4622 = vsel %vm1508, %v4586, %v4621
      %s4631 = scalar_lea.vmem %s159, 72
      %4632 = vst.msk [vmem:[%s4631 - $0x1] sm:$0xfe] %vm1594, %v4604
      %4633 = vst.msk [vmem:[%s4631 + $0x7] sm:$0x1] %vm1596, %v4546
      %4634 = vst.msk [vmem:[%s4631 + $0x7f] sm:$0xfe] %vm1594, %v4610
      %4635 = vst.msk [vmem:[%s4631 + $0x87] sm:$0x1] %vm1596, %v4560
      %4636 = vst.msk [vmem:[%s4631 + $0xff] sm:$0xfe] %vm1594, %v4616
      %4637 = vst.msk [vmem:[%s4631 + $0x107] sm:$0x1] %vm1596, %v4574
      %4638 = vst.msk [vmem:[%s4631 + $0x17f] sm:$0xfe] %vm1594, %v4622
      %4639 = vst.msk [vmem:[%s4631 + $0x187] sm:$0x1] %vm1596, %v4588
      %v4640 = vsel %vm1496, %v4534, %v3494
      %v4641 = vsel %vm1499, %v4536, %v4640
      %v4642 = vsel %vm1502, %v4538, %v4641
      %v4643 = vsel %vm1505, %v4540, %v4642
      %v4644 = vsel %vm1508, %v4542, %v4643
      %v4645 = vsel %vm1490, %v4546, %v4544
      %v4646 = vsel %vm1496, %v4548, %v3750
      %v4647 = vsel %vm1499, %v4550, %v4646
      %v4648 = vsel %vm1502, %v4552, %v4647
      %v4649 = vsel %vm1505, %v4554, %v4648
      %v4650 = vsel %vm1508, %v4556, %v4649
      %v4651 = vsel %vm1490, %v4560, %v4558
      %v4652 = vsel %vm1496, %v4562, %v4006
      %v4653 = vsel %vm1499, %v4564, %v4652
      %v4654 = vsel %vm1502, %v4566, %v4653
      %v4655 = vsel %vm1505, %v4568, %v4654
      %v4656 = vsel %vm1508, %v4570, %v4655
      %v4657 = vsel %vm1490, %v4574, %v4572
      %v4658 = vsel %vm1496, %v4576, %v4262
      %v4659 = vsel %vm1499, %v4578, %v4658
      %v4660 = vsel %vm1502, %v4580, %v4659
      %v4661 = vsel %vm1505, %v4582, %v4660
      %v4662 = vsel %vm1508, %v4584, %v4661
      %v4663 = vsel %vm1490, %v4588, %v4586
      %s4672 = scalar_lea.vmem %s159, 80
      %4673 = vst.msk [vmem:[%s4672 - $0x2] sm:$0xfc] %vm1637, %v4644
      %4674 = vst.msk [vmem:[%s4672 + $0x6] sm:$0x3] %vm1639, %v4645
      %4675 = vst.msk [vmem:[%s4672 + $0x7e] sm:$0xfc] %vm1637, %v4650
      %4676 = vst.msk [vmem:[%s4672 + $0x86] sm:$0x3] %vm1639, %v4651
      %4677 = vst.msk [vmem:[%s4672 + $0xfe] sm:$0xfc] %vm1637, %v4656
      %4678 = vst.msk [vmem:[%s4672 + $0x106] sm:$0x3] %vm1639, %v4657
      %4679 = vst.msk [vmem:[%s4672 + $0x17e] sm:$0xfc] %vm1637, %v4662
      %4680 = vst.msk [vmem:[%s4672 + $0x186] sm:$0x3] %vm1639, %v4663
      %v4681 = vsel %vm1499, %v4534, %v3494
      %v4682 = vsel %vm1502, %v4536, %v4681
      %v4683 = vsel %vm1505, %v4538, %v4682
      %v4684 = vsel %vm1508, %v4540, %v4683
      %v4685 = vsel %vm1490, %v4544, %v4542
      %v4686 = vsel %vm1493, %v4546, %v4685
      %v4687 = vsel %vm1499, %v4548, %v3750
      %v4688 = vsel %vm1502, %v4550, %v4687
      %v4689 = vsel %vm1505, %v4552, %v4688
      %v4690 = vsel %vm1508, %v4554, %v4689
      %v4691 = vsel %vm1490, %v4558, %v4556
      %v4692 = vsel %vm1493, %v4560, %v4691
      %v4693 = vsel %vm1499, %v4562, %v4006
      %v4694 = vsel %vm1502, %v4564, %v4693
      %v4695 = vsel %vm1505, %v4566, %v4694
      %v4696 = vsel %vm1508, %v4568, %v4695
      %v4697 = vsel %vm1490, %v4572, %v4570
      %v4698 = vsel %vm1493, %v4574, %v4697
      %v4699 = vsel %vm1499, %v4576, %v4262
      %v4700 = vsel %vm1502, %v4578, %v4699
      %v4701 = vsel %vm1505, %v4580, %v4700
      %v4702 = vsel %vm1508, %v4582, %v4701
      %v4703 = vsel %vm1490, %v4586, %v4584
      %v4704 = vsel %vm1493, %v4588, %v4703
      %s4713 = scalar_lea.vmem %s159, 88
      %4714 = vst.msk [vmem:[%s4713 - $0x3] sm:$0xf8] %vm1680, %v4684
      %4715 = vst.msk [vmem:[%s4713 + $0x5] sm:$0x7] %vm1682, %v4686
      %4716 = vst.msk [vmem:[%s4713 + $0x7d] sm:$0xf8] %vm1680, %v4690
      %4717 = vst.msk [vmem:[%s4713 + $0x85] sm:$0x7] %vm1682, %v4692
      %4718 = vst.msk [vmem:[%s4713 + $0xfd] sm:$0xf8] %vm1680, %v4696
      %4719 = vst.msk [vmem:[%s4713 + $0x105] sm:$0x7] %vm1682, %v4698
      %4720 = vst.msk [vmem:[%s4713 + $0x17d] sm:$0xf8] %vm1680, %v4702
      %4721 = vst.msk [vmem:[%s4713 + $0x185] sm:$0x7] %vm1682, %v4704
      %s4722 = scalar_lea.vmem %s148, 3
      %v4723 = vld [vmem:[%s4722] ss:$4 sm:$0xff]
      %s4724 = scalar_lea.vmem %s148, 35
      %v4725 = vld [vmem:[%s4724] ss:$4 sm:$0xff]
      %s4726 = scalar_lea.vmem %s148, 67
      %v4727 = vld [vmem:[%s4726] ss:$4 sm:$0xff]
      %s4728 = scalar_lea.vmem %s148, 99
      %v4729 = vld [vmem:[%s4728] ss:$4 sm:$0xff]
      %4734 = vrot.lane.b32.xlu0 %v4723, 124
      %v4735 = vpop.permute.xlu0 %4734
      %4736 = vrot.lane.b32.xlu0 %v4725, 124
      %v4737 = vpop.permute.xlu0 %4736
      %4738 = vrot.lane.b32.xlu0 %v4727, 124
      %v4739 = vpop.permute.xlu0 %4738
      %4740 = vrot.lane.b32.xlu0 %v4729, 124
      %v4741 = vpop.permute.xlu0 %4740
      %4746 = vrot.lane.b32.xlu0 %v4723, 120
      %v4747 = vpop.permute.xlu0 %4746
      %4748 = vrot.lane.b32.xlu0 %v4725, 120
      %v4749 = vpop.permute.xlu0 %4748
      %4750 = vrot.lane.b32.xlu0 %v4727, 120
      %v4751 = vpop.permute.xlu0 %4750
      %4752 = vrot.lane.b32.xlu0 %v4729, 120
      %v4753 = vpop.permute.xlu0 %4752
      %4758 = vrot.lane.b32.xlu0 %v4723, 116
      %v4759 = vpop.permute.xlu0 %4758
      %4760 = vrot.lane.b32.xlu0 %v4725, 116
      %v4761 = vpop.permute.xlu0 %4760
      %4762 = vrot.lane.b32.xlu0 %v4727, 116
      %v4763 = vpop.permute.xlu0 %4762
      %4764 = vrot.lane.b32.xlu0 %v4729, 116
      %v4765 = vpop.permute.xlu0 %4764
      %v4770 = vrot.slane %v4747, 4
      %v4771 = vsel %vm209, %v4770, %v4723
      %v4772 = vrot.slane %v4723, 4
      %v4773 = vsel %vm209, %v4747, %v4772
      %v4775 = vunpack.c.l.s4 1983009808
      %v4776 = vunpack.c.0.s8 %v4775
      %v4777 = vperm.slane %v4771, %v4776
      %v4779 = vunpack.c.l.s4 1983009808
      %v4780 = vunpack.c.0.s8 %v4779
      %v4781 = vperm.slane %v4773, %v4780
      %v4782 = vrot.slane %v4759, 4
      %v4783 = vsel %vm209, %v4782, %v4735
      %v4784 = vrot.slane %v4735, 4
      %v4785 = vsel %vm209, %v4759, %v4784
      %v4787 = vunpack.c.l.s4 1983009808
      %v4788 = vunpack.c.0.s8 %v4787
      %v4789 = vperm.slane %v4783, %v4788
      %v4791 = vunpack.c.l.s4 1983009808
      %v4792 = vunpack.c.0.s8 %v4791
      %v4793 = vperm.slane %v4785, %v4792
      %v4794 = vrot.slane %v4789, 4
      %v4795 = vsel %vm209, %v4794, %v4777
      %v4796 = vrot.slane %v4777, 4
      %v4797 = vsel %vm209, %v4789, %v4796
      %v4799 = vunpack.c.l.s4 1934713408
      %v4800 = vunpack.c.0.s8 %v4799
      %v4801 = vperm.slane %v4795, %v4800
      %v4803 = vunpack.c.l.s4 1934713408
      %v4804 = vunpack.c.0.s8 %v4803
      %v4805 = vperm.slane %v4797, %v4804
      %v4806 = vrot.slane %v4793, 4
      %v4807 = vsel %vm209, %v4806, %v4781
      %v4808 = vrot.slane %v4781, 4
      %v4809 = vsel %vm209, %v4793, %v4808
      %v4811 = vunpack.c.l.s4 1934713408
      %v4812 = vunpack.c.0.s8 %v4811
      %v4813 = vperm.slane %v4807, %v4812
      %v4815 = vunpack.c.l.s4 1934713408
      %v4816 = vunpack.c.0.s8 %v4815
      %v4817 = vperm.slane %v4809, %v4816
      %v4818 = vrot.slane %v4801, 4
      %v4819 = vsel %vm209, 0.0, %v4818
      %v4820 = vrot.slane %v4805, 4
      %v4821 = vsel %vm209, 0.0, %v4820
      %v4822 = vrot.slane %v4813, 4
      %v4823 = vsel %vm209, 0.0, %v4822
      %v4824 = vrot.slane %v4817, 4
      %v4825 = vsel %vm209, 0.0, %v4824
      %v4826 = vrot.slane %v4749, 4
      %v4827 = vsel %vm209, %v4826, %v4725
      %v4828 = vrot.slane %v4725, 4
      %v4829 = vsel %vm209, %v4749, %v4828
      %v4831 = vunpack.c.l.s4 1983009808
      %v4832 = vunpack.c.0.s8 %v4831
      %v4833 = vperm.slane %v4827, %v4832
      %v4835 = vunpack.c.l.s4 1983009808
      %v4836 = vunpack.c.0.s8 %v4835
      %v4837 = vperm.slane %v4829, %v4836
      %v4838 = vrot.slane %v4761, 4
      %v4839 = vsel %vm209, %v4838, %v4737
      %v4840 = vrot.slane %v4737, 4
      %v4841 = vsel %vm209, %v4761, %v4840
      %v4843 = vunpack.c.l.s4 1983009808
      %v4844 = vunpack.c.0.s8 %v4843
      %v4845 = vperm.slane %v4839, %v4844
      %v4847 = vunpack.c.l.s4 1983009808
      %v4848 = vunpack.c.0.s8 %v4847
      %v4849 = vperm.slane %v4841, %v4848
      %v4850 = vrot.slane %v4845, 4
      %v4851 = vsel %vm209, %v4850, %v4833
      %v4852 = vrot.slane %v4833, 4
      %v4853 = vsel %vm209, %v4845, %v4852
      %v4855 = vunpack.c.l.s4 1934713408
      %v4856 = vunpack.c.0.s8 %v4855
      %v4857 = vperm.slane %v4851, %v4856
      %v4859 = vunpack.c.l.s4 1934713408
      %v4860 = vunpack.c.0.s8 %v4859
      %v4861 = vperm.slane %v4853, %v4860
      %v4862 = vrot.slane %v4849, 4
      %v4863 = vsel %vm209, %v4862, %v4837
      %v4864 = vrot.slane %v4837, 4
      %v4865 = vsel %vm209, %v4849, %v4864
      %v4867 = vunpack.c.l.s4 1934713408
      %v4868 = vunpack.c.0.s8 %v4867
      %v4869 = vperm.slane %v4863, %v4868
      %v4871 = vunpack.c.l.s4 1934713408
      %v4872 = vunpack.c.0.s8 %v4871
      %v4873 = vperm.slane %v4865, %v4872
      %v4874 = vrot.slane %v4857, 4
      %v4875 = vsel %vm209, 0.0, %v4874
      %v4876 = vrot.slane %v4861, 4
      %v4877 = vsel %vm209, 0.0, %v4876
      %v4878 = vrot.slane %v4869, 4
      %v4879 = vsel %vm209, 0.0, %v4878
      %v4880 = vrot.slane %v4873, 4
      %v4881 = vsel %vm209, 0.0, %v4880
      %v4882 = vrot.slane %v4751, 4
      %v4883 = vsel %vm209, %v4882, %v4727
      %v4884 = vrot.slane %v4727, 4
      %v4885 = vsel %vm209, %v4751, %v4884
      %v4887 = vunpack.c.l.s4 1983009808
      %v4888 = vunpack.c.0.s8 %v4887
      %v4889 = vperm.slane %v4883, %v4888
      %v4891 = vunpack.c.l.s4 1983009808
      %v4892 = vunpack.c.0.s8 %v4891
      %v4893 = vperm.slane %v4885, %v4892
      %v4894 = vrot.slane %v4763, 4
      %v4895 = vsel %vm209, %v4894, %v4739
      %v4896 = vrot.slane %v4739, 4
      %v4897 = vsel %vm209, %v4763, %v4896
      %v4899 = vunpack.c.l.s4 1983009808
      %v4900 = vunpack.c.0.s8 %v4899
      %v4901 = vperm.slane %v4895, %v4900
      %v4903 = vunpack.c.l.s4 1983009808
      %v4904 = vunpack.c.0.s8 %v4903
      %v4905 = vperm.slane %v4897, %v4904
      %v4906 = vrot.slane %v4901, 4
      %v4907 = vsel %vm209, %v4906, %v4889
      %v4908 = vrot.slane %v4889, 4
      %v4909 = vsel %vm209, %v4901, %v4908
      %v4911 = vunpack.c.l.s4 1934713408
      %v4912 = vunpack.c.0.s8 %v4911
      %v4913 = vperm.slane %v4907, %v4912
      %v4915 = vunpack.c.l.s4 1934713408
      %v4916 = vunpack.c.0.s8 %v4915
      %v4917 = vperm.slane %v4909, %v4916
      %v4918 = vrot.slane %v4905, 4
      %v4919 = vsel %vm209, %v4918, %v4893
      %v4920 = vrot.slane %v4893, 4
      %v4921 = vsel %vm209, %v4905, %v4920
      %v4923 = vunpack.c.l.s4 1934713408
      %v4924 = vunpack.c.0.s8 %v4923
      %v4925 = vperm.slane %v4919, %v4924
      %v4927 = vunpack.c.l.s4 1934713408
      %v4928 = vunpack.c.0.s8 %v4927
      %v4929 = vperm.slane %v4921, %v4928
      %v4930 = vrot.slane %v4913, 4
      %v4931 = vsel %vm209, 0.0, %v4930
      %v4932 = vrot.slane %v4917, 4
      %v4933 = vsel %vm209, 0.0, %v4932
      %v4934 = vrot.slane %v4925, 4
      %v4935 = vsel %vm209, 0.0, %v4934
      %v4936 = vrot.slane %v4929, 4
      %v4937 = vsel %vm209, 0.0, %v4936
      %v4938 = vrot.slane %v4753, 4
      %v4939 = vsel %vm209, %v4938, %v4729
      %v4940 = vrot.slane %v4729, 4
      %v4941 = vsel %vm209, %v4753, %v4940
      %v4943 = vunpack.c.l.s4 1983009808
      %v4944 = vunpack.c.0.s8 %v4943
      %v4945 = vperm.slane %v4939, %v4944
      %v4947 = vunpack.c.l.s4 1983009808
      %v4948 = vunpack.c.0.s8 %v4947
      %v4949 = vperm.slane %v4941, %v4948
      %v4950 = vrot.slane %v4765, 4
      %v4951 = vsel %vm209, %v4950, %v4741
      %v4952 = vrot.slane %v4741, 4
      %v4953 = vsel %vm209, %v4765, %v4952
      %v4955 = vunpack.c.l.s4 1983009808
      %v4956 = vunpack.c.0.s8 %v4955
      %v4957 = vperm.slane %v4951, %v4956
      %v4959 = vunpack.c.l.s4 1983009808
      %v4960 = vunpack.c.0.s8 %v4959
      %v4961 = vperm.slane %v4953, %v4960
      %v4962 = vrot.slane %v4957, 4
      %v4963 = vsel %vm209, %v4962, %v4945
      %v4964 = vrot.slane %v4945, 4
      %v4965 = vsel %vm209, %v4957, %v4964
      %v4967 = vunpack.c.l.s4 1934713408
      %v4968 = vunpack.c.0.s8 %v4967
      %v4969 = vperm.slane %v4963, %v4968
      %v4971 = vunpack.c.l.s4 1934713408
      %v4972 = vunpack.c.0.s8 %v4971
      %v4973 = vperm.slane %v4965, %v4972
      %v4974 = vrot.slane %v4961, 4
      %v4975 = vsel %vm209, %v4974, %v4949
      %v4976 = vrot.slane %v4949, 4
      %v4977 = vsel %vm209, %v4961, %v4976
      %v4979 = vunpack.c.l.s4 1934713408
      %v4980 = vunpack.c.0.s8 %v4979
      %v4981 = vperm.slane %v4975, %v4980
      %v4983 = vunpack.c.l.s4 1934713408
      %v4984 = vunpack.c.0.s8 %v4983
      %v4985 = vperm.slane %v4977, %v4984
      %v4986 = vrot.slane %v4969, 4
      %v4987 = vsel %vm209, 0.0, %v4986
      %v4988 = vrot.slane %v4973, 4
      %v4989 = vsel %vm209, 0.0, %v4988
      %v4990 = vrot.slane %v4981, 4
      %v4991 = vsel %vm209, 0.0, %v4990
      %v4992 = vrot.slane %v4985, 4
      %v4993 = vsel %vm209, 0.0, %v4992
      %4994 = vxpose.xlu0.b32.start [1/16] %v4801, 128
      %4995 = vxpose.xlu0.b32.cont [2/16] 0.0, 128
      %4996 = vxpose.xlu0.b32.cont [3/16] 0.0, 128
      %4997 = vxpose.xlu0.b32.cont [4/16] 0.0, 128
      %4998 = vxpose.xlu0.b32.cont [5/16] 0.0, 128
      %4999 = vxpose.xlu0.b32.cont [6/16] 0.0, 128
      %5000 = vxpose.xlu0.b32.cont [7/16] 0.0, 128
      %5001 = vxpose.xlu0.b32.cont [8/16] 0.0, 128
      %5002 = vxpose.xlu0.b32.cont [9/16] 0.0, 128
      %5003 = vxpose.xlu0.b32.cont [10/16] 0.0, 128
      %5004 = vxpose.xlu0.b32.cont [11/16] 0.0, 128
      %5005 = vxpose.xlu0.b32.cont [12/16] 0.0, 128
      %5006 = vxpose.xlu0.b32.cont [13/16] 0.0, 128
      %5007 = vxpose.xlu0.b32.cont [14/16] 0.0, 128
      %5008 = vxpose.xlu0.b32.cont [15/16] 0.0, 128
      %5009 = vxpose.xlu0.b32.end [16/16] 0.0, 128
      %v5010 = vpop.trf.xlu0
      %v5011 = vpop.trf.xlu0
      %v5012 = vpop.trf.xlu0
      %v5013 = vpop.trf.xlu0
      %v5014 = vpop.trf.xlu0
      %v5015 = vpop.trf.xlu0
      %v5016 = vpop.trf.xlu0
      %v5017 = vpop.trf.xlu0
      %v5018 = vpop.trf.xlu0
      %v5019 = vpop.trf.xlu0
      %v5020 = vpop.trf.xlu0
      %v5021 = vpop.trf.xlu0
      %v5022 = vpop.trf.xlu0
      %v5023 = vpop.trf.xlu0
      %v5024 = vpop.trf.xlu0
      %v5025 = vpop.trf.xlu0
      %5026 = vxpose.xlu0.b32.start [1/16] %v4819, 128
      %5027 = vxpose.xlu0.b32.cont [2/16] 0.0, 128
      %5028 = vxpose.xlu0.b32.cont [3/16] 0.0, 128
      %5029 = vxpose.xlu0.b32.cont [4/16] 0.0, 128
      %5030 = vxpose.xlu0.b32.cont [5/16] 0.0, 128
      %5031 = vxpose.xlu0.b32.cont [6/16] 0.0, 128
      %5032 = vxpose.xlu0.b32.cont [7/16] 0.0, 128
      %5033 = vxpose.xlu0.b32.cont [8/16] 0.0, 128
      %5034 = vxpose.xlu0.b32.cont [9/16] 0.0, 128
      %5035 = vxpose.xlu0.b32.cont [10/16] 0.0, 128
      %5036 = vxpose.xlu0.b32.cont [11/16] 0.0, 128
      %5037 = vxpose.xlu0.b32.cont [12/16] 0.0, 128
      %5038 = vxpose.xlu0.b32.cont [13/16] 0.0, 128
      %5039 = vxpose.xlu0.b32.cont [14/16] 0.0, 128
      %5040 = vxpose.xlu0.b32.cont [15/16] 0.0, 128
      %5041 = vxpose.xlu0.b32.end [16/16] 0.0, 128
      %v5042 = vpop.trf.xlu0
      %v5043 = vpop.trf.xlu0
      %v5044 = vpop.trf.xlu0
      %v5045 = vpop.trf.xlu0
      %v5046 = vpop.trf.xlu0
      %v5047 = vpop.trf.xlu0
      %v5048 = vpop.trf.xlu0
      %v5049 = vpop.trf.xlu0
      %v5050 = vpop.trf.xlu0
      %v5051 = vpop.trf.xlu0
      %v5052 = vpop.trf.xlu0
      %v5053 = vpop.trf.xlu0
      %v5054 = vpop.trf.xlu0
      %v5055 = vpop.trf.xlu0
      %v5056 = vpop.trf.xlu0
      %v5057 = vpop.trf.xlu0
      %5058 = vxpose.xlu0.b32.start [1/16] %v4805, 128
      %5059 = vxpose.xlu0.b32.cont [2/16] 0.0, 128
      %5060 = vxpose.xlu0.b32.cont [3/16] 0.0, 128
      %5061 = vxpose.xlu0.b32.cont [4/16] 0.0, 128
      %5062 = vxpose.xlu0.b32.cont [5/16] 0.0, 128
      %5063 = vxpose.xlu0.b32.cont [6/16] 0.0, 128
      %5064 = vxpose.xlu0.b32.cont [7/16] 0.0, 128
      %5065 = vxpose.xlu0.b32.cont [8/16] 0.0, 128
      %5066 = vxpose.xlu0.b32.cont [9/16] 0.0, 128
      %5067 = vxpose.xlu0.b32.cont [10/16] 0.0, 128
      %5068 = vxpose.xlu0.b32.cont [11/16] 0.0, 128
      %5069 = vxpose.xlu0.b32.cont [12/16] 0.0, 128
      %5070 = vxpose.xlu0.b32.cont [13/16] 0.0, 128
      %5071 = vxpose.xlu0.b32.cont [14/16] 0.0, 128
      %5072 = vxpose.xlu0.b32.cont [15/16] 0.0, 128
      %5073 = vxpose.xlu0.b32.end [16/16] 0.0, 128
      %v5074 = vpop.trf.xlu0
      %v5075 = vpop.trf.xlu0
      %v5076 = vpop.trf.xlu0
      %v5077 = vpop.trf.xlu0
      %v5078 = vpop.trf.xlu0
      %v5079 = vpop.trf.xlu0
      %v5080 = vpop.trf.xlu0
      %v5081 = vpop.trf.xlu0
      %v5082 = vpop.trf.xlu0
      %v5083 = vpop.trf.xlu0
      %v5084 = vpop.trf.xlu0
      %v5085 = vpop.trf.xlu0
      %v5086 = vpop.trf.xlu0
      %v5087 = vpop.trf.xlu0
      %v5088 = vpop.trf.xlu0
      %v5089 = vpop.trf.xlu0
      %5090 = vxpose.xlu0.b32.start [1/16] %v4821, 128
      %5091 = vxpose.xlu0.b32.cont [2/16] 0.0, 128
      %5092 = vxpose.xlu0.b32.cont [3/16] 0.0, 128
      %5093 = vxpose.xlu0.b32.cont [4/16] 0.0, 128
      %5094 = vxpose.xlu0.b32.cont [5/16] 0.0, 128
      %5095 = vxpose.xlu0.b32.cont [6/16] 0.0, 128
      %5096 = vxpose.xlu0.b32.cont [7/16] 0.0, 128
      %5097 = vxpose.xlu0.b32.cont [8/16] 0.0, 128
      %5098 = vxpose.xlu0.b32.cont [9/16] 0.0, 128
      %5099 = vxpose.xlu0.b32.cont [10/16] 0.0, 128
      %5100 = vxpose.xlu0.b32.cont [11/16] 0.0, 128
      %5101 = vxpose.xlu0.b32.cont [12/16] 0.0, 128
      %5102 = vxpose.xlu0.b32.cont [13/16] 0.0, 128
      %5103 = vxpose.xlu0.b32.cont [14/16] 0.0, 128
      %5104 = vxpose.xlu0.b32.cont [15/16] 0.0, 128
      %5105 = vxpose.xlu0.b32.end [16/16] 0.0, 128
      %v5106 = vpop.trf.xlu0
      %v5107 = vpop.trf.xlu0
      %v5108 = vpop.trf.xlu0
      %v5109 = vpop.trf.xlu0
      %v5110 = vpop.trf.xlu0
      %v5111 = vpop.trf.xlu0
      %v5112 = vpop.trf.xlu0
      %v5113 = vpop.trf.xlu0
      %v5114 = vpop.trf.xlu0
      %v5115 = vpop.trf.xlu0
      %v5116 = vpop.trf.xlu0
      %v5117 = vpop.trf.xlu0
      %v5118 = vpop.trf.xlu0
      %v5119 = vpop.trf.xlu0
      %v5120 = vpop.trf.xlu0
      %v5121 = vpop.trf.xlu0
      %5122 = vxpose.xlu0.b32.start [1/16] %v4813, 128
      %5123 = vxpose.xlu0.b32.cont [2/16] 0.0, 128
      %5124 = vxpose.xlu0.b32.cont [3/16] 0.0, 128
      %5125 = vxpose.xlu0.b32.cont [4/16] 0.0, 128
      %5126 = vxpose.xlu0.b32.cont [5/16] 0.0, 128
      %5127 = vxpose.xlu0.b32.cont [6/16] 0.0, 128
      %5128 = vxpose.xlu0.b32.cont [7/16] 0.0, 128
      %5129 = vxpose.xlu0.b32.cont [8/16] 0.0, 128
      %5130 = vxpose.xlu0.b32.cont [9/16] 0.0, 128
      %5131 = vxpose.xlu0.b32.cont [10/16] 0.0, 128
      %5132 = vxpose.xlu0.b32.cont [11/16] 0.0, 128
      %5133 = vxpose.xlu0.b32.cont [12/16] 0.0, 128
      %5134 = vxpose.xlu0.b32.cont [13/16] 0.0, 128
      %5135 = vxpose.xlu0.b32.cont [14/16] 0.0, 128
      %5136 = vxpose.xlu0.b32.cont [15/16] 0.0, 128
      %5137 = vxpose.xlu0.b32.end [16/16] 0.0, 128
      %v5138 = vpop.trf.xlu0
      %v5139 = vpop.trf.xlu0
      %v5140 = vpop.trf.xlu0
      %v5141 = vpop.trf.xlu0
      %v5142 = vpop.trf.xlu0
      %v5143 = vpop.trf.xlu0
      %v5144 = vpop.trf.xlu0
      %v5145 = vpop.trf.xlu0
      %v5146 = vpop.trf.xlu0
      %v5147 = vpop.trf.xlu0
      %v5148 = vpop.trf.xlu0
      %v5149 = vpop.trf.xlu0
      %v5150 = vpop.trf.xlu0
      %v5151 = vpop.trf.xlu0
      %v5152 = vpop.trf.xlu0
      %v5153 = vpop.trf.xlu0
      %5154 = vxpose.xlu0.b32.start [1/16] %v4823, 128
      %5155 = vxpose.xlu0.b32.cont [2/16] 0.0, 128
      %5156 = vxpose.xlu0.b32.cont [3/16] 0.0, 128
      %5157 = vxpose.xlu0.b32.cont [4/16] 0.0, 128
      %5158 = vxpose.xlu0.b32.cont [5/16] 0.0, 128
      %5159 = vxpose.xlu0.b32.cont [6/16] 0.0, 128
      %5160 = vxpose.xlu0.b32.cont [7/16] 0.0, 128
      %5161 = vxpose.xlu0.b32.cont [8/16] 0.0, 128
      %5162 = vxpose.xlu0.b32.cont [9/16] 0.0, 128
      %5163 = vxpose.xlu0.b32.cont [10/16] 0.0, 128
      %5164 = vxpose.xlu0.b32.cont [11/16] 0.0, 128
      %5165 = vxpose.xlu0.b32.cont [12/16] 0.0, 128
      %5166 = vxpose.xlu0.b32.cont [13/16] 0.0, 128
      %5167 = vxpose.xlu0.b32.cont [14/16] 0.0, 128
      %5168 = vxpose.xlu0.b32.cont [15/16] 0.0, 128
      %5169 = vxpose.xlu0.b32.end [16/16] 0.0, 128
      %v5170 = vpop.trf.xlu0
      %v5171 = vpop.trf.xlu0
      %v5172 = vpop.trf.xlu0
      %v5173 = vpop.trf.xlu0
      %v5174 = vpop.trf.xlu0
      %v5175 = vpop.trf.xlu0
      %v5176 = vpop.trf.xlu0
      %v5177 = vpop.trf.xlu0
      %v5178 = vpop.trf.xlu0
      %v5179 = vpop.trf.xlu0
      %v5180 = vpop.trf.xlu0
      %v5181 = vpop.trf.xlu0
      %v5182 = vpop.trf.xlu0
      %v5183 = vpop.trf.xlu0
      %v5184 = vpop.trf.xlu0
      %v5185 = vpop.trf.xlu0
      %5186 = vxpose.xlu0.b32.start [1/16] %v4817, 128
      %5187 = vxpose.xlu0.b32.cont [2/16] 0.0, 128
      %5188 = vxpose.xlu0.b32.cont [3/16] 0.0, 128
      %5189 = vxpose.xlu0.b32.cont [4/16] 0.0, 128
      %5190 = vxpose.xlu0.b32.cont [5/16] 0.0, 128
      %5191 = vxpose.xlu0.b32.cont [6/16] 0.0, 128
      %5192 = vxpose.xlu0.b32.cont [7/16] 0.0, 128
      %5193 = vxpose.xlu0.b32.cont [8/16] 0.0, 128
      %5194 = vxpose.xlu0.b32.cont [9/16] 0.0, 128
      %5195 = vxpose.xlu0.b32.cont [10/16] 0.0, 128
      %5196 = vxpose.xlu0.b32.cont [11/16] 0.0, 128
      %5197 = vxpose.xlu0.b32.cont [12/16] 0.0, 128
      %5198 = vxpose.xlu0.b32.cont [13/16] 0.0, 128
      %5199 = vxpose.xlu0.b32.cont [14/16] 0.0, 128
      %5200 = vxpose.xlu0.b32.cont [15/16] 0.0, 128
      %5201 = vxpose.xlu0.b32.end [16/16] 0.0, 128
      %v5202 = vpop.trf.xlu0
      %v5203 = vpop.trf.xlu0
      %v5204 = vpop.trf.xlu0
      %v5205 = vpop.trf.xlu0
      %v5206 = vpop.trf.xlu0
      %v5207 = vpop.trf.xlu0
      %v5208 = vpop.trf.xlu0
      %v5209 = vpop.trf.xlu0
      %v5210 = vpop.trf.xlu0
      %v5211 = vpop.trf.xlu0
      %v5212 = vpop.trf.xlu0
      %v5213 = vpop.trf.xlu0
      %v5214 = vpop.trf.xlu0
      %v5215 = vpop.trf.xlu0
      %v5216 = vpop.trf.xlu0
      %v5217 = vpop.trf.xlu0
      %5218 = vxpose.xlu0.b32.start [1/16] %v4825, 128
      %5219 = vxpose.xlu0.b32.cont [2/16] 0.0, 128
      %5220 = vxpose.xlu0.b32.cont [3/16] 0.0, 128
      %5221 = vxpose.xlu0.b32.cont [4/16] 0.0, 128
      %5222 = vxpose.xlu0.b32.cont [5/16] 0.0, 128
      %5223 = vxpose.xlu0.b32.cont [6/16] 0.0, 128
      %5224 = vxpose.xlu0.b32.cont [7/16] 0.0, 128
      %5225 = vxpose.xlu0.b32.cont [8/16] 0.0, 128
      %5226 = vxpose.xlu0.b32.cont [9/16] 0.0, 128
      %5227 = vxpose.xlu0.b32.cont [10/16] 0.0, 128
      %5228 = vxpose.xlu0.b32.cont [11/16] 0.0, 128
      %5229 = vxpose.xlu0.b32.cont [12/16] 0.0, 128
      %5230 = vxpose.xlu0.b32.cont [13/16] 0.0, 128
      %5231 = vxpose.xlu0.b32.cont [14/16] 0.0, 128
      %5232 = vxpose.xlu0.b32.cont [15/16] 0.0, 128
      %5233 = vxpose.xlu0.b32.end [16/16] 0.0, 128
      %v5234 = vpop.trf.xlu0
      %v5235 = vpop.trf.xlu0
      %v5236 = vpop.trf.xlu0
      %v5237 = vpop.trf.xlu0
      %v5238 = vpop.trf.xlu0
      %v5239 = vpop.trf.xlu0
      %v5240 = vpop.trf.xlu0
      %v5241 = vpop.trf.xlu0
      %v5242 = vpop.trf.xlu0
      %v5243 = vpop.trf.xlu0
      %v5244 = vpop.trf.xlu0
      %v5245 = vpop.trf.xlu0
      %v5246 = vpop.trf.xlu0
      %v5247 = vpop.trf.xlu0
      %v5248 = vpop.trf.xlu0
      %v5249 = vpop.trf.xlu0
      %5250 = vxpose.xlu0.b32.start [1/16] %v4857, 128
      %5251 = vxpose.xlu0.b32.cont [2/16] 0.0, 128
      %5252 = vxpose.xlu0.b32.cont [3/16] 0.0, 128
      %5253 = vxpose.xlu0.b32.cont [4/16] 0.0, 128
      %5254 = vxpose.xlu0.b32.cont [5/16] 0.0, 128
      %5255 = vxpose.xlu0.b32.cont [6/16] 0.0, 128
      %5256 = vxpose.xlu0.b32.cont [7/16] 0.0, 128
      %5257 = vxpose.xlu0.b32.cont [8/16] 0.0, 128
      %5258 = vxpose.xlu0.b32.cont [9/16] 0.0, 128
      %5259 = vxpose.xlu0.b32.cont [10/16] 0.0, 128
      %5260 = vxpose.xlu0.b32.cont [11/16] 0.0, 128
      %5261 = vxpose.xlu0.b32.cont [12/16] 0.0, 128
      %5262 = vxpose.xlu0.b32.cont [13/16] 0.0, 128
      %5263 = vxpose.xlu0.b32.cont [14/16] 0.0, 128
      %5264 = vxpose.xlu0.b32.cont [15/16] 0.0, 128
      %5265 = vxpose.xlu0.b32.end [16/16] 0.0, 128
      %v5266 = vpop.trf.xlu0
      %v5267 = vpop.trf.xlu0
      %v5268 = vpop.trf.xlu0
      %v5269 = vpop.trf.xlu0
      %v5270 = vpop.trf.xlu0
      %v5271 = vpop.trf.xlu0
      %v5272 = vpop.trf.xlu0
      %v5273 = vpop.trf.xlu0
      %v5274 = vpop.trf.xlu0
      %v5275 = vpop.trf.xlu0
      %v5276 = vpop.trf.xlu0
      %v5277 = vpop.trf.xlu0
      %v5278 = vpop.trf.xlu0
      %v5279 = vpop.trf.xlu0
      %v5280 = vpop.trf.xlu0
      %v5281 = vpop.trf.xlu0
      %5282 = vxpose.xlu0.b32.start [1/16] %v4875, 128
      %5283 = vxpose.xlu0.b32.cont [2/16] 0.0, 128
      %5284 = vxpose.xlu0.b32.cont [3/16] 0.0, 128
      %5285 = vxpose.xlu0.b32.cont [4/16] 0.0, 128
      %5286 = vxpose.xlu0.b32.cont [5/16] 0.0, 128
      %5287 = vxpose.xlu0.b32.cont [6/16] 0.0, 128
      %5288 = vxpose.xlu0.b32.cont [7/16] 0.0, 128
      %5289 = vxpose.xlu0.b32.cont [8/16] 0.0, 128
      %5290 = vxpose.xlu0.b32.cont [9/16] 0.0, 128
      %5291 = vxpose.xlu0.b32.cont [10/16] 0.0, 128
      %5292 = vxpose.xlu0.b32.cont [11/16] 0.0, 128
      %5293 = vxpose.xlu0.b32.cont [12/16] 0.0, 128
      %5294 = vxpose.xlu0.b32.cont [13/16] 0.0, 128
      %5295 = vxpose.xlu0.b32.cont [14/16] 0.0, 128
      %5296 = vxpose.xlu0.b32.cont [15/16] 0.0, 128
      %5297 = vxpose.xlu0.b32.end [16/16] 0.0, 128
      %v5298 = vpop.trf.xlu0
      %v5299 = vpop.trf.xlu0
      %v5300 = vpop.trf.xlu0
      %v5301 = vpop.trf.xlu0
      %v5302 = vpop.trf.xlu0
      %v5303 = vpop.trf.xlu0
      %v5304 = vpop.trf.xlu0
      %v5305 = vpop.trf.xlu0
      %v5306 = vpop.trf.xlu0
      %v5307 = vpop.trf.xlu0
      %v5308 = vpop.trf.xlu0
      %v5309 = vpop.trf.xlu0
      %v5310 = vpop.trf.xlu0
      %v5311 = vpop.trf.xlu0
      %v5312 = vpop.trf.xlu0
      %v5313 = vpop.trf.xlu0
      %5314 = vxpose.xlu0.b32.start [1/16] %v4861, 128
      %5315 = vxpose.xlu0.b32.cont [2/16] 0.0, 128
      %5316 = vxpose.xlu0.b32.cont [3/16] 0.0, 128
      %5317 = vxpose.xlu0.b32.cont [4/16] 0.0, 128
      %5318 = vxpose.xlu0.b32.cont [5/16] 0.0, 128
      %5319 = vxpose.xlu0.b32.cont [6/16] 0.0, 128
      %5320 = vxpose.xlu0.b32.cont [7/16] 0.0, 128
      %5321 = vxpose.xlu0.b32.cont [8/16] 0.0, 128
      %5322 = vxpose.xlu0.b32.cont [9/16] 0.0, 128
      %5323 = vxpose.xlu0.b32.cont [10/16] 0.0, 128
      %5324 = vxpose.xlu0.b32.cont [11/16] 0.0, 128
      %5325 = vxpose.xlu0.b32.cont [12/16] 0.0, 128
      %5326 = vxpose.xlu0.b32.cont [13/16] 0.0, 128
      %5327 = vxpose.xlu0.b32.cont [14/16] 0.0, 128
      %5328 = vxpose.xlu0.b32.cont [15/16] 0.0, 128
      %5329 = vxpose.xlu0.b32.end [16/16] 0.0, 128
      %v5330 = vpop.trf.xlu0
      %v5331 = vpop.trf.xlu0
      %v5332 = vpop.trf.xlu0
      %v5333 = vpop.trf.xlu0
      %v5334 = vpop.trf.xlu0
      %v5335 = vpop.trf.xlu0
      %v5336 = vpop.trf.xlu0
      %v5337 = vpop.trf.xlu0
      %v5338 = vpop.trf.xlu0
      %v5339 = vpop.trf.xlu0
      %v5340 = vpop.trf.xlu0
      %v5341 = vpop.trf.xlu0
      %v5342 = vpop.trf.xlu0
      %v5343 = vpop.trf.xlu0
      %v5344 = vpop.trf.xlu0
      %v5345 = vpop.trf.xlu0
      %5346 = vxpose.xlu0.b32.start [1/16] %v4877, 128
      %5347 = vxpose.xlu0.b32.cont [2/16] 0.0, 128
      %5348 = vxpose.xlu0.b32.cont [3/16] 0.0, 128
      %5349 = vxpose.xlu0.b32.cont [4/16] 0.0, 128
      %5350 = vxpose.xlu0.b32.cont [5/16] 0.0, 128
      %5351 = vxpose.xlu0.b32.cont [6/16] 0.0, 128
      %5352 = vxpose.xlu0.b32.cont [7/16] 0.0, 128
      %5353 = vxpose.xlu0.b32.cont [8/16] 0.0, 128
      %5354 = vxpose.xlu0.b32.cont [9/16] 0.0, 128
      %5355 = vxpose.xlu0.b32.cont [10/16] 0.0, 128
      %5356 = vxpose.xlu0.b32.cont [11/16] 0.0, 128
      %5357 = vxpose.xlu0.b32.cont [12/16] 0.0, 128
      %5358 = vxpose.xlu0.b32.cont [13/16] 0.0, 128
      %5359 = vxpose.xlu0.b32.cont [14/16] 0.0, 128
      %5360 = vxpose.xlu0.b32.cont [15/16] 0.0, 128
      %5361 = vxpose.xlu0.b32.end [16/16] 0.0, 128
      %v5362 = vpop.trf.xlu0
      %v5363 = vpop.trf.xlu0
      %v5364 = vpop.trf.xlu0
      %v5365 = vpop.trf.xlu0
      %v5366 = vpop.trf.xlu0
      %v5367 = vpop.trf.xlu0
      %v5368 = vpop.trf.xlu0
      %v5369 = vpop.trf.xlu0
      %v5370 = vpop.trf.xlu0
      %v5371 = vpop.trf.xlu0
      %v5372 = vpop.trf.xlu0
      %v5373 = vpop.trf.xlu0
      %v5374 = vpop.trf.xlu0
      %v5375 = vpop.trf.xlu0
      %v5376 = vpop.trf.xlu0
      %v5377 = vpop.trf.xlu0
      %5378 = vxpose.xlu0.b32.start [1/16] %v4869, 128
      %5379 = vxpose.xlu0.b32.cont [2/16] 0.0, 128
      %5380 = vxpose.xlu0.b32.cont [3/16] 0.0, 128
      %5381 = vxpose.xlu0.b32.cont [4/16] 0.0, 128
      %5382 = vxpose.xlu0.b32.cont [5/16] 0.0, 128
      %5383 = vxpose.xlu0.b32.cont [6/16] 0.0, 128
      %5384 = vxpose.xlu0.b32.cont [7/16] 0.0, 128
      %5385 = vxpose.xlu0.b32.cont [8/16] 0.0, 128
      %5386 = vxpose.xlu0.b32.cont [9/16] 0.0, 128
      %5387 = vxpose.xlu0.b32.cont [10/16] 0.0, 128
      %5388 = vxpose.xlu0.b32.cont [11/16] 0.0, 128
      %5389 = vxpose.xlu0.b32.cont [12/16] 0.0, 128
      %5390 = vxpose.xlu0.b32.cont [13/16] 0.0, 128
      %5391 = vxpose.xlu0.b32.cont [14/16] 0.0, 128
      %5392 = vxpose.xlu0.b32.cont [15/16] 0.0, 128
      %5393 = vxpose.xlu0.b32.end [16/16] 0.0, 128
      %v5394 = vpop.trf.xlu0
      %v5395 = vpop.trf.xlu0
      %v5396 = vpop.trf.xlu0
      %v5397 = vpop.trf.xlu0
      %v5398 = vpop.trf.xlu0
      %v5399 = vpop.trf.xlu0
      %v5400 = vpop.trf.xlu0
      %v5401 = vpop.trf.xlu0
      %v5402 = vpop.trf.xlu0
      %v5403 = vpop.trf.xlu0
      %v5404 = vpop.trf.xlu0
      %v5405 = vpop.trf.xlu0
      %v5406 = vpop.trf.xlu0
      %v5407 = vpop.trf.xlu0
      %v5408 = vpop.trf.xlu0
      %v5409 = vpop.trf.xlu0
      %5410 = vxpose.xlu0.b32.start [1/16] %v4879, 128
      %5411 = vxpose.xlu0.b32.cont [2/16] 0.0, 128
      %5412 = vxpose.xlu0.b32.cont [3/16] 0.0, 128
      %5413 = vxpose.xlu0.b32.cont [4/16] 0.0, 128
      %5414 = vxpose.xlu0.b32.cont [5/16] 0.0, 128
      %5415 = vxpose.xlu0.b32.cont [6/16] 0.0, 128
      %5416 = vxpose.xlu0.b32.cont [7/16] 0.0, 128
      %5417 = vxpose.xlu0.b32.cont [8/16] 0.0, 128
      %5418 = vxpose.xlu0.b32.cont [9/16] 0.0, 128
      %5419 = vxpose.xlu0.b32.cont [10/16] 0.0, 128
      %5420 = vxpose.xlu0.b32.cont [11/16] 0.0, 128
      %5421 = vxpose.xlu0.b32.cont [12/16] 0.0, 128
      %5422 = vxpose.xlu0.b32.cont [13/16] 0.0, 128
      %5423 = vxpose.xlu0.b32.cont [14/16] 0.0, 128
      %5424 = vxpose.xlu0.b32.cont [15/16] 0.0, 128
      %5425 = vxpose.xlu0.b32.end [16/16] 0.0, 128
      %v5426 = vpop.trf.xlu0
      %v5427 = vpop.trf.xlu0
      %v5428 = vpop.trf.xlu0
      %v5429 = vpop.trf.xlu0
      %v5430 = vpop.trf.xlu0
      %v5431 = vpop.trf.xlu0
      %v5432 = vpop.trf.xlu0
      %v5433 = vpop.trf.xlu0
      %v5434 = vpop.trf.xlu0
      %v5435 = vpop.trf.xlu0
      %v5436 = vpop.trf.xlu0
      %v5437 = vpop.trf.xlu0
      %v5438 = vpop.trf.xlu0
      %v5439 = vpop.trf.xlu0
      %v5440 = vpop.trf.xlu0
      %v5441 = vpop.trf.xlu0
      %5442 = vxpose.xlu0.b32.start [1/16] %v4873, 128
      %5443 = vxpose.xlu0.b32.cont [2/16] 0.0, 128
      %5444 = vxpose.xlu0.b32.cont [3/16] 0.0, 128
      %5445 = vxpose.xlu0.b32.cont [4/16] 0.0, 128
      %5446 = vxpose.xlu0.b32.cont [5/16] 0.0, 128
      %5447 = vxpose.xlu0.b32.cont [6/16] 0.0, 128
      %5448 = vxpose.xlu0.b32.cont [7/16] 0.0, 128
      %5449 = vxpose.xlu0.b32.cont [8/16] 0.0, 128
      %5450 = vxpose.xlu0.b32.cont [9/16] 0.0, 128
      %5451 = vxpose.xlu0.b32.cont [10/16] 0.0, 128
      %5452 = vxpose.xlu0.b32.cont [11/16] 0.0, 128
      %5453 = vxpose.xlu0.b32.cont [12/16] 0.0, 128
      %5454 = vxpose.xlu0.b32.cont [13/16] 0.0, 128
      %5455 = vxpose.xlu0.b32.cont [14/16] 0.0, 128
      %5456 = vxpose.xlu0.b32.cont [15/16] 0.0, 128
      %5457 = vxpose.xlu0.b32.end [16/16] 0.0, 128
      %v5458 = vpop.trf.xlu0
      %v5459 = vpop.trf.xlu0
      %v5460 = vpop.trf.xlu0
      %v5461 = vpop.trf.xlu0
      %v5462 = vpop.trf.xlu0
      %v5463 = vpop.trf.xlu0
      %v5464 = vpop.trf.xlu0
      %v5465 = vpop.trf.xlu0
      %v5466 = vpop.trf.xlu0
      %v5467 = vpop.trf.xlu0
      %v5468 = vpop.trf.xlu0
      %v5469 = vpop.trf.xlu0
      %v5470 = vpop.trf.xlu0
      %v5471 = vpop.trf.xlu0
      %v5472 = vpop.trf.xlu0
      %v5473 = vpop.trf.xlu0
      %5474 = vxpose.xlu0.b32.start [1/16] %v4881, 128
      %5475 = vxpose.xlu0.b32.cont [2/16] 0.0, 128
      %5476 = vxpose.xlu0.b32.cont [3/16] 0.0, 128
      %5477 = vxpose.xlu0.b32.cont [4/16] 0.0, 128
      %5478 = vxpose.xlu0.b32.cont [5/16] 0.0, 128
      %5479 = vxpose.xlu0.b32.cont [6/16] 0.0, 128
      %5480 = vxpose.xlu0.b32.cont [7/16] 0.0, 128
      %5481 = vxpose.xlu0.b32.cont [8/16] 0.0, 128
      %5482 = vxpose.xlu0.b32.cont [9/16] 0.0, 128
      %5483 = vxpose.xlu0.b32.cont [10/16] 0.0, 128
      %5484 = vxpose.xlu0.b32.cont [11/16] 0.0, 128
      %5485 = vxpose.xlu0.b32.cont [12/16] 0.0, 128
      %5486 = vxpose.xlu0.b32.cont [13/16] 0.0, 128
      %5487 = vxpose.xlu0.b32.cont [14/16] 0.0, 128
      %5488 = vxpose.xlu0.b32.cont [15/16] 0.0, 128
      %5489 = vxpose.xlu0.b32.end [16/16] 0.0, 128
      %v5490 = vpop.trf.xlu0
      %v5491 = vpop.trf.xlu0
      %v5492 = vpop.trf.xlu0
      %v5493 = vpop.trf.xlu0
      %v5494 = vpop.trf.xlu0
      %v5495 = vpop.trf.xlu0
      %v5496 = vpop.trf.xlu0
      %v5497 = vpop.trf.xlu0
      %v5498 = vpop.trf.xlu0
      %v5499 = vpop.trf.xlu0
      %v5500 = vpop.trf.xlu0
      %v5501 = vpop.trf.xlu0
      %v5502 = vpop.trf.xlu0
      %v5503 = vpop.trf.xlu0
      %v5504 = vpop.trf.xlu0
      %v5505 = vpop.trf.xlu0
      %5506 = vxpose.xlu0.b32.start [1/16] %v4913, 128
      %5507 = vxpose.xlu0.b32.cont [2/16] 0.0, 128
      %5508 = vxpose.xlu0.b32.cont [3/16] 0.0, 128
      %5509 = vxpose.xlu0.b32.cont [4/16] 0.0, 128
      %5510 = vxpose.xlu0.b32.cont [5/16] 0.0, 128
      %5511 = vxpose.xlu0.b32.cont [6/16] 0.0, 128
      %5512 = vxpose.xlu0.b32.cont [7/16] 0.0, 128
      %5513 = vxpose.xlu0.b32.cont [8/16] 0.0, 128
      %5514 = vxpose.xlu0.b32.cont [9/16] 0.0, 128
      %5515 = vxpose.xlu0.b32.cont [10/16] 0.0, 128
      %5516 = vxpose.xlu0.b32.cont [11/16] 0.0, 128
      %5517 = vxpose.xlu0.b32.cont [12/16] 0.0, 128
      %5518 = vxpose.xlu0.b32.cont [13/16] 0.0, 128
      %5519 = vxpose.xlu0.b32.cont [14/16] 0.0, 128
      %5520 = vxpose.xlu0.b32.cont [15/16] 0.0, 128
      %5521 = vxpose.xlu0.b32.end [16/16] 0.0, 128
      %v5522 = vpop.trf.xlu0
      %v5523 = vpop.trf.xlu0
      %v5524 = vpop.trf.xlu0
      %v5525 = vpop.trf.xlu0
      %v5526 = vpop.trf.xlu0
      %v5527 = vpop.trf.xlu0
      %v5528 = vpop.trf.xlu0
      %v5529 = vpop.trf.xlu0
      %v5530 = vpop.trf.xlu0
      %v5531 = vpop.trf.xlu0
      %v5532 = vpop.trf.xlu0
      %v5533 = vpop.trf.xlu0
      %v5534 = vpop.trf.xlu0
      %v5535 = vpop.trf.xlu0
      %v5536 = vpop.trf.xlu0
      %v5537 = vpop.trf.xlu0
      %5538 = vxpose.xlu0.b32.start [1/16] %v4931, 128
      %5539 = vxpose.xlu0.b32.cont [2/16] 0.0, 128
      %5540 = vxpose.xlu0.b32.cont [3/16] 0.0, 128
      %5541 = vxpose.xlu0.b32.cont [4/16] 0.0, 128
      %5542 = vxpose.xlu0.b32.cont [5/16] 0.0, 128
      %5543 = vxpose.xlu0.b32.cont [6/16] 0.0, 128
      %5544 = vxpose.xlu0.b32.cont [7/16] 0.0, 128
      %5545 = vxpose.xlu0.b32.cont [8/16] 0.0, 128
      %5546 = vxpose.xlu0.b32.cont [9/16] 0.0, 128
      %5547 = vxpose.xlu0.b32.cont [10/16] 0.0, 128
      %5548 = vxpose.xlu0.b32.cont [11/16] 0.0, 128
      %5549 = vxpose.xlu0.b32.cont [12/16] 0.0, 128
      %5550 = vxpose.xlu0.b32.cont [13/16] 0.0, 128
      %5551 = vxpose.xlu0.b32.cont [14/16] 0.0, 128
      %5552 = vxpose.xlu0.b32.cont [15/16] 0.0, 128
      %5553 = vxpose.xlu0.b32.end [16/16] 0.0, 128
      %v5554 = vpop.trf.xlu0
      %v5555 = vpop.trf.xlu0
      %v5556 = vpop.trf.xlu0
      %v5557 = vpop.trf.xlu0
      %v5558 = vpop.trf.xlu0
      %v5559 = vpop.trf.xlu0
      %v5560 = vpop.trf.xlu0
      %v5561 = vpop.trf.xlu0
      %v5562 = vpop.trf.xlu0
      %v5563 = vpop.trf.xlu0
      %v5564 = vpop.trf.xlu0
      %v5565 = vpop.trf.xlu0
      %v5566 = vpop.trf.xlu0
      %v5567 = vpop.trf.xlu0
      %v5568 = vpop.trf.xlu0
      %v5569 = vpop.trf.xlu0
      %5570 = vxpose.xlu0.b32.start [1/16] %v4917, 128
      %5571 = vxpose.xlu0.b32.cont [2/16] 0.0, 128
      %5572 = vxpose.xlu0.b32.cont [3/16] 0.0, 128
      %5573 = vxpose.xlu0.b32.cont [4/16] 0.0, 128
      %5574 = vxpose.xlu0.b32.cont [5/16] 0.0, 128
      %5575 = vxpose.xlu0.b32.cont [6/16] 0.0, 128
      %5576 = vxpose.xlu0.b32.cont [7/16] 0.0, 128
      %5577 = vxpose.xlu0.b32.cont [8/16] 0.0, 128
      %5578 = vxpose.xlu0.b32.cont [9/16] 0.0, 128
      %5579 = vxpose.xlu0.b32.cont [10/16] 0.0, 128
      %5580 = vxpose.xlu0.b32.cont [11/16] 0.0, 128
      %5581 = vxpose.xlu0.b32.cont [12/16] 0.0, 128
      %5582 = vxpose.xlu0.b32.cont [13/16] 0.0, 128
      %5583 = vxpose.xlu0.b32.cont [14/16] 0.0, 128
      %5584 = vxpose.xlu0.b32.cont [15/16] 0.0, 128
      %5585 = vxpose.xlu0.b32.end [16/16] 0.0, 128
      %v5586 = vpop.trf.xlu0
      %v5587 = vpop.trf.xlu0
      %v5588 = vpop.trf.xlu0
      %v5589 = vpop.trf.xlu0
      %v5590 = vpop.trf.xlu0
      %v5591 = vpop.trf.xlu0
      %v5592 = vpop.trf.xlu0
      %v5593 = vpop.trf.xlu0
      %v5594 = vpop.trf.xlu0
      %v5595 = vpop.trf.xlu0
      %v5596 = vpop.trf.xlu0
      %v5597 = vpop.trf.xlu0
      %v5598 = vpop.trf.xlu0
      %v5599 = vpop.trf.xlu0
      %v5600 = vpop.trf.xlu0
      %v5601 = vpop.trf.xlu0
      %5602 = vxpose.xlu0.b32.start [1/16] %v4933, 128
      %5603 = vxpose.xlu0.b32.cont [2/16] 0.0, 128
      %5604 = vxpose.xlu0.b32.cont [3/16] 0.0, 128
      %5605 = vxpose.xlu0.b32.cont [4/16] 0.0, 128
      %5606 = vxpose.xlu0.b32.cont [5/16] 0.0, 128
      %5607 = vxpose.xlu0.b32.cont [6/16] 0.0, 128
      %5608 = vxpose.xlu0.b32.cont [7/16] 0.0, 128
      %5609 = vxpose.xlu0.b32.cont [8/16] 0.0, 128
      %5610 = vxpose.xlu0.b32.cont [9/16] 0.0, 128
      %5611 = vxpose.xlu0.b32.cont [10/16] 0.0, 128
      %5612 = vxpose.xlu0.b32.cont [11/16] 0.0, 128
      %5613 = vxpose.xlu0.b32.cont [12/16] 0.0, 128
      %5614 = vxpose.xlu0.b32.cont [13/16] 0.0, 128
      %5615 = vxpose.xlu0.b32.cont [14/16] 0.0, 128
      %5616 = vxpose.xlu0.b32.cont [15/16] 0.0, 128
      %5617 = vxpose.xlu0.b32.end [16/16] 0.0, 128
      %v5618 = vpop.trf.xlu0
      %v5619 = vpop.trf.xlu0
      %v5620 = vpop.trf.xlu0
      %v5621 = vpop.trf.xlu0
      %v5622 = vpop.trf.xlu0
      %v5623 = vpop.trf.xlu0
      %v5624 = vpop.trf.xlu0
      %v5625 = vpop.trf.xlu0
      %v5626 = vpop.trf.xlu0
      %v5627 = vpop.trf.xlu0
      %v5628 = vpop.trf.xlu0
      %v5629 = vpop.trf.xlu0
      %v5630 = vpop.trf.xlu0
      %v5631 = vpop.trf.xlu0
      %v5632 = vpop.trf.xlu0
      %v5633 = vpop.trf.xlu0
      %5634 = vxpose.xlu0.b32.start [1/16] %v4925, 128
      %5635 = vxpose.xlu0.b32.cont [2/16] 0.0, 128
      %5636 = vxpose.xlu0.b32.cont [3/16] 0.0, 128
      %5637 = vxpose.xlu0.b32.cont [4/16] 0.0, 128
      %5638 = vxpose.xlu0.b32.cont [5/16] 0.0, 128
      %5639 = vxpose.xlu0.b32.cont [6/16] 0.0, 128
      %5640 = vxpose.xlu0.b32.cont [7/16] 0.0, 128
      %5641 = vxpose.xlu0.b32.cont [8/16] 0.0, 128
      %5642 = vxpose.xlu0.b32.cont [9/16] 0.0, 128
      %5643 = vxpose.xlu0.b32.cont [10/16] 0.0, 128
      %5644 = vxpose.xlu0.b32.cont [11/16] 0.0, 128
      %5645 = vxpose.xlu0.b32.cont [12/16] 0.0, 128
      %5646 = vxpose.xlu0.b32.cont [13/16] 0.0, 128
      %5647 = vxpose.xlu0.b32.cont [14/16] 0.0, 128
      %5648 = vxpose.xlu0.b32.cont [15/16] 0.0, 128
      %5649 = vxpose.xlu0.b32.end [16/16] 0.0, 128
      %v5650 = vpop.trf.xlu0
      %v5651 = vpop.trf.xlu0
      %v5652 = vpop.trf.xlu0
      %v5653 = vpop.trf.xlu0
      %v5654 = vpop.trf.xlu0
      %v5655 = vpop.trf.xlu0
      %v5656 = vpop.trf.xlu0
      %v5657 = vpop.trf.xlu0
      %v5658 = vpop.trf.xlu0
      %v5659 = vpop.trf.xlu0
      %v5660 = vpop.trf.xlu0
      %v5661 = vpop.trf.xlu0
      %v5662 = vpop.trf.xlu0
      %v5663 = vpop.trf.xlu0
      %v5664 = vpop.trf.xlu0
      %v5665 = vpop.trf.xlu0
      %5666 = vxpose.xlu0.b32.start [1/16] %v4935, 128
      %5667 = vxpose.xlu0.b32.cont [2/16] 0.0, 128
      %5668 = vxpose.xlu0.b32.cont [3/16] 0.0, 128
      %5669 = vxpose.xlu0.b32.cont [4/16] 0.0, 128
      %5670 = vxpose.xlu0.b32.cont [5/16] 0.0, 128
      %5671 = vxpose.xlu0.b32.cont [6/16] 0.0, 128
      %5672 = vxpose.xlu0.b32.cont [7/16] 0.0, 128
      %5673 = vxpose.xlu0.b32.cont [8/16] 0.0, 128
      %5674 = vxpose.xlu0.b32.cont [9/16] 0.0, 128
      %5675 = vxpose.xlu0.b32.cont [10/16] 0.0, 128
      %5676 = vxpose.xlu0.b32.cont [11/16] 0.0, 128
      %5677 = vxpose.xlu0.b32.cont [12/16] 0.0, 128
      %5678 = vxpose.xlu0.b32.cont [13/16] 0.0, 128
      %5679 = vxpose.xlu0.b32.cont [14/16] 0.0, 128
      %5680 = vxpose.xlu0.b32.cont [15/16] 0.0, 128
      %5681 = vxpose.xlu0.b32.end [16/16] 0.0, 128
      %v5682 = vpop.trf.xlu0
      %v5683 = vpop.trf.xlu0
      %v5684 = vpop.trf.xlu0
      %v5685 = vpop.trf.xlu0
      %v5686 = vpop.trf.xlu0
      %v5687 = vpop.trf.xlu0
      %v5688 = vpop.trf.xlu0
      %v5689 = vpop.trf.xlu0
      %v5690 = vpop.trf.xlu0
      %v5691 = vpop.trf.xlu0
      %v5692 = vpop.trf.xlu0
      %v5693 = vpop.trf.xlu0
      %v5694 = vpop.trf.xlu0
      %v5695 = vpop.trf.xlu0
      %v5696 = vpop.trf.xlu0
      %v5697 = vpop.trf.xlu0
      %5698 = vxpose.xlu0.b32.start [1/16] %v4929, 128
      %5699 = vxpose.xlu0.b32.cont [2/16] 0.0, 128
      %5700 = vxpose.xlu0.b32.cont [3/16] 0.0, 128
      %5701 = vxpose.xlu0.b32.cont [4/16] 0.0, 128
      %5702 = vxpose.xlu0.b32.cont [5/16] 0.0, 128
      %5703 = vxpose.xlu0.b32.cont [6/16] 0.0, 128
      %5704 = vxpose.xlu0.b32.cont [7/16] 0.0, 128
      %5705 = vxpose.xlu0.b32.cont [8/16] 0.0, 128
      %5706 = vxpose.xlu0.b32.cont [9/16] 0.0, 128
      %5707 = vxpose.xlu0.b32.cont [10/16] 0.0, 128
      %5708 = vxpose.xlu0.b32.cont [11/16] 0.0, 128
      %5709 = vxpose.xlu0.b32.cont [12/16] 0.0, 128
      %5710 = vxpose.xlu0.b32.cont [13/16] 0.0, 128
      %5711 = vxpose.xlu0.b32.cont [14/16] 0.0, 128
      %5712 = vxpose.xlu0.b32.cont [15/16] 0.0, 128
      %5713 = vxpose.xlu0.b32.end [16/16] 0.0, 128
      %v5714 = vpop.trf.xlu0
      %v5715 = vpop.trf.xlu0
      %v5716 = vpop.trf.xlu0
      %v5717 = vpop.trf.xlu0
      %v5718 = vpop.trf.xlu0
      %v5719 = vpop.trf.xlu0
      %v5720 = vpop.trf.xlu0
      %v5721 = vpop.trf.xlu0
      %v5722 = vpop.trf.xlu0
      %v5723 = vpop.trf.xlu0
      %v5724 = vpop.trf.xlu0
      %v5725 = vpop.trf.xlu0
      %v5726 = vpop.trf.xlu0
      %v5727 = vpop.trf.xlu0
      %v5728 = vpop.trf.xlu0
      %v5729 = vpop.trf.xlu0
      %5730 = vxpose.xlu0.b32.start [1/16] %v4937, 128
      %5731 = vxpose.xlu0.b32.cont [2/16] 0.0, 128
      %5732 = vxpose.xlu0.b32.cont [3/16] 0.0, 128
      %5733 = vxpose.xlu0.b32.cont [4/16] 0.0, 128
      %5734 = vxpose.xlu0.b32.cont [5/16] 0.0, 128
      %5735 = vxpose.xlu0.b32.cont [6/16] 0.0, 128
      %5736 = vxpose.xlu0.b32.cont [7/16] 0.0, 128
      %5737 = vxpose.xlu0.b32.cont [8/16] 0.0, 128
      %5738 = vxpose.xlu0.b32.cont [9/16] 0.0, 128
      %5739 = vxpose.xlu0.b32.cont [10/16] 0.0, 128
      %5740 = vxpose.xlu0.b32.cont [11/16] 0.0, 128
      %5741 = vxpose.xlu0.b32.cont [12/16] 0.0, 128
      %5742 = vxpose.xlu0.b32.cont [13/16] 0.0, 128
      %5743 = vxpose.xlu0.b32.cont [14/16] 0.0, 128
      %5744 = vxpose.xlu0.b32.cont [15/16] 0.0, 128
      %5745 = vxpose.xlu0.b32.end [16/16] 0.0, 128
      %v5746 = vpop.trf.xlu0
      %v5747 = vpop.trf.xlu0
      %v5748 = vpop.trf.xlu0
      %v5749 = vpop.trf.xlu0
      %v5750 = vpop.trf.xlu0
      %v5751 = vpop.trf.xlu0
      %v5752 = vpop.trf.xlu0
      %v5753 = vpop.trf.xlu0
      %v5754 = vpop.trf.xlu0
      %v5755 = vpop.trf.xlu0
      %v5756 = vpop.trf.xlu0
      %v5757 = vpop.trf.xlu0
      %v5758 = vpop.trf.xlu0
      %v5759 = vpop.trf.xlu0
      %v5760 = vpop.trf.xlu0
      %v5761 = vpop.trf.xlu0
      %5762 = vxpose.xlu0.b32.start [1/16] %v4969, 128
      %5763 = vxpose.xlu0.b32.cont [2/16] 0.0, 128
      %5764 = vxpose.xlu0.b32.cont [3/16] 0.0, 128
      %5765 = vxpose.xlu0.b32.cont [4/16] 0.0, 128
      %5766 = vxpose.xlu0.b32.cont [5/16] 0.0, 128
      %5767 = vxpose.xlu0.b32.cont [6/16] 0.0, 128
      %5768 = vxpose.xlu0.b32.cont [7/16] 0.0, 128
      %5769 = vxpose.xlu0.b32.cont [8/16] 0.0, 128
      %5770 = vxpose.xlu0.b32.cont [9/16] 0.0, 128
      %5771 = vxpose.xlu0.b32.cont [10/16] 0.0, 128
      %5772 = vxpose.xlu0.b32.cont [11/16] 0.0, 128
      %5773 = vxpose.xlu0.b32.cont [12/16] 0.0, 128
      %5774 = vxpose.xlu0.b32.cont [13/16] 0.0, 128
      %5775 = vxpose.xlu0.b32.cont [14/16] 0.0, 128
      %5776 = vxpose.xlu0.b32.cont [15/16] 0.0, 128
      %5777 = vxpose.xlu0.b32.end [16/16] 0.0, 128
      %v5778 = vpop.trf.xlu0
      %v5779 = vpop.trf.xlu0
      %v5780 = vpop.trf.xlu0
      %v5781 = vpop.trf.xlu0
      %v5782 = vpop.trf.xlu0
      %v5783 = vpop.trf.xlu0
      %v5784 = vpop.trf.xlu0
      %v5785 = vpop.trf.xlu0
      %v5786 = vpop.trf.xlu0
      %v5787 = vpop.trf.xlu0
      %v5788 = vpop.trf.xlu0
      %v5789 = vpop.trf.xlu0
      %v5790 = vpop.trf.xlu0
      %v5791 = vpop.trf.xlu0
      %v5792 = vpop.trf.xlu0
      %v5793 = vpop.trf.xlu0
      %5794 = vxpose.xlu0.b32.start [1/16] %v4987, 128
      %5795 = vxpose.xlu0.b32.cont [2/16] 0.0, 128
      %5796 = vxpose.xlu0.b32.cont [3/16] 0.0, 128
      %5797 = vxpose.xlu0.b32.cont [4/16] 0.0, 128
      %5798 = vxpose.xlu0.b32.cont [5/16] 0.0, 128
      %5799 = vxpose.xlu0.b32.cont [6/16] 0.0, 128
      %5800 = vxpose.xlu0.b32.cont [7/16] 0.0, 128
      %5801 = vxpose.xlu0.b32.cont [8/16] 0.0, 128
      %5802 = vxpose.xlu0.b32.cont [9/16] 0.0, 128
      %5803 = vxpose.xlu0.b32.cont [10/16] 0.0, 128
      %5804 = vxpose.xlu0.b32.cont [11/16] 0.0, 128
      %5805 = vxpose.xlu0.b32.cont [12/16] 0.0, 128
      %5806 = vxpose.xlu0.b32.cont [13/16] 0.0, 128
      %5807 = vxpose.xlu0.b32.cont [14/16] 0.0, 128
      %5808 = vxpose.xlu0.b32.cont [15/16] 0.0, 128
      %5809 = vxpose.xlu0.b32.end [16/16] 0.0, 128
      %v5810 = vpop.trf.xlu0
      %v5811 = vpop.trf.xlu0
      %v5812 = vpop.trf.xlu0
      %v5813 = vpop.trf.xlu0
      %v5814 = vpop.trf.xlu0
      %v5815 = vpop.trf.xlu0
      %v5816 = vpop.trf.xlu0
      %v5817 = vpop.trf.xlu0
      %v5818 = vpop.trf.xlu0
      %v5819 = vpop.trf.xlu0
      %v5820 = vpop.trf.xlu0
      %v5821 = vpop.trf.xlu0
      %v5822 = vpop.trf.xlu0
      %v5823 = vpop.trf.xlu0
      %v5824 = vpop.trf.xlu0
      %v5825 = vpop.trf.xlu0
      %5826 = vxpose.xlu0.b32.start [1/16] %v4973, 128
      %5827 = vxpose.xlu0.b32.cont [2/16] 0.0, 128
      %5828 = vxpose.xlu0.b32.cont [3/16] 0.0, 128
      %5829 = vxpose.xlu0.b32.cont [4/16] 0.0, 128
      %5830 = vxpose.xlu0.b32.cont [5/16] 0.0, 128
      %5831 = vxpose.xlu0.b32.cont [6/16] 0.0, 128
      %5832 = vxpose.xlu0.b32.cont [7/16] 0.0, 128
      %5833 = vxpose.xlu0.b32.cont [8/16] 0.0, 128
      %5834 = vxpose.xlu0.b32.cont [9/16] 0.0, 128
      %5835 = vxpose.xlu0.b32.cont [10/16] 0.0, 128
      %5836 = vxpose.xlu0.b32.cont [11/16] 0.0, 128
      %5837 = vxpose.xlu0.b32.cont [12/16] 0.0, 128
      %5838 = vxpose.xlu0.b32.cont [13/16] 0.0, 128
      %5839 = vxpose.xlu0.b32.cont [14/16] 0.0, 128
      %5840 = vxpose.xlu0.b32.cont [15/16] 0.0, 128
      %5841 = vxpose.xlu0.b32.end [16/16] 0.0, 128
      %v5842 = vpop.trf.xlu0
      %v5843 = vpop.trf.xlu0
      %v5844 = vpop.trf.xlu0
      %v5845 = vpop.trf.xlu0
      %v5846 = vpop.trf.xlu0
      %v5847 = vpop.trf.xlu0
      %v5848 = vpop.trf.xlu0
      %v5849 = vpop.trf.xlu0
      %v5850 = vpop.trf.xlu0
      %v5851 = vpop.trf.xlu0
      %v5852 = vpop.trf.xlu0
      %v5853 = vpop.trf.xlu0
      %v5854 = vpop.trf.xlu0
      %v5855 = vpop.trf.xlu0
      %v5856 = vpop.trf.xlu0
      %v5857 = vpop.trf.xlu0
      %5858 = vxpose.xlu0.b32.start [1/16] %v4989, 128
      %5859 = vxpose.xlu0.b32.cont [2/16] 0.0, 128
      %5860 = vxpose.xlu0.b32.cont [3/16] 0.0, 128
      %5861 = vxpose.xlu0.b32.cont [4/16] 0.0, 128
      %5862 = vxpose.xlu0.b32.cont [5/16] 0.0, 128
      %5863 = vxpose.xlu0.b32.cont [6/16] 0.0, 128
      %5864 = vxpose.xlu0.b32.cont [7/16] 0.0, 128
      %5865 = vxpose.xlu0.b32.cont [8/16] 0.0, 128
      %5866 = vxpose.xlu0.b32.cont [9/16] 0.0, 128
      %5867 = vxpose.xlu0.b32.cont [10/16] 0.0, 128
      %5868 = vxpose.xlu0.b32.cont [11/16] 0.0, 128
      %5869 = vxpose.xlu0.b32.cont [12/16] 0.0, 128
      %5870 = vxpose.xlu0.b32.cont [13/16] 0.0, 128
      %5871 = vxpose.xlu0.b32.cont [14/16] 0.0, 128
      %5872 = vxpose.xlu0.b32.cont [15/16] 0.0, 128
      %5873 = vxpose.xlu0.b32.end [16/16] 0.0, 128
      %v5874 = vpop.trf.xlu0
      %v5875 = vpop.trf.xlu0
      %v5876 = vpop.trf.xlu0
      %v5877 = vpop.trf.xlu0
      %v5878 = vpop.trf.xlu0
      %v5879 = vpop.trf.xlu0
      %v5880 = vpop.trf.xlu0
      %v5881 = vpop.trf.xlu0
      %v5882 = vpop.trf.xlu0
      %v5883 = vpop.trf.xlu0
      %v5884 = vpop.trf.xlu0
      %v5885 = vpop.trf.xlu0
      %v5886 = vpop.trf.xlu0
      %v5887 = vpop.trf.xlu0
      %v5888 = vpop.trf.xlu0
      %v5889 = vpop.trf.xlu0
      %5890 = vxpose.xlu0.b32.start [1/16] %v4981, 128
      %5891 = vxpose.xlu0.b32.cont [2/16] 0.0, 128
      %5892 = vxpose.xlu0.b32.cont [3/16] 0.0, 128
      %5893 = vxpose.xlu0.b32.cont [4/16] 0.0, 128
      %5894 = vxpose.xlu0.b32.cont [5/16] 0.0, 128
      %5895 = vxpose.xlu0.b32.cont [6/16] 0.0, 128
      %5896 = vxpose.xlu0.b32.cont [7/16] 0.0, 128
      %5897 = vxpose.xlu0.b32.cont [8/16] 0.0, 128
      %5898 = vxpose.xlu0.b32.cont [9/16] 0.0, 128
      %5899 = vxpose.xlu0.b32.cont [10/16] 0.0, 128
      %5900 = vxpose.xlu0.b32.cont [11/16] 0.0, 128
      %5901 = vxpose.xlu0.b32.cont [12/16] 0.0, 128
      %5902 = vxpose.xlu0.b32.cont [13/16] 0.0, 128
      %5903 = vxpose.xlu0.b32.cont [14/16] 0.0, 128
      %5904 = vxpose.xlu0.b32.cont [15/16] 0.0, 128
      %5905 = vxpose.xlu0.b32.end [16/16] 0.0, 128
      %v5906 = vpop.trf.xlu0
      %v5907 = vpop.trf.xlu0
      %v5908 = vpop.trf.xlu0
      %v5909 = vpop.trf.xlu0
      %v5910 = vpop.trf.xlu0
      %v5911 = vpop.trf.xlu0
      %v5912 = vpop.trf.xlu0
      %v5913 = vpop.trf.xlu0
      %v5914 = vpop.trf.xlu0
      %v5915 = vpop.trf.xlu0
      %v5916 = vpop.trf.xlu0
      %v5917 = vpop.trf.xlu0
      %v5918 = vpop.trf.xlu0
      %v5919 = vpop.trf.xlu0
      %v5920 = vpop.trf.xlu0
      %v5921 = vpop.trf.xlu0
      %5922 = vxpose.xlu0.b32.start [1/16] %v4991, 128
      %5923 = vxpose.xlu0.b32.cont [2/16] 0.0, 128
      %5924 = vxpose.xlu0.b32.cont [3/16] 0.0, 128
      %5925 = vxpose.xlu0.b32.cont [4/16] 0.0, 128
      %5926 = vxpose.xlu0.b32.cont [5/16] 0.0, 128
      %5927 = vxpose.xlu0.b32.cont [6/16] 0.0, 128
      %5928 = vxpose.xlu0.b32.cont [7/16] 0.0, 128
      %5929 = vxpose.xlu0.b32.cont [8/16] 0.0, 128
      %5930 = vxpose.xlu0.b32.cont [9/16] 0.0, 128
      %5931 = vxpose.xlu0.b32.cont [10/16] 0.0, 128
      %5932 = vxpose.xlu0.b32.cont [11/16] 0.0, 128
      %5933 = vxpose.xlu0.b32.cont [12/16] 0.0, 128
      %5934 = vxpose.xlu0.b32.cont [13/16] 0.0, 128
      %5935 = vxpose.xlu0.b32.cont [14/16] 0.0, 128
      %5936 = vxpose.xlu0.b32.cont [15/16] 0.0, 128
      %5937 = vxpose.xlu0.b32.end [16/16] 0.0, 128
      %v5938 = vpop.trf.xlu0
      %v5939 = vpop.trf.xlu0
      %v5940 = vpop.trf.xlu0
      %v5941 = vpop.trf.xlu0
      %v5942 = vpop.trf.xlu0
      %v5943 = vpop.trf.xlu0
      %v5944 = vpop.trf.xlu0
      %v5945 = vpop.trf.xlu0
      %v5946 = vpop.trf.xlu0
      %v5947 = vpop.trf.xlu0
      %v5948 = vpop.trf.xlu0
      %v5949 = vpop.trf.xlu0
      %v5950 = vpop.trf.xlu0
      %v5951 = vpop.trf.xlu0
      %v5952 = vpop.trf.xlu0
      %v5953 = vpop.trf.xlu0
      %5954 = vxpose.xlu0.b32.start [1/16] %v4985, 128
      %5955 = vxpose.xlu0.b32.cont [2/16] 0.0, 128
      %5956 = vxpose.xlu0.b32.cont [3/16] 0.0, 128
      %5957 = vxpose.xlu0.b32.cont [4/16] 0.0, 128
      %5958 = vxpose.xlu0.b32.cont [5/16] 0.0, 128
      %5959 = vxpose.xlu0.b32.cont [6/16] 0.0, 128
      %5960 = vxpose.xlu0.b32.cont [7/16] 0.0, 128
      %5961 = vxpose.xlu0.b32.cont [8/16] 0.0, 128
      %5962 = vxpose.xlu0.b32.cont [9/16] 0.0, 128
      %5963 = vxpose.xlu0.b32.cont [10/16] 0.0, 128
      %5964 = vxpose.xlu0.b32.cont [11/16] 0.0, 128
      %5965 = vxpose.xlu0.b32.cont [12/16] 0.0, 128
      %5966 = vxpose.xlu0.b32.cont [13/16] 0.0, 128
      %5967 = vxpose.xlu0.b32.cont [14/16] 0.0, 128
      %5968 = vxpose.xlu0.b32.cont [15/16] 0.0, 128
      %5969 = vxpose.xlu0.b32.end [16/16] 0.0, 128
      %v5970 = vpop.trf.xlu0
      %v5971 = vpop.trf.xlu0
      %v5972 = vpop.trf.xlu0
      %v5973 = vpop.trf.xlu0
      %v5974 = vpop.trf.xlu0
      %v5975 = vpop.trf.xlu0
      %v5976 = vpop.trf.xlu0
      %v5977 = vpop.trf.xlu0
      %v5978 = vpop.trf.xlu0
      %v5979 = vpop.trf.xlu0
      %v5980 = vpop.trf.xlu0
      %v5981 = vpop.trf.xlu0
      %v5982 = vpop.trf.xlu0
      %v5983 = vpop.trf.xlu0
      %v5984 = vpop.trf.xlu0
      %v5985 = vpop.trf.xlu0
      %5986 = vxpose.xlu0.b32.start [1/16] %v4993, 128
      %5987 = vxpose.xlu0.b32.cont [2/16] 0.0, 128
      %5988 = vxpose.xlu0.b32.cont [3/16] 0.0, 128
      %5989 = vxpose.xlu0.b32.cont [4/16] 0.0, 128
      %5990 = vxpose.xlu0.b32.cont [5/16] 0.0, 128
      %5991 = vxpose.xlu0.b32.cont [6/16] 0.0, 128
      %5992 = vxpose.xlu0.b32.cont [7/16] 0.0, 128
      %5993 = vxpose.xlu0.b32.cont [8/16] 0.0, 128
      %5994 = vxpose.xlu0.b32.cont [9/16] 0.0, 128
      %5995 = vxpose.xlu0.b32.cont [10/16] 0.0, 128
      %5996 = vxpose.xlu0.b32.cont [11/16] 0.0, 128
      %5997 = vxpose.xlu0.b32.cont [12/16] 0.0, 128
      %5998 = vxpose.xlu0.b32.cont [13/16] 0.0, 128
      %5999 = vxpose.xlu0.b32.cont [14/16] 0.0, 128
      %6000 = vxpose.xlu0.b32.cont [15/16] 0.0, 128
      %6001 = vxpose.xlu0.b32.end [16/16] 0.0, 128
      %v6002 = vpop.trf.xlu0
      %v6003 = vpop.trf.xlu0
      %v6004 = vpop.trf.xlu0
      %v6005 = vpop.trf.xlu0
      %v6006 = vpop.trf.xlu0
      %v6007 = vpop.trf.xlu0
      %v6008 = vpop.trf.xlu0
      %v6009 = vpop.trf.xlu0
      %v6010 = vpop.trf.xlu0
      %v6011 = vpop.trf.xlu0
      %v6012 = vpop.trf.xlu0
      %v6013 = vpop.trf.xlu0
      %v6014 = vpop.trf.xlu0
      %v6015 = vpop.trf.xlu0
      %v6016 = vpop.trf.xlu0
      %v6017 = vpop.trf.xlu0
      %v6050 = vrot.slane %v5042, 7
      %v6051 = vsel %vm1490, %v6050, %v5010
      %v6052 = vrot.slane %v5074, 6
      %v6053 = vsel %vm1493, %v6052, %v6051
      %v6054 = vrot.slane %v5106, 5
      %v6055 = vsel %vm1496, %v6054, %v6053
      %v6056 = vrot.slane %v5138, 4
      %v6057 = vsel %vm1499, %v6056, %v6055
      %v6058 = vrot.slane %v5170, 3
      %v6059 = vsel %vm1502, %v6058, %v6057
      %v6060 = vrot.slane %v5202, 2
      %v6061 = vsel %vm1505, %v6060, %v6059
      %v6062 = vrot.slane %v5234, 1
      %v6063 = vsel %vm1508, %v6062, %v6061
      %v6064 = vrot.slane %v5298, 7
      %v6065 = vsel %vm1490, %v6064, %v5266
      %v6066 = vrot.slane %v5330, 6
      %v6067 = vsel %vm1493, %v6066, %v6065
      %v6068 = vrot.slane %v5362, 5
      %v6069 = vsel %vm1496, %v6068, %v6067
      %v6070 = vrot.slane %v5394, 4
      %v6071 = vsel %vm1499, %v6070, %v6069
      %v6072 = vrot.slane %v5426, 3
      %v6073 = vsel %vm1502, %v6072, %v6071
      %v6074 = vrot.slane %v5458, 2
      %v6075 = vsel %vm1505, %v6074, %v6073
      %v6076 = vrot.slane %v5490, 1
      %v6077 = vsel %vm1508, %v6076, %v6075
      %v6078 = vrot.slane %v5554, 7
      %v6079 = vsel %vm1490, %v6078, %v5522
      %v6080 = vrot.slane %v5586, 6
      %v6081 = vsel %vm1493, %v6080, %v6079
      %v6082 = vrot.slane %v5618, 5
      %v6083 = vsel %vm1496, %v6082, %v6081
      %v6084 = vrot.slane %v5650, 4
      %v6085 = vsel %vm1499, %v6084, %v6083
      %v6086 = vrot.slane %v5682, 3
      %v6087 = vsel %vm1502, %v6086, %v6085
      %v6088 = vrot.slane %v5714, 2
      %v6089 = vsel %vm1505, %v6088, %v6087
      %v6090 = vrot.slane %v5746, 1
      %v6091 = vsel %vm1508, %v6090, %v6089
      %v6092 = vrot.slane %v5810, 7
      %v6093 = vsel %vm1490, %v6092, %v5778
      %v6094 = vrot.slane %v5842, 6
      %v6095 = vsel %vm1493, %v6094, %v6093
      %v6096 = vrot.slane %v5874, 5
      %v6097 = vsel %vm1496, %v6096, %v6095
      %v6098 = vrot.slane %v5906, 4
      %v6099 = vsel %vm1499, %v6098, %v6097
      %v6100 = vrot.slane %v5938, 3
      %v6101 = vsel %vm1502, %v6100, %v6099
      %v6102 = vrot.slane %v5970, 2
      %v6103 = vsel %vm1505, %v6102, %v6101
      %v6104 = vrot.slane %v6002, 1
      %v6105 = vsel %vm1508, %v6104, %v6103
      %s6110 = scalar_lea.vmem %s159, 96
      %6111 = vst.msk [vmem:[%s6110] sm:$0xff] %vm1556, %v6063
      %6112 = vst.msk [vmem:[%s6110 + $0x80] sm:$0xff] %vm1556, %v6077
      %6113 = vst.msk [vmem:[%s6110 + $0x100] sm:$0xff] %vm1556, %v6091
      %6114 = vst.msk [vmem:[%s6110 + $0x180] sm:$0xff] %vm1556, %v6105
      %v6115 = vsel %vm1493, %v6050, %v5010
      %v6116 = vsel %vm1496, %v6052, %v6115
      %v6117 = vsel %vm1499, %v6054, %v6116
      %v6118 = vsel %vm1502, %v6056, %v6117
      %v6119 = vsel %vm1505, %v6058, %v6118
      %v6120 = vsel %vm1508, %v6060, %v6119
      %v6121 = vsel %vm1493, %v6064, %v5266
      %v6122 = vsel %vm1496, %v6066, %v6121
      %v6123 = vsel %vm1499, %v6068, %v6122
      %v6124 = vsel %vm1502, %v6070, %v6123
      %v6125 = vsel %vm1505, %v6072, %v6124
      %v6126 = vsel %vm1508, %v6074, %v6125
      %v6127 = vsel %vm1493, %v6078, %v5522
      %v6128 = vsel %vm1496, %v6080, %v6127
      %v6129 = vsel %vm1499, %v6082, %v6128
      %v6130 = vsel %vm1502, %v6084, %v6129
      %v6131 = vsel %vm1505, %v6086, %v6130
      %v6132 = vsel %vm1508, %v6088, %v6131
      %v6133 = vsel %vm1493, %v6092, %v5778
      %v6134 = vsel %vm1496, %v6094, %v6133
      %v6135 = vsel %vm1499, %v6096, %v6134
      %v6136 = vsel %vm1502, %v6098, %v6135
      %v6137 = vsel %vm1505, %v6100, %v6136
      %v6138 = vsel %vm1508, %v6102, %v6137
      %s6147 = scalar_lea.vmem %s159, 104
      %6148 = vst.msk [vmem:[%s6147 - $0x1] sm:$0xfe] %vm1594, %v6120
      %6149 = vst.msk [vmem:[%s6147 + $0x7] sm:$0x1] %vm1596, %v6062
      %6150 = vst.msk [vmem:[%s6147 + $0x7f] sm:$0xfe] %vm1594, %v6126
      %6151 = vst.msk [vmem:[%s6147 + $0x87] sm:$0x1] %vm1596, %v6076
      %6152 = vst.msk [vmem:[%s6147 + $0xff] sm:$0xfe] %vm1594, %v6132
      %6153 = vst.msk [vmem:[%s6147 + $0x107] sm:$0x1] %vm1596, %v6090
      %6154 = vst.msk [vmem:[%s6147 + $0x17f] sm:$0xfe] %vm1594, %v6138
      %6155 = vst.msk [vmem:[%s6147 + $0x187] sm:$0x1] %vm1596, %v6104
      %v6156 = vsel %vm1496, %v6050, %v5010
      %v6157 = vsel %vm1499, %v6052, %v6156
      %v6158 = vsel %vm1502, %v6054, %v6157
      %v6159 = vsel %vm1505, %v6056, %v6158
      %v6160 = vsel %vm1508, %v6058, %v6159
      %v6161 = vsel %vm1490, %v6062, %v6060
      %v6162 = vsel %vm1496, %v6064, %v5266
      %v6163 = vsel %vm1499, %v6066, %v6162
      %v6164 = vsel %vm1502, %v6068, %v6163
      %v6165 = vsel %vm1505, %v6070, %v6164
      %v6166 = vsel %vm1508, %v6072, %v6165
      %v6167 = vsel %vm1490, %v6076, %v6074
      %v6168 = vsel %vm1496, %v6078, %v5522
      %v6169 = vsel %vm1499, %v6080, %v6168
      %v6170 = vsel %vm1502, %v6082, %v6169
      %v6171 = vsel %vm1505, %v6084, %v6170
      %v6172 = vsel %vm1508, %v6086, %v6171
      %v6173 = vsel %vm1490, %v6090, %v6088
      %v6174 = vsel %vm1496, %v6092, %v5778
      %v6175 = vsel %vm1499, %v6094, %v6174
      %v6176 = vsel %vm1502, %v6096, %v6175
      %v6177 = vsel %vm1505, %v6098, %v6176
      %v6178 = vsel %vm1508, %v6100, %v6177
      %v6179 = vsel %vm1490, %v6104, %v6102
      %s6188 = scalar_lea.vmem %s159, 112
      %6189 = vst.msk [vmem:[%s6188 - $0x2] sm:$0xfc] %vm1637, %v6160
      %6190 = vst.msk [vmem:[%s6188 + $0x6] sm:$0x3] %vm1639, %v6161
      %6191 = vst.msk [vmem:[%s6188 + $0x7e] sm:$0xfc] %vm1637, %v6166
      %6192 = vst.msk [vmem:[%s6188 + $0x86] sm:$0x3] %vm1639, %v6167
      %6193 = vst.msk [vmem:[%s6188 + $0xfe] sm:$0xfc] %vm1637, %v6172
      %6194 = vst.msk [vmem:[%s6188 + $0x106] sm:$0x3] %vm1639, %v6173
      %6195 = vst.msk [vmem:[%s6188 + $0x17e] sm:$0xfc] %vm1637, %v6178
      %6196 = vst.msk [vmem:[%s6188 + $0x186] sm:$0x3] %vm1639, %v6179
      %v6197 = vsel %vm1499, %v6050, %v5010
      %v6198 = vsel %vm1502, %v6052, %v6197
      %v6199 = vsel %vm1505, %v6054, %v6198
      %v6200 = vsel %vm1508, %v6056, %v6199
      %v6201 = vsel %vm1490, %v6060, %v6058
      %v6202 = vsel %vm1493, %v6062, %v6201
      %v6203 = vsel %vm1499, %v6064, %v5266
      %v6204 = vsel %vm1502, %v6066, %v6203
      %v6205 = vsel %vm1505, %v6068, %v6204
      %v6206 = vsel %vm1508, %v6070, %v6205
      %v6207 = vsel %vm1490, %v6074, %v6072
      %v6208 = vsel %vm1493, %v6076, %v6207
      %v6209 = vsel %vm1499, %v6078, %v5522
      %v6210 = vsel %vm1502, %v6080, %v6209
      %v6211 = vsel %vm1505, %v6082, %v6210
      %v6212 = vsel %vm1508, %v6084, %v6211
      %v6213 = vsel %vm1490, %v6088, %v6086
      %v6214 = vsel %vm1493, %v6090, %v6213
      %v6215 = vsel %vm1499, %v6092, %v5778
      %v6216 = vsel %vm1502, %v6094, %v6215
      %v6217 = vsel %vm1505, %v6096, %v6216
      %v6218 = vsel %vm1508, %v6098, %v6217
      %v6219 = vsel %vm1490, %v6102, %v6100
      %v6220 = vsel %vm1493, %v6104, %v6219
      %s6229 = scalar_lea.vmem %s159, 120
      %6230 = vst.msk [vmem:[%s6229 - $0x3] sm:$0xf8] %vm1680, %v6200
      %6231 = vst.msk [vmem:[%s6229 + $0x5] sm:$0x7] %vm1682, %v6202
      %6232 = vst.msk [vmem:[%s6229 + $0x7d] sm:$0xf8] %vm1680, %v6206
      %6233 = vst.msk [vmem:[%s6229 + $0x85] sm:$0x7] %vm1682, %v6208
      %6234 = vst.msk [vmem:[%s6229 + $0xfd] sm:$0xf8] %vm1680, %v6212
      %6235 = vst.msk [vmem:[%s6229 + $0x105] sm:$0x7] %vm1682, %v6214
      %6236 = vst.msk [vmem:[%s6229 + $0x17d] sm:$0xf8] %vm1680, %v6218
      %6237 = vst.msk [vmem:[%s6229 + $0x185] sm:$0x7] %vm1682, %v6220
      %s6238 = smul.u32 4, %s17
      %p6239 = scmp.lt.s32.totalorder %s16, 1
      %s6240 = scalar_select %p6239, %s16, 1
      %p6241 = scmp.lt.s32.totalorder %s6238, 3
      %s6242 = scalar_select %p6241, %s6238, 3
      %s6243 = smul.addr %s6242, 16
      %s6244 = smul.addr %s6240, 64
      %s6245 = sadd.s32 %s6243, %s6244
      %s6246 = smul.addr %s6245, 8
      %s6247 = scalar_lea.vmem %s1, %s6246
      // Predicated region
      $region25: #{tpu_custom_call.1} parent=23 // pred_check
        %p6248 = pneg %p72
      $region26: #{tpu_custom_call.1} parent=23 // pred_check_branch
        %6250 = sbr.rel (%p6248) target = $region28
      $region27: #{tpu_custom_call.1} parent=23 // pred_region
        %s6251 = smul.u32 4, %s17
      $region28: #{tpu_custom_call.1} parent=23 // pred_fallthru
        _
    $region24: #{tpu_custom_call.1} parent=5 // pred_fallthru
      _
    %p6252 = scmp.le.s32.totalorder 2, %s7
    // Predicated region
    $region29: #{tpu_custom_call.1} parent=5 // pred_check
      %p6253 = pneg %p6252
    $region30: #{tpu_custom_call.1} parent=5 // pred_check_branch
      %6255 = sbr.rel (%p6253) target = $region32
    $region31: #{tpu_custom_call.1} parent=5 // pred_region
      %s6256 = ssub.s32 %s7, 2
      // Predicated region
      $region33: #{tpu_custom_call.1} parent=31 // pred_check
        %p6257 = pneg %p78
      $region34: #{tpu_custom_call.1} parent=31 // pred_check_branch
        %6259 = sbr.rel (%p6257) target = $region36
      $region35: #{tpu_custom_call.1} parent=31 // pred_region
        %s6260 = smul.u32 4, %s19
        %p6261 = scmp.lt.s32.totalorder %s18, 1
        %s6262 = scalar_select %p6261, %s18, 1
        %p6263 = scmp.lt.s32.totalorder %s6260, 3
        %s6264 = scalar_select %p6263, %s6260, 3
        %s6265 = smul.addr %s6264, 16
        %s6266 = smul.addr %s6262, 64
        %s6267 = sadd.s32 %s6265, %s6266
        %s6268 = smul.addr %s6267, 8
        %s6269 = scalar_lea.vmem %s1, %s6268
      $region36: #{tpu_custom_call.1} parent=31 // pred_fallthru
        _
    $region32: #{tpu_custom_call.1} parent=5 // pred_fallthru
      _
  $region6: #{tpu_custom_call.1} parent=0 // loop_footer
    %s11 = sadd.s32 1, %s7
  $region7: #{tpu_custom_call.1} parent=0 // loop_footer_branch
    %6 = sbr.rel target = $region3
  $region8: #{tpu_custom_call.1} parent=0 // loop_exit
    _

</llo_original>
